<compile_context>
chip_gen: v6e
topology: v6e:2x2x1
jax: 0.10.0
libtpu: 0.0.40
codegen_flags: <defaults>
</compile_context>

<pallas_src>
import functools

import jax
import jax.numpy as jnp
import numpy as np
from jax import lax
from jax.experimental import pallas as pl
from jax.experimental.pallas import tpu as pltpu


# ----------------------------- Pallas kernel ------------------------------- #
def _gp_kernel(x_ref, w_ref, b_ref, padc_ref, padr_ref,
               cosq_ref, sinq_ref, cosk_ref, sink_ref, o_ref,
               q_scr, k_scr, *, heads, d, seq_q, big_scaled):
    # x_ref    : [1, Sk, H]        hidden states (bf16) for this batch element
    # w_ref    : [1, H, SLAB]      de-interleaved weight chunk (bf16)
    # b_ref    : [1, 1, SLAB]      matching bias (f32)
    # padc_ref : [1, Sk, 1]        attention mask as key-axis column (f32)
    # padr_ref : [1, 1, Sk]        attention mask as key-axis row (f32)
    # cosq/sinq: [Sq, D/2]         RoPE tables with 1/sqrt(D) folded in
    # cosk/sink: [Sk, D/2]         plain RoPE tables (pad folded in-kernel)
    # o_ref    : [1, Tc, Sq, Sk]   output logits block
    # q_scr    : [Sq, D] bf16      scratch for rotated q
    # k_scr    : [Sk, D] bf16      scratch for rotated k
    dh = d // 2
    x = x_ref[0]                                   # [Sk, H]   bf16
    w = w_ref[0]                                   # [H, SLAB] bf16
    bias = b_ref[0]                                # [1, SLAB] f32
    seq_k = x.shape[0]

    # One fused projection for all heads of this chunk (f32 accumulation).
    proj = jnp.dot(x, w, preferred_element_type=jnp.float32) + bias   # [Sk,SLAB]

    padc = padc_ref[0]                             # [Sk, 1]
    padr = padr_ref[0]                             # [1, Sk]

    # q-side tables already carry 1/sqrt(D); fold the (binary) key pad mask
    # into the k-side tables once per grid step (exact, pad in {0,1}).
    cos_q = cosq_ref[...]                          # [Sq, D/2]
    sin_q = sinq_ref[...]
    cos_k = cosk_ref[...] * padc                   # [Sk, D/2]
    sin_k = sink_ref[...] * padc

    # Additive (pad + tril) mask built in-kernel: no [B,S,S] HBM input.
    row = lax.broadcasted_iota(jnp.int32, (seq_q, seq_k), 0)
    col = lax.broadcasted_iota(jnp.int32, (seq_q, seq_k), 1)
    tri = (row > col).astype(jnp.float32)
    add_mask = (tri + (1.0 - padr)) * big_scaled   # [Sq, Sk]

    # TODO(synk): switch to lax.fori_loop(unroll=...) if Tc ever gets large
    # enough for code size / vreg pressure to matter.
    for t in range(heads):
        off = t * 2 * d
        # De-interleaved per-head layout: [q_even | q_odd | k_even | k_odd].
        qa = proj[:seq_q, off:off + dh]
        qb = proj[:seq_q, off + dh:off + d]
        ka = proj[:, off + d:off + d + dh]
        kb = proj[:, off + d + dh:off + 2 * d]

        # RoPE on de-interleaved halves (a' = a*cos - b*sin, b' = b*cos + a*sin),
        # written as two masked sub-lane stores into contiguous bf16 scratch.
        q_scr[:, :dh] = (qa * cos_q - qb * sin_q).astype(jnp.bfloat16)
        q_scr[:, dh:] = (qb * cos_q + qa * sin_q).astype(jnp.bfloat16)
        k_scr[:, :dh] = (ka * cos_k - kb * sin_k).astype(jnp.bfloat16)
        k_scr[:, dh:] = (kb * cos_k + ka * sin_k).astype(jnp.bfloat16)

        # logits[m, n] = q_rot[m] . k_rot[n]  (contract dim 1 vs dim 1)
        logits = lax.dot_general(
            q_scr[...], k_scr[...],
            dimension_numbers=(((1,), (1,)), ((), ())),
            preferred_element_type=jnp.float32)    # [Sq, Sk] f32

        o_ref[0, t] = (logits - add_mask).astype(o_ref.dtype)


# --------------------------- wrapper / param prep -------------------------- #
def _round_up(x, m):
    return (x + m - 1) // m * m


def _default_vmem_budget():
    """Per-generation head-chunk VMEM budget (bytes)."""
    try:
        kind = jax.devices()[0].device_kind.lower()
    except Exception:
        return 40 << 20
    if "v5" in kind or "v6" in kind:
        return 96 << 20          # 128 MiB physical VMEM per core
    return 40 << 20              # v7x (64 MiB) / unknown: conservative


def _step_vmem_bytes(tc, sq, sk, h, d, out_itemsize):
    """Approximate per-grid-step VMEM footprint for a head chunk of size tc."""
    slab = _round_up(tc * 2 * d, 128)
    return int(
        2 * sk * h * 2                      # hidden block (bf16, double buffered)
        + 2 * h * slab * 2                  # weight chunk (bf16)
        + 2 * slab * 4                      # bias
        + 4 * sk * 4                        # pad col / row
        + 2 * (sq + sk) * d * 4             # RoPE tables
        + 2 * tc * sq * sk * out_itemsize   # output blocks
        + sk * slab * 4                     # f32 projection temporary
        + 3 * sq * sk * 4                   # add_mask / logits temporaries
        + 6 * sk * d * 4                    # per-head slices / rotated halves
        + (sq + sk) * d * 2                 # bf16 scratch buffers
        + (4 << 20))                        # slack for compiler temporaries


def _pick_heads_per_step(T, B, sq, sk, h, d, out_itemsize, budget_bytes):
    fits = [tc for tc in range(1, T + 1)
            if _step_vmem_bytes(tc, sq, sk, h, d, out_itemsize) <= budget_bytes]
    if not fits:
        return 1
    # Keep >= 2 grid steps at batch 1 so both v7x TensorCores get work.
    if B == 1 and T > 1:
        two_step = [tc for tc in fits if -(-T // tc) >= 2]
        if two_step:
            fits = two_step
    # Prefer zero head padding (Tc | T), then the largest chunk (fewest steps).
    def score(tc):
        c = -(-T // tc)
        return (c * tc - T, -tc)
    return min(fits, key=score)


def global_pointer_logits(hidden, attn_mask, W, b, ner_type_num, inner_dim,
                          heads_per_step=None, out_dtype=jnp.float32,
                          vmem_budget_bytes=None, return_padded=False):
    """hidden: [B,S,H] f32; attn_mask: [B,S]; W: [H, T*2D] (applied as x@W+b);
    b: [T*2D].  Returns logits [B, T, S, S] matching the PyTorch forward
    (or the padded [B, C*Tc, Sq, Sk] layout if return_padded=True).
    NOTE: W/b are the *unpermuted* nn.Linear params — the even/odd
    de-interleave permutation required by the in-kernel RoPE is applied here."""
    B, S, H = hidden.shape
    T, D = int(ner_type_num), int(inner_dim)
    assert D % 2 == 0, "inner_dim must be even for RoPE"
    dh = D // 2
    inv_sqrt_d = float(1.0 / np.sqrt(D))
    big_scaled = float(1e12 * inv_sqrt_d)

    Sq = _round_up(S, 8)           # query rows: sublane (8) alignment only
    Sk = _round_up(S, 128)         # key axis: lane-dense output stores
    out_itemsize = np.dtype(out_dtype).itemsize

    if vmem_budget_bytes is None:
        vmem_budget_bytes = _default_vmem_budget()
    if heads_per_step is None:
        heads_per_step = _pick_heads_per_step(
            T, B, Sq, Sk, H, D, out_itemsize, vmem_budget_bytes)
    Tc = int(heads_per_step)
    C = -(-T // Tc)
    Tp = C * Tc                                   # == T when Tc | T (preferred)
    SLAB = _round_up(Tc * 2 * D, 128)             # whole-chunk lane padding only

    # ---- de-interleave dense params per head, group into head chunks ----
    Wnp = np.asarray(W, np.float32)
    bnp = np.asarray(b, np.float32)
    perm = np.concatenate([np.arange(0, D, 2), np.arange(1, D, 2)])
    Wp = np.zeros((C, H, SLAB), np.float32)
    bp = np.zeros((C, 1, SLAB), np.float32)
    for t in range(T):
        c, tl = divmod(t, Tc)
        src_q = t * 2 * D + perm
        src_k = t * 2 * D + D + perm
        dst = tl * 2 * D
        Wp[c, :, dst:dst + D] = Wnp[:, src_q]
        Wp[c, :, dst + D:dst + 2 * D] = Wnp[:, src_k]
        bp[c, 0, dst:dst + D] = bnp[src_q]
        bp[c, 0, dst + D:dst + 2 * D] = bnp[src_k]
    w_chunks = jnp.asarray(Wp, jnp.bfloat16)              # [C, H, SLAB]
    b_chunks = jnp.asarray(bp, jnp.float32)               # [C, 1, SLAB]

    # ---- RoPE half-tables; 1/sqrt(D) folded into the q-side tables ----
    pos = np.arange(Sk, dtype=np.float32)[:, None]
    idx = np.arange(dh, dtype=np.float32)
    theta = np.power(10000.0, -2.0 * idx / D)
    ang = pos * theta                                       # [Sk, D/2]
    cos_k_t = jnp.asarray(np.cos(ang), jnp.float32)
    sin_k_t = jnp.asarray(np.sin(ang), jnp.float32)
    cos_q_t = jnp.asarray(np.cos(ang[:Sq]) * inv_sqrt_d, jnp.float32)
    sin_q_t = jnp.asarray(np.sin(ang[:Sq]) * inv_sqrt_d, jnp.float32)

    # ---- padded hidden states and pad-mask layouts ----
    hidden_pad = jnp.zeros((B, Sk, H), jnp.float32).at[:, :S, :].set(
        hidden.astype(jnp.float32)).astype(jnp.bfloat16)
    pad = jnp.zeros((B, Sk), jnp.float32).at[:, :S].set(
        attn_mask.astype(jnp.float32))
    pad_col = pad[:, :, None]                               # [B, Sk, 1]
    pad_row = pad[:, None, :]                               # [B, 1, Sk]

    # ---- VMEM limit from the actual footprint (v7x-safe, <= ~112 MiB) ----
    step_bytes = _step_vmem_bytes(Tc, Sq, Sk, H, D, out_itemsize)
    vmem_limit = int(min(max(step_bytes + (8 << 20), 32 << 20), 112 << 20))

    # ---- grid order: minimize HBM re-reads of weights vs hidden ----
    wc_bytes = H * SLAB * 2
    xb_bytes = Sk * H * 2
    batch_outer = (B * C * wc_bytes + B * xb_bytes) <= (C * wc_bytes + C * B * xb_bytes)
    if batch_outer:
        grid = (B, C)
        bidx = lambda i, j: i
        cidx = lambda i, j: j
    else:
        grid = (C, B)
        bidx = lambda i, j: j
        cidx = lambda i, j: i

    kernel = functools.partial(_gp_kernel, heads=Tc, d=D, seq_q=Sq,
                               big_scaled=big_scaled)

    out = pl.pallas_call(
        kernel,
        out_shape=jax.ShapeDtypeStruct((B, Tp, Sq, Sk), out_dtype),
        grid_spec=pltpu.PrefetchScalarGridSpec(
            num_scalar_prefetch=0,
            grid=grid,
            in_specs=[
                pl.BlockSpec((1, Sk, H), lambda i, j: (bidx(i, j), 0, 0)),      # hidden
                pl.BlockSpec((1, H, SLAB), lambda i, j: (cidx(i, j), 0, 0)),    # weights
                pl.BlockSpec((1, 1, SLAB), lambda i, j: (cidx(i, j), 0, 0)),    # bias
                pl.BlockSpec((1, Sk, 1), lambda i, j: (bidx(i, j), 0, 0)),      # pad col
                pl.BlockSpec((1, 1, Sk), lambda i, j: (bidx(i, j), 0, 0)),      # pad row
                pl.BlockSpec((Sq, dh), lambda i, j: (0, 0)),                    # cos_q
                pl.BlockSpec((Sq, dh), lambda i, j: (0, 0)),                    # sin_q
                pl.BlockSpec((Sk, dh), lambda i, j: (0, 0)),                    # cos_k
                pl.BlockSpec((Sk, dh), lambda i, j: (0, 0)),                    # sin_k
            ],
            out_specs=pl.BlockSpec(
                (1, Tc, Sq, Sk),
                lambda i, j: (bidx(i, j), cidx(i, j), 0, 0)),
            scratch_shapes=[pltpu.VMEM((Sq, D), jnp.bfloat16),
                            pltpu.VMEM((Sk, D), jnp.bfloat16)],
        ),
        compiler_params=pltpu.CompilerParams(
            dimension_semantics=("parallel", "parallel"),
            vmem_limit_bytes=vmem_limit),
    )(hidden_pad, w_chunks, b_chunks, pad_col, pad_row,
      cos_q_t, sin_q_t, cos_k_t, sin_k_t)

    if return_padded or (Tp == T and Sq == S and Sk == S):
        return out
    # Padded heads are avoided (Tc | T) so only the sequence axes are cropped.
    return out[:, :T, :S, :S]


# --------------------------- pure-JAX reference ---------------------------- #
def reference_global_pointer(x, mask, W, b, T, D):
    """Literal port of GlobalPointer.get_logits (ro_pe=True, eval mode)."""
    B, S, H = x.shape
    proj = jnp.einsum('bsh,ho->bso', x, W, precision='highest') + b
    proj = proj.reshape(B, S, T, 2 * D)
    qw, kw = proj[..., :D], proj[..., D:]

    pos = jnp.arange(S, dtype=jnp.float32)[:, None]
    idx = jnp.arange(D // 2, dtype=jnp.float32)
    theta = jnp.power(10000.0, -2.0 * idx / D)
    ang = pos * theta
    cos_pos = jnp.repeat(jnp.cos(ang), 2, axis=-1)[None, :, None, :]
    sin_pos = jnp.repeat(jnp.sin(ang), 2, axis=-1)[None, :, None, :]

    def rot(v):
        v2 = jnp.stack([-v[..., 1::2], v[..., 0::2]], axis=-1).reshape(v.shape)
        return v * cos_pos + v2 * sin_pos

    qw, kw = rot(qw), rot(kw)
    logits = jnp.einsum('bmhd,bnhd->bhmn', qw, kw, precision='highest')
    pad = mask.astype(jnp.float32)[:, None, None, :]
    logits = logits * pad - (1.0 - pad) * 1e12
    tri = jnp.tril(jnp.ones((S, S), jnp.float32), -1)
    logits = logits - tri * 1e12
    return logits / (D ** 0.5)


# ----------------------------------- main ----------------------------------- #
if __name__ == "__main__":
    # Small synthetic config consistent with the module's forward.
    B, S, H = 2, 8, 32        # batch, seq_len, bert hidden_size
    T, D = 4, 16              # ner_type_num, inner_dim

    key = jax.random.PRNGKey(0)
    k1, k2, k3 = jax.random.split(key, 3)

    # Synthetic BERT last_hidden_state and deterministic dense params.
    hidden = jax.random.normal(k1, (B, S, H), dtype=jnp.float32)
    W = 0.02 * jax.random.normal(k2, (H, T * 2 * D), dtype=jnp.float32)
    bias = 0.02 * jax.random.normal(k3, (T * 2 * D,), dtype=jnp.float32)

    # attention_mask with some padding in the second example.
    attn_mask = jnp.array(
        [[1] * S, [1] * (S - 3) + [0] * 3], dtype=jnp.float32)

    logits = jax.block_until_ready(
        global_pointer_logits(hidden, attn_mask, W, bias, T, D))

    # Correctness check against a literal JAX port of the PyTorch forward.
    ref = jax.block_until_ready(
        reference_global_pointer(hidden, attn_mask, W, bias, T, D))
    # bf16 MXU inputs (f32 accumulation) -> slightly relaxed tolerance.
    np.testing.assert_allclose(np.asarray(logits), np.asarray(ref),
                               rtol=2e-2, atol=2e-2)

    print("KERNEL_OK")
</pallas_src>

<mosaic_0001>
module attributes {stable_mosaic.version = 11 : i64} {
  func.func @_gp_kernel(%arg0: i32, %arg1: i32, %arg2: memref<1x128x32xbf16, #tpu.memory_space<vmem>>, %arg3: memref<1x32x128xbf16, #tpu.memory_space<vmem>>, %arg4: memref<1x1x128xf32, #tpu.memory_space<vmem>>, %arg5: memref<1x128x1xf32, #tpu.memory_space<vmem>>, %arg6: memref<1x1x128xf32, #tpu.memory_space<vmem>>, %arg7: memref<8x8xf32, #tpu.memory_space<vmem>>, %arg8: memref<8x8xf32, #tpu.memory_space<vmem>>, %arg9: memref<128x8xf32, #tpu.memory_space<vmem>>, %arg10: memref<128x8xf32, #tpu.memory_space<vmem>>, %arg11: memref<1x4x8x128xf32, #tpu.memory_space<vmem>>, %arg12: memref<8x16xbf16, #tpu.memory_space<vmem>>, %arg13: memref<128x16xbf16, #tpu.memory_space<vmem>>) attributes {dimension_semantics = [#tpu.dimension_semantics<parallel>, #tpu.dimension_semantics<parallel>], iteration_bounds = array<i64: 1, 2>, scalar_prefetch = 0 : i64, scratch_operands = 2 : i64, tpu.core_type = #tpu.core_type<tc>, window_params = [{transform_indices = @transform_0, window_bounds = array<i64: 1, 128, 32>}, {transform_indices = @transform_1, window_bounds = array<i64: 1, 32, 128>}, {transform_indices = @transform_2, window_bounds = array<i64: 1, 1, 128>}, {transform_indices = @transform_3, window_bounds = array<i64: 1, 128, 1>}, {transform_indices = @transform_4, window_bounds = array<i64: 1, 1, 128>}, {pipeline_mode = #tpu.pipeline_mode<synchronous>, transform_indices = @transform_5, window_bounds = array<i64: 8, 8>}, {pipeline_mode = #tpu.pipeline_mode<synchronous>, transform_indices = @transform_6, window_bounds = array<i64: 8, 8>}, {pipeline_mode = #tpu.pipeline_mode<synchronous>, transform_indices = @transform_7, window_bounds = array<i64: 128, 8>}, {pipeline_mode = #tpu.pipeline_mode<synchronous>, transform_indices = @transform_8, window_bounds = array<i64: 128, 8>}, {transform_indices = @transform_9, window_bounds = array<i64: 1, 4, 8, 128>}]} {
    %c0 = arith.constant 0 : index
    %c0_0 = arith.constant 0 : index
    %c0_1 = arith.constant 0 : index
    %0 = vector.load %arg2[%c0, %c0_0, %c0_1] : memref<1x128x32xbf16, #tpu.memory_space<vmem>>, vector<1x128x32xbf16>
    %1 = vector.shape_cast %0 : vector<1x128x32xbf16> to vector<128x32xbf16>
    %c0_2 = arith.constant 0 : index
    %c0_3 = arith.constant 0 : index
    %c0_4 = arith.constant 0 : index
    %2 = vector.load %arg3[%c0_2, %c0_3, %c0_4] : memref<1x32x128xbf16, #tpu.memory_space<vmem>>, vector<1x32x128xbf16>
    %3 = vector.shape_cast %2 : vector<1x32x128xbf16> to vector<32x128xbf16>
    %c0_5 = arith.constant 0 : index
    %c0_6 = arith.constant 0 : index
    %c0_7 = arith.constant 0 : index
    %4 = vector.load %arg4[%c0_5, %c0_6, %c0_7] : memref<1x1x128xf32, #tpu.memory_space<vmem>>, vector<1x1x128xf32>
    %5 = vector.shape_cast %4 : vector<1x1x128xf32> to vector<1x128xf32>
    %cst = arith.constant dense<0.000000e+00> : vector<128x128xf32>
    %6 = tpu.matmul %1, %3, %cst {dimension_numbers = #tpu.dot_dimension_numbers<[1], [0], [0], [1], [0, 0, 1, 1], [], []>} : vector<128x32xbf16>, vector<32x128xbf16>, vector<128x128xf32> -> vector<128x128xf32>
    %7 = vector.broadcast %5 : vector<1x128xf32> to vector<128x128xf32>
    %8 = arith.addf %6, %7 : vector<128x128xf32>
    %c0_8 = arith.constant 0 : index
    %c0_9 = arith.constant 0 : index
    %c0_10 = arith.constant 0 : index
    %9 = vector.load %arg5[%c0_8, %c0_9, %c0_10] : memref<1x128x1xf32, #tpu.memory_space<vmem>>, vector<1x128x1xf32>
    %10 = vector.shape_cast %9 : vector<1x128x1xf32> to vector<128x1xf32>
    %c0_11 = arith.constant 0 : index
    %c0_12 = arith.constant 0 : index
    %c0_13 = arith.constant 0 : index
    %11 = vector.load %arg6[%c0_11, %c0_12, %c0_13] : memref<1x1x128xf32, #tpu.memory_space<vmem>>, vector<1x1x128xf32>
    %12 = vector.shape_cast %11 : vector<1x1x128xf32> to vector<1x128xf32>
    %c0_14 = arith.constant 0 : index
    %c0_15 = arith.constant 0 : index
    %13 = vector.load %arg7[%c0_14, %c0_15] : memref<8x8xf32, #tpu.memory_space<vmem>>, vector<8x8xf32>
    %c0_16 = arith.constant 0 : index
    %c0_17 = arith.constant 0 : index
    %14 = vector.load %arg8[%c0_16, %c0_17] : memref<8x8xf32, #tpu.memory_space<vmem>>, vector<8x8xf32>
    %c0_18 = arith.constant 0 : index
    %c0_19 = arith.constant 0 : index
    %15 = vector.load %arg9[%c0_18, %c0_19] : memref<128x8xf32, #tpu.memory_space<vmem>>, vector<128x8xf32>
    %16 = vector.broadcast %10 : vector<128x1xf32> to vector<128x8xf32>
    %17 = arith.mulf %15, %16 : vector<128x8xf32>
    %c0_20 = arith.constant 0 : index
    %c0_21 = arith.constant 0 : index
    %18 = vector.load %arg10[%c0_20, %c0_21] : memref<128x8xf32, #tpu.memory_space<vmem>>, vector<128x8xf32>
    %19 = vector.broadcast %10 : vector<128x1xf32> to vector<128x8xf32>
    %20 = arith.mulf %18, %19 : vector<128x8xf32>
    %21 = tpu.iota {dimensions = array<i32: 0>} : vector<8x128xi32>
    %22 = tpu.iota {dimensions = array<i32: 1>} : vector<8x128xi32>
    %23 = arith.cmpi sgt, %21, %22 : vector<8x128xi32>
    %24 = arith.extui %23 : vector<8x128xi1> to vector<8x128xi32>
    %25 = arith.sitofp %24 : vector<8x128xi32> to vector<8x128xf32>
    %cst_22 = arith.constant 1.000000e+00 : f32
    %26 = vector.broadcast %cst_22 : f32 to vector<1x128xf32>
    %27 = arith.subf %26, %12 : vector<1x128xf32>
    %28 = vector.broadcast %27 : vector<1x128xf32> to vector<8x128xf32>
    %29 = arith.addf %25, %28 : vector<8x128xf32>
    %cst_23 = arith.constant 2.500000e+11 : f32
    %30 = vector.broadcast %cst_23 : f32 to vector<8x128xf32>
    %31 = arith.mulf %29, %30 : vector<8x128xf32>
    %32 = vector.extract_strided_slice %8 {offsets = [0, 0], sizes = [8, 8], strides = [1, 1]} : vector<128x128xf32> to vector<8x8xf32>
    %33 = vector.extract_strided_slice %8 {offsets = [0, 8], sizes = [8, 8], strides = [1, 1]} : vector<128x128xf32> to vector<8x8xf32>
    %34 = vector.extract_strided_slice %8 {offsets = [0, 16], sizes = [128, 8], strides = [1, 1]} : vector<128x128xf32> to vector<128x8xf32>
    %35 = vector.extract_strided_slice %8 {offsets = [0, 24], sizes = [128, 8], strides = [1, 1]} : vector<128x128xf32> to vector<128x8xf32>
    %36 = arith.mulf %32, %13 : vector<8x8xf32>
    %37 = arith.mulf %33, %14 : vector<8x8xf32>
    %38 = arith.subf %36, %37 : vector<8x8xf32>
    %39 = arith.truncf %38 : vector<8x8xf32> to vector<8x8xbf16>
    %c0_24 = arith.constant 0 : index
    %c0_25 = arith.constant 0 : index
    %40 = vector.load %arg12[%c0_24, %c0_25] : memref<8x16xbf16, #tpu.memory_space<vmem>>, vector<8x8xbf16>
    tpu.vector_store %arg12[%c0_24, %c0_25], %39 {strides = array<i32>} : memref<8x16xbf16, #tpu.memory_space<vmem>>, vector<8x8xbf16>,
    %41 = arith.mulf %33, %13 : vector<8x8xf32>
    %42 = arith.mulf %32, %14 : vector<8x8xf32>
    %43 = arith.addf %41, %42 : vector<8x8xf32>
    %44 = arith.truncf %43 : vector<8x8xf32> to vector<8x8xbf16>
    %c0_26 = arith.constant 0 : index
    %c8 = arith.constant 8 : index
    %45 = vector.load %arg12[%c0_26, %c8] : memref<8x16xbf16, #tpu.memory_space<vmem>>, vector<8x8xbf16>
    tpu.vector_store %arg12[%c0_26, %c8], %44 {strides = array<i32>} : memref<8x16xbf16, #tpu.memory_space<vmem>>, vector<8x8xbf16>,
    %46 = arith.mulf %34, %17 : vector<128x8xf32>
    %47 = arith.mulf %35, %20 : vector<128x8xf32>
    %48 = arith.subf %46, %47 : vector<128x8xf32>
    %49 = arith.truncf %48 : vector<128x8xf32> to vector<128x8xbf16>
    %c0_27 = arith.constant 0 : index
    %c0_28 = arith.constant 0 : index
    %50 = vector.load %arg13[%c0_27, %c0_28] : memref<128x16xbf16, #tpu.memory_space<vmem>>, vector<128x8xbf16>
    tpu.vector_store %arg13[%c0_27, %c0_28], %49 {strides = array<i32>} : memref<128x16xbf16, #tpu.memory_space<vmem>>, vector<128x8xbf16>,
    %51 = arith.mulf %35, %17 : vector<128x8xf32>
    %52 = arith.mulf %34, %20 : vector<128x8xf32>
    %53 = arith.addf %51, %52 : vector<128x8xf32>
    %54 = arith.truncf %53 : vector<128x8xf32> to vector<128x8xbf16>
    %c0_29 = arith.constant 0 : index
    %c8_30 = arith.constant 8 : index
    %55 = vector.load %arg13[%c0_29, %c8_30] : memref<128x16xbf16, #tpu.memory_space<vmem>>, vector<128x8xbf16>
    tpu.vector_store %arg13[%c0_29, %c8_30], %54 {strides = array<i32>} : memref<128x16xbf16, #tpu.memory_space<vmem>>, vector<128x8xbf16>,
    %c0_31 = arith.constant 0 : index
    %c0_32 = arith.constant 0 : index
    %56 = vector.load %arg12[%c0_31, %c0_32] : memref<8x16xbf16, #tpu.memory_space<vmem>>, vector<8x16xbf16>
    %c0_33 = arith.constant 0 : index
    %c0_34 = arith.constant 0 : index
    %57 = vector.load %arg13[%c0_33, %c0_34] : memref<128x16xbf16, #tpu.memory_space<vmem>>, vector<128x16xbf16>
    %cst_35 = arith.constant dense<0.000000e+00> : vector<8x128xf32>
    %58 = tpu.matmul %56, %57, %cst_35 {dimension_numbers = #tpu.dot_dimension_numbers<[1], [1], [0], [0], [0, 0, 1, 0], [], []>} : vector<8x16xbf16>, vector<128x16xbf16>, vector<8x128xf32> -> vector<8x128xf32>
    %59 = arith.subf %58, %31 : vector<8x128xf32>
    %c0_36 = arith.constant 0 : index
    %c0_37 = arith.constant 0 : index
    %c0_38 = arith.constant 0 : index
    %c0_39 = arith.constant 0 : index
    %60 = vector.load %arg11[%c0_36, %c0_37, %c0_38, %c0_39] : memref<1x4x8x128xf32, #tpu.memory_space<vmem>>, vector<1x1x8x128xf32>
    %61 = vector.shape_cast %60 : vector<1x1x8x128xf32> to vector<8x128xf32>
    %62 = vector.shape_cast %59 : vector<8x128xf32> to vector<1x1x8x128xf32>
    tpu.vector_store %arg11[%c0_36, %c0_37, %c0_38, %c0_39], %62 {strides = array<i32>} : memref<1x4x8x128xf32, #tpu.memory_space<vmem>>, vector<1x1x8x128xf32>,
    %63 = vector.extract_strided_slice %8 {offsets = [0, 32], sizes = [8, 8], strides = [1, 1]} : vector<128x128xf32> to vector<8x8xf32>
    %64 = vector.extract_strided_slice %8 {offsets = [0, 40], sizes = [8, 8], strides = [1, 1]} : vector<128x128xf32> to vector<8x8xf32>
    %65 = vector.extract_strided_slice %8 {offsets = [0, 48], sizes = [128, 8], strides = [1, 1]} : vector<128x128xf32> to vector<128x8xf32>
    %66 = vector.extract_strided_slice %8 {offsets = [0, 56], sizes = [128, 8], strides = [1, 1]} : vector<128x128xf32> to vector<128x8xf32>
    %67 = arith.mulf %63, %13 : vector<8x8xf32>
    %68 = arith.mulf %64, %14 : vector<8x8xf32>
    %69 = arith.subf %67, %68 : vector<8x8xf32>
    %70 = arith.truncf %69 : vector<8x8xf32> to vector<8x8xbf16>
    %c0_40 = arith.constant 0 : index
    %c0_41 = arith.constant 0 : index
    %71 = vector.load %arg12[%c0_40, %c0_41] : memref<8x16xbf16, #tpu.memory_space<vmem>>, vector<8x8xbf16>
    tpu.vector_store %arg12[%c0_40, %c0_41], %70 {strides = array<i32>} : memref<8x16xbf16, #tpu.memory_space<vmem>>, vector<8x8xbf16>,
    %72 = arith.mulf %64, %13 : vector<8x8xf32>
    %73 = arith.mulf %63, %14 : vector<8x8xf32>
    %74 = arith.addf %72, %73 : vector<8x8xf32>
    %75 = arith.truncf %74 : vector<8x8xf32> to vector<8x8xbf16>
    %c0_42 = arith.constant 0 : index
    %c8_43 = arith.constant 8 : index
    %76 = vector.load %arg12[%c0_42, %c8_43] : memref<8x16xbf16, #tpu.memory_space<vmem>>, vector<8x8xbf16>
    tpu.vector_store %arg12[%c0_42, %c8_43], %75 {strides = array<i32>} : memref<8x16xbf16, #tpu.memory_space<vmem>>, vector<8x8xbf16>,
    %77 = arith.mulf %65, %17 : vector<128x8xf32>
    %78 = arith.mulf %66, %20 : vector<128x8xf32>
    %79 = arith.subf %77, %78 : vector<128x8xf32>
    %80 = arith.truncf %79 : vector<128x8xf32> to vector<128x8xbf16>
    %c0_44 = arith.constant 0 : index
    %c0_45 = arith.constant 0 : index
    %81 = vector.load %arg13[%c0_44, %c0_45] : memref<128x16xbf16, #tpu.memory_space<vmem>>, vector<128x8xbf16>
    tpu.vector_store %arg13[%c0_44, %c0_45], %80 {strides = array<i32>} : memref<128x16xbf16, #tpu.memory_space<vmem>>, vector<128x8xbf16>,
    %82 = arith.mulf %66, %17 : vector<128x8xf32>
    %83 = arith.mulf %65, %20 : vector<128x8xf32>
    %84 = arith.addf %82, %83 : vector<128x8xf32>
    %85 = arith.truncf %84 : vector<128x8xf32> to vector<128x8xbf16>
    %c0_46 = arith.constant 0 : index
    %c8_47 = arith.constant 8 : index
    %86 = vector.load %arg13[%c0_46, %c8_47] : memref<128x16xbf16, #tpu.memory_space<vmem>>, vector<128x8xbf16>
    tpu.vector_store %arg13[%c0_46, %c8_47], %85 {strides = array<i32>} : memref<128x16xbf16, #tpu.memory_space<vmem>>, vector<128x8xbf16>,
    %c0_48 = arith.constant 0 : index
    %c0_49 = arith.constant 0 : index
    %87 = vector.load %arg12[%c0_48, %c0_49] : memref<8x16xbf16, #tpu.memory_space<vmem>>, vector<8x16xbf16>
    %c0_50 = arith.constant 0 : index
    %c0_51 = arith.constant 0 : index
    %88 = vector.load %arg13[%c0_50, %c0_51] : memref<128x16xbf16, #tpu.memory_space<vmem>>, vector<128x16xbf16>
    %cst_52 = arith.constant dense<0.000000e+00> : vector<8x128xf32>
    %89 = tpu.matmul %87, %88, %cst_52 {dimension_numbers = #tpu.dot_dimension_numbers<[1], [1], [0], [0], [0, 0, 1, 0], [], []>} : vector<8x16xbf16>, vector<128x16xbf16>, vector<8x128xf32> -> vector<8x128xf32>
    %90 = arith.subf %89, %31 : vector<8x128xf32>
    %c0_53 = arith.constant 0 : index
    %c1 = arith.constant 1 : index
    %c0_54 = arith.constant 0 : index
    %c0_55 = arith.constant 0 : index
    %91 = vector.load %arg11[%c0_53, %c1, %c0_54, %c0_55] : memref<1x4x8x128xf32, #tpu.memory_space<vmem>>, vector<1x1x8x128xf32>
    %92 = vector.shape_cast %91 : vector<1x1x8x128xf32> to vector<8x128xf32>
    %93 = vector.shape_cast %90 : vector<8x128xf32> to vector<1x1x8x128xf32>
    tpu.vector_store %arg11[%c0_53, %c1, %c0_54, %c0_55], %93 {strides = array<i32>} : memref<1x4x8x128xf32, #tpu.memory_space<vmem>>, vector<1x1x8x128xf32>,
    %94 = vector.extract_strided_slice %8 {offsets = [0, 64], sizes = [8, 8], strides = [1, 1]} : vector<128x128xf32> to vector<8x8xf32>
    %95 = vector.extract_strided_slice %8 {offsets = [0, 72], sizes = [8, 8], strides = [1, 1]} : vector<128x128xf32> to vector<8x8xf32>
    %96 = vector.extract_strided_slice %8 {offsets = [0, 80], sizes = [128, 8], strides = [1, 1]} : vector<128x128xf32> to vector<128x8xf32>
    %97 = vector.extract_strided_slice %8 {offsets = [0, 88], sizes = [128, 8], strides = [1, 1]} : vector<128x128xf32> to vector<128x8xf32>
    %98 = arith.mulf %94, %13 : vector<8x8xf32>
    %99 = arith.mulf %95, %14 : vector<8x8xf32>
    %100 = arith.subf %98, %99 : vector<8x8xf32>
    %101 = arith.truncf %100 : vector<8x8xf32> to vector<8x8xbf16>
    %c0_56 = arith.constant 0 : index
    %c0_57 = arith.constant 0 : index
    %102 = vector.load %arg12[%c0_56, %c0_57] : memref<8x16xbf16, #tpu.memory_space<vmem>>, vector<8x8xbf16>
    tpu.vector_store %arg12[%c0_56, %c0_57], %101 {strides = array<i32>} : memref<8x16xbf16, #tpu.memory_space<vmem>>, vector<8x8xbf16>,
    %103 = arith.mulf %95, %13 : vector<8x8xf32>
    %104 = arith.mulf %94, %14 : vector<8x8xf32>
    %105 = arith.addf %103, %104 : vector<8x8xf32>
    %106 = arith.truncf %105 : vector<8x8xf32> to vector<8x8xbf16>
    %c0_58 = arith.constant 0 : index
    %c8_59 = arith.constant 8 : index
    %107 = vector.load %arg12[%c0_58, %c8_59] : memref<8x16xbf16, #tpu.memory_space<vmem>>, vector<8x8xbf16>
    tpu.vector_store %arg12[%c0_58, %c8_59], %106 {strides = array<i32>} : memref<8x16xbf16, #tpu.memory_space<vmem>>, vector<8x8xbf16>,
    %108 = arith.mulf %96, %17 : vector<128x8xf32>
    %109 = arith.mulf %97, %20 : vector<128x8xf32>
    %110 = arith.subf %108, %109 : vector<128x8xf32>
    %111 = arith.truncf %110 : vector<128x8xf32> to vector<128x8xbf16>
    %c0_60 = arith.constant 0 : index
    %c0_61 = arith.constant 0 : index
    %112 = vector.load %arg13[%c0_60, %c0_61] : memref<128x16xbf16, #tpu.memory_space<vmem>>, vector<128x8xbf16>
    tpu.vector_store %arg13[%c0_60, %c0_61], %111 {strides = array<i32>} : memref<128x16xbf16, #tpu.memory_space<vmem>>, vector<128x8xbf16>,
    %113 = arith.mulf %97, %17 : vector<128x8xf32>
    %114 = arith.mulf %96, %20 : vector<128x8xf32>
    %115 = arith.addf %113, %114 : vector<128x8xf32>
    %116 = arith.truncf %115 : vector<128x8xf32> to vector<128x8xbf16>
    %c0_62 = arith.constant 0 : index
    %c8_63 = arith.constant 8 : index
    %117 = vector.load %arg13[%c0_62, %c8_63] : memref<128x16xbf16, #tpu.memory_space<vmem>>, vector<128x8xbf16>
    tpu.vector_store %arg13[%c0_62, %c8_63], %116 {strides = array<i32>} : memref<128x16xbf16, #tpu.memory_space<vmem>>, vector<128x8xbf16>,
    %c0_64 = arith.constant 0 : index
    %c0_65 = arith.constant 0 : index
    %118 = vector.load %arg12[%c0_64, %c0_65] : memref<8x16xbf16, #tpu.memory_space<vmem>>, vector<8x16xbf16>
    %c0_66 = arith.constant 0 : index
    %c0_67 = arith.constant 0 : index
    %119 = vector.load %arg13[%c0_66, %c0_67] : memref<128x16xbf16, #tpu.memory_space<vmem>>, vector<128x16xbf16>
    %cst_68 = arith.constant dense<0.000000e+00> : vector<8x128xf32>
    %120 = tpu.matmul %118, %119, %cst_68 {dimension_numbers = #tpu.dot_dimension_numbers<[1], [1], [0], [0], [0, 0, 1, 0], [], []>} : vector<8x16xbf16>, vector<128x16xbf16>, vector<8x128xf32> -> vector<8x128xf32>
    %121 = arith.subf %120, %31 : vector<8x128xf32>
    %c0_69 = arith.constant 0 : index
    %c2 = arith.constant 2 : index
    %c0_70 = arith.constant 0 : index
    %c0_71 = arith.constant 0 : index
    %122 = vector.load %arg11[%c0_69, %c2, %c0_70, %c0_71] : memref<1x4x8x128xf32, #tpu.memory_space<vmem>>, vector<1x1x8x128xf32>
    %123 = vector.shape_cast %122 : vector<1x1x8x128xf32> to vector<8x128xf32>
    %124 = vector.shape_cast %121 : vector<8x128xf32> to vector<1x1x8x128xf32>
    tpu.vector_store %arg11[%c0_69, %c2, %c0_70, %c0_71], %124 {strides = array<i32>} : memref<1x4x8x128xf32, #tpu.memory_space<vmem>>, vector<1x1x8x128xf32>,
    %125 = vector.extract_strided_slice %8 {offsets = [0, 96], sizes = [8, 8], strides = [1, 1]} : vector<128x128xf32> to vector<8x8xf32>
    %126 = vector.extract_strided_slice %8 {offsets = [0, 104], sizes = [8, 8], strides = [1, 1]} : vector<128x128xf32> to vector<8x8xf32>
    %127 = vector.extract_strided_slice %8 {offsets = [0, 112], sizes = [128, 8], strides = [1, 1]} : vector<128x128xf32> to vector<128x8xf32>
    %128 = vector.extract_strided_slice %8 {offsets = [0, 120], sizes = [128, 8], strides = [1, 1]} : vector<128x128xf32> to vector<128x8xf32>
    %129 = arith.mulf %125, %13 : vector<8x8xf32>
    %130 = arith.mulf %126, %14 : vector<8x8xf32>
    %131 = arith.subf %129, %130 : vector<8x8xf32>
    %132 = arith.truncf %131 : vector<8x8xf32> to vector<8x8xbf16>
    %c0_72 = arith.constant 0 : index
    %c0_73 = arith.constant 0 : index
    %133 = vector.load %arg12[%c0_72, %c0_73] : memref<8x16xbf16, #tpu.memory_space<vmem>>, vector<8x8xbf16>
    tpu.vector_store %arg12[%c0_72, %c0_73], %132 {strides = array<i32>} : memref<8x16xbf16, #tpu.memory_space<vmem>>, vector<8x8xbf16>,
    %134 = arith.mulf %126, %13 : vector<8x8xf32>
    %135 = arith.mulf %125, %14 : vector<8x8xf32>
    %136 = arith.addf %134, %135 : vector<8x8xf32>
    %137 = arith.truncf %136 : vector<8x8xf32> to vector<8x8xbf16>
    %c0_74 = arith.constant 0 : index
    %c8_75 = arith.constant 8 : index
    %138 = vector.load %arg12[%c0_74, %c8_75] : memref<8x16xbf16, #tpu.memory_space<vmem>>, vector<8x8xbf16>
    tpu.vector_store %arg12[%c0_74, %c8_75], %137 {strides = array<i32>} : memref<8x16xbf16, #tpu.memory_space<vmem>>, vector<8x8xbf16>,
    %139 = arith.mulf %127, %17 : vector<128x8xf32>
    %140 = arith.mulf %128, %20 : vector<128x8xf32>
    %141 = arith.subf %139, %140 : vector<128x8xf32>
    %142 = arith.truncf %141 : vector<128x8xf32> to vector<128x8xbf16>
    %c0_76 = arith.constant 0 : index
    %c0_77 = arith.constant 0 : index
    %143 = vector.load %arg13[%c0_76, %c0_77] : memref<128x16xbf16, #tpu.memory_space<vmem>>, vector<128x8xbf16>
    tpu.vector_store %arg13[%c0_76, %c0_77], %142 {strides = array<i32>} : memref<128x16xbf16, #tpu.memory_space<vmem>>, vector<128x8xbf16>,
    %144 = arith.mulf %128, %17 : vector<128x8xf32>
    %145 = arith.mulf %127, %20 : vector<128x8xf32>
    %146 = arith.addf %144, %145 : vector<128x8xf32>
    %147 = arith.truncf %146 : vector<128x8xf32> to vector<128x8xbf16>
    %c0_78 = arith.constant 0 : index
    %c8_79 = arith.constant 8 : index
    %148 = vector.load %arg13[%c0_78, %c8_79] : memref<128x16xbf16, #tpu.memory_space<vmem>>, vector<128x8xbf16>
    tpu.vector_store %arg13[%c0_78, %c8_79], %147 {strides = array<i32>} : memref<128x16xbf16, #tpu.memory_space<vmem>>, vector<128x8xbf16>,
    %c0_80 = arith.constant 0 : index
    %c0_81 = arith.constant 0 : index
    %149 = vector.load %arg12[%c0_80, %c0_81] : memref<8x16xbf16, #tpu.memory_space<vmem>>, vector<8x16xbf16>
    %c0_82 = arith.constant 0 : index
    %c0_83 = arith.constant 0 : index
    %150 = vector.load %arg13[%c0_82, %c0_83] : memref<128x16xbf16, #tpu.memory_space<vmem>>, vector<128x16xbf16>
    %cst_84 = arith.constant dense<0.000000e+00> : vector<8x128xf32>
    %151 = tpu.matmul %149, %150, %cst_84 {dimension_numbers = #tpu.dot_dimension_numbers<[1], [1], [0], [0], [0, 0, 1, 0], [], []>} : vector<8x16xbf16>, vector<128x16xbf16>, vector<8x128xf32> -> vector<8x128xf32>
    %152 = arith.subf %151, %31 : vector<8x128xf32>
    %c0_85 = arith.constant 0 : index
    %c3 = arith.constant 3 : index
    %c0_86 = arith.constant 0 : index
    %c0_87 = arith.constant 0 : index
    %153 = vector.load %arg11[%c0_85, %c3, %c0_86, %c0_87] : memref<1x4x8x128xf32, #tpu.memory_space<vmem>>, vector<1x1x8x128xf32>
    %154 = vector.shape_cast %153 : vector<1x1x8x128xf32> to vector<8x128xf32>
    %155 = vector.shape_cast %152 : vector<8x128xf32> to vector<1x1x8x128xf32>
    tpu.vector_store %arg11[%c0_85, %c3, %c0_86, %c0_87], %155 {strides = array<i32>} : memref<1x4x8x128xf32, #tpu.memory_space<vmem>>, vector<1x1x8x128xf32>,
    return
  }
  func.func @transform_0(%arg0: i32, %arg1: i32) -> (i32, i32, i32) {
    %c0_i32 = arith.constant 0 : i32
    %c0_i32_0 = arith.constant 0 : i32
    %c0_i32_1 = arith.constant 0 : i32
    return %arg1, %c0_i32, %c0_i32_0 : i32, i32, i32
  }
  func.func @transform_1(%arg0: i32, %arg1: i32) -> (i32, i32, i32) {
    %c0_i32 = arith.constant 0 : i32
    %c0_i32_0 = arith.constant 0 : i32
    %c0_i32_1 = arith.constant 0 : i32
    return %arg0, %c0_i32, %c0_i32_0 : i32, i32, i32
  }
  func.func @transform_2(%arg0: i32, %arg1: i32) -> (i32, i32, i32) {
    %c0_i32 = arith.constant 0 : i32
    %c0_i32_0 = arith.constant 0 : i32
    %c0_i32_1 = arith.constant 0 : i32
    return %arg0, %c0_i32, %c0_i32_0 : i32, i32, i32
  }
  func.func @transform_3(%arg0: i32, %arg1: i32) -> (i32, i32, i32) {
    %c0_i32 = arith.constant 0 : i32
    %c0_i32_0 = arith.constant 0 : i32
    %c0_i32_1 = arith.constant 0 : i32
    return %arg1, %c0_i32, %c0_i32_0 : i32, i32, i32
  }
  func.func @transform_4(%arg0: i32, %arg1: i32) -> (i32, i32, i32) {
    %c0_i32 = arith.constant 0 : i32
    %c0_i32_0 = arith.constant 0 : i32
    %c0_i32_1 = arith.constant 0 : i32
    return %arg1, %c0_i32, %c0_i32_0 : i32, i32, i32
  }
  func.func @transform_5(%arg0: i32, %arg1: i32) -> (i32, i32) {
    %c0_i32 = arith.constant 0 : i32
    %c0_i32_0 = arith.constant 0 : i32
    %c0_i32_1 = arith.constant 0 : i32
    return %c0_i32, %c0_i32_0 : i32, i32
  }
  func.func @transform_6(%arg0: i32, %arg1: i32) -> (i32, i32) {
    %c0_i32 = arith.constant 0 : i32
    %c0_i32_0 = arith.constant 0 : i32
    %c0_i32_1 = arith.constant 0 : i32
    return %c0_i32, %c0_i32_0 : i32, i32
  }
  func.func @transform_7(%arg0: i32, %arg1: i32) -> (i32, i32) {
    %c0_i32 = arith.constant 0 : i32
    %c0_i32_0 = arith.constant 0 : i32
    %c0_i32_1 = arith.constant 0 : i32
    return %c0_i32, %c0_i32_0 : i32, i32
  }
  func.func @transform_8(%arg0: i32, %arg1: i32) -> (i32, i32) {
    %c0_i32 = arith.constant 0 : i32
    %c0_i32_0 = arith.constant 0 : i32
    %c0_i32_1 = arith.constant 0 : i32
    return %c0_i32, %c0_i32_0 : i32, i32
  }
  func.func @transform_9(%arg0: i32, %arg1: i32) -> (i32, i32, i32, i32) {
    %c0_i32 = arith.constant 0 : i32
    %c0_i32_0 = arith.constant 0 : i32
    %c0_i32_1 = arith.constant 0 : i32
    return %arg1, %arg0, %c0_i32, %c0_i32_0 : i32, i32, i32, i32
  }
}

</mosaic_0001>

<llo_original>
// kernel: tpu_custom_call.1
$region0: #{tpu_custom_call.1}
  #allocation0 [shape = 'u32[]', space=smem, size = 0x4, offset = 0x4, fixed_abs, tag = 'smem constant byte address 0x4 - core index']
  #allocation1 [shape = 'u32[144,128]{1,0:T(1,128)}', space=vmem, size = 0x12000, scoped, tag = 'internal scratch']
  #allocation2 [shape = 'bf16[8,16]{1,0:T(8,128)(2,1)}', space=vmem, size = 0x800, scoped, tag = 'scratch operand']
  #allocation3 [shape = 'bf16[128,16]{1,0:T(8,128)(2,1)}', space=vmem, size = 0x8000, scoped, tag = 'scratch operand']
  %s0 = inlined_call_operand.vmem [shape: bf16[2,128,32], index: 0, kind: input, shape index: {}]
  %s1 = inlined_call_operand.vmem [shape: bf16[1,32,128], index: 1, kind: input, shape index: {}]
  %s2 = inlined_call_operand.vmem [shape: f32[1,1,128], index: 2, kind: input, shape index: {}]
  %s3 = inlined_call_operand.vmem [shape: f32[2,128,1], index: 3, kind: input, shape index: {}]
  %s4 = inlined_call_operand.vmem [shape: f32[2,1,128], index: 4, kind: input, shape index: {}]
  %s5 = inlined_call_operand.vmem [shape: f32[8,8], index: 5, kind: input, shape index: {}]
  %s6 = inlined_call_operand.vmem [shape: f32[8,8], index: 6, kind: input, shape index: {}]
  %s7 = inlined_call_operand.vmem [shape: f32[128,8], index: 7, kind: input, shape index: {}]
  %s8 = inlined_call_operand.vmem [shape: f32[128,8], index: 8, kind: input, shape index: {}]
  %s9 = inlined_call_operand.hbm [shape: f32[2,4,8,128], index: 9, kind: output, shape index: {}]
  %s10 = sld [smem:[#allocation0]]
  $region69: #{tpu_custom_call.1} parent=0
    _
  %s12 = ssub.s32 1, %s10
  %s13 = scalar_select 0, %s12, %s10
  $region1: #{tpu_custom_call.1} parent=0
    #allocation4 [shape = 'u8[32768]{0}', space=vmem, size = 0x8000, scoped, tag = 'output window, operand 0']
    #allocation5 [shape = 's32[2]{0}', space=sflag, size = 0x8, scoped, tag = 'scoped memory for tpu_custom_call.1']
    %14 = vsyncpa [#allocation5], 0
    %s15 = scalar_lea.sflag [#allocation5], 1
    %16 = vsyncpa %s15, 0
    loop: start=0, step=1, limit=4
    $region2: #{tpu_custom_call.1} parent=1 // loop_pre_header
      _
    $region3: #{tpu_custom_call.1} parent=1 // loop_header
      %s18 = sphi 0, %s22
      %p19 = scmp.ge.s32.totalorder %s18, 4
      %s25 = sphi 0, %s37
      %s26 = sphi 0, %s33
      %s27 = sphi 0, %s25
      %s28 = sphi 0, %s26
      %s29 = sphi 0, %s27
      %s30 = sphi 0, %s28
      %s40 = sphi 0, %s42
      %s43 = sphi 0, %s40
      %s44 = sphi 0, %s43
      %s60 = sphi 0, %s44
      %s66 = sphi 0, %s68
      %s69 = sphi 0, %s66
      %s70 = sphi 0, %s69
      %s86 = sphi 0, %s70
      %s92 = sphi 0, %s94
      %s95 = sphi 0, %s92
      %s96 = sphi 0, %s95
      %s112 = sphi 0, %s96
      %s118 = sphi 0, %s120
      %s121 = sphi 0, %s118
      %s122 = sphi 0, %s121
      %s138 = sphi 0, %s122
      %s144 = sphi 0, %s146
      %s147 = sphi 0, %s144
      %s148 = sphi 0, %s147
      %s164 = sphi 0, %s148
      %s168 = sphi 0, %s168
      %s170 = sphi 0, %s168
      %s171 = sphi 0, %s170
      %s185 = sphi 0, %s171
      %s189 = sphi 0, %s189
      %s191 = sphi 0, %s189
      %s192 = sphi 0, %s191
      %s206 = sphi 0, %s192
      %s210 = sphi 0, %s210
      %s212 = sphi 0, %s210
      %s213 = sphi 0, %s212
      %s227 = sphi 0, %s213
      %s231 = sphi 0, %s231
      %s233 = sphi 0, %s231
      %s234 = sphi 0, %s233
      %s248 = sphi 0, %s234
      %s256 = sphi 0, %s258
      %s259 = sphi 0, %s256
      %s260 = sphi 0, %s259
      %s276 = sphi 0, %s260
    $region4: #{tpu_custom_call.1} parent=1 // loop_header_branch
      %21 = sbr.rel (%p19) target = $region8
    $region5: #{tpu_custom_call.1} parent=1 // loop_body
      %s23 = ssub.s32 %s18, 1
      %s24 = ssub.s32 %s18, 2
      %s31 = sadd.s32 1, %s26
      %p32 = scmp.ge.s32.totalorder %s31, 2
      %s33 = scalar_select %p32, 0, %s31
      %s34 = sadd.s32 1, %s25
      %s35 = scalar_select %p32, %s34, %s25
      %p36 = scmp.ge.s32.totalorder %s35, 1
      %s37 = scalar_select %p36, 0, %s35
      %s38 = ssub.s32 %s26, %s33
      %p39 = scmp.eq.s32.totalorder %s38, 0
      %s41 = sadd.s32 %s40, 1
      %s42 = scalar_select %p39, %s40, %s41
      %p45 = pneg %p39
      %p46 = scmp.eq.s32.totalorder %s18, 1
      %p47 = por %p45, %p46
      %p48 = scmp.ne.s32.totalorder %s40, %s43
      %p49 = scmp.eq.s32.totalorder %s18, 0
      %p50 = por %p48, %p49
      %p51 = scmp.ne.s32.totalorder %s40, %s43
      %p52 = scmp.eq.s32.totalorder %s23, 1
      %p53 = por %p51, %p52
      %p54 = scmp.ne.s32.totalorder %s43, %s44
      %p55 = scmp.eq.s32.totalorder %s23, 0
      %p56 = por %p54, %p55
      %p57 = scmp.ne.s32.totalorder %s43, %s44
      %p58 = scmp.eq.s32.totalorder %s24, 1
      %p59 = por %p57, %p58
      %p61 = scmp.ne.s32.totalorder %s44, %s60
      %p62 = scmp.eq.s32.totalorder %s24, 0
      %p63 = por %p61, %p62
      %s64 = ssub.s32 %s25, %s37
      %p65 = scmp.eq.s32.totalorder %s64, 0
      %s67 = sadd.s32 %s66, 1
      %s68 = scalar_select %p65, %s66, %s67
      %p71 = pneg %p65
      %p72 = scmp.eq.s32.totalorder %s18, 1
      %p73 = por %p71, %p72
      %p74 = scmp.ne.s32.totalorder %s66, %s69
      %p75 = scmp.eq.s32.totalorder %s18, 0
      %p76 = por %p74, %p75
      %p77 = scmp.ne.s32.totalorder %s66, %s69
      %p78 = scmp.eq.s32.totalorder %s23, 1
      %p79 = por %p77, %p78
      %p80 = scmp.ne.s32.totalorder %s69, %s70
      %p81 = scmp.eq.s32.totalorder %s23, 0
      %p82 = por %p80, %p81
      %p83 = scmp.ne.s32.totalorder %s69, %s70
      %p84 = scmp.eq.s32.totalorder %s24, 1
      %p85 = por %p83, %p84
      %p87 = scmp.ne.s32.totalorder %s70, %s86
      %p88 = scmp.eq.s32.totalorder %s24, 0
      %p89 = por %p87, %p88
      %s90 = ssub.s32 %s25, %s37
      %p91 = scmp.eq.s32.totalorder %s90, 0
      %s93 = sadd.s32 %s92, 1
      %s94 = scalar_select %p91, %s92, %s93
      %p97 = pneg %p91
      %p98 = scmp.eq.s32.totalorder %s18, 1
      %p99 = por %p97, %p98
      %p100 = scmp.ne.s32.totalorder %s92, %s95
      %p101 = scmp.eq.s32.totalorder %s18, 0
      %p102 = por %p100, %p101
      %p103 = scmp.ne.s32.totalorder %s92, %s95
      %p104 = scmp.eq.s32.totalorder %s23, 1
      %p105 = por %p103, %p104
      %p106 = scmp.ne.s32.totalorder %s95, %s96
      %p107 = scmp.eq.s32.totalorder %s23, 0
      %p108 = por %p106, %p107
      %p109 = scmp.ne.s32.totalorder %s95, %s96
      %p110 = scmp.eq.s32.totalorder %s24, 1
      %p111 = por %p109, %p110
      %p113 = scmp.ne.s32.totalorder %s96, %s112
      %p114 = scmp.eq.s32.totalorder %s24, 0
      %p115 = por %p113, %p114
      %s116 = ssub.s32 %s26, %s33
      %p117 = scmp.eq.s32.totalorder %s116, 0
      %s119 = sadd.s32 %s118, 1
      %s120 = scalar_select %p117, %s118, %s119
      %p123 = pneg %p117
      %p124 = scmp.eq.s32.totalorder %s18, 1
      %p125 = por %p123, %p124
      %p126 = scmp.ne.s32.totalorder %s118, %s121
      %p127 = scmp.eq.s32.totalorder %s18, 0
      %p128 = por %p126, %p127
      %p129 = scmp.ne.s32.totalorder %s118, %s121
      %p130 = scmp.eq.s32.totalorder %s23, 1
      %p131 = por %p129, %p130
      %p132 = scmp.ne.s32.totalorder %s121, %s122
      %p133 = scmp.eq.s32.totalorder %s23, 0
      %p134 = por %p132, %p133
      %p135 = scmp.ne.s32.totalorder %s121, %s122
      %p136 = scmp.eq.s32.totalorder %s24, 1
      %p137 = por %p135, %p136
      %p139 = scmp.ne.s32.totalorder %s122, %s138
      %p140 = scmp.eq.s32.totalorder %s24, 0
      %p141 = por %p139, %p140
      %s142 = ssub.s32 %s26, %s33
      %p143 = scmp.eq.s32.totalorder %s142, 0
      %s145 = sadd.s32 %s144, 1
      %s146 = scalar_select %p143, %s144, %s145
      %p149 = pneg %p143
      %p150 = scmp.eq.s32.totalorder %s18, 1
      %p151 = por %p149, %p150
      %p152 = scmp.ne.s32.totalorder %s144, %s147
      %p153 = scmp.eq.s32.totalorder %s18, 0
      %p154 = por %p152, %p153
      %p155 = scmp.ne.s32.totalorder %s144, %s147
      %p156 = scmp.eq.s32.totalorder %s23, 1
      %p157 = por %p155, %p156
      %p158 = scmp.ne.s32.totalorder %s147, %s148
      %p159 = scmp.eq.s32.totalorder %s23, 0
      %p160 = por %p158, %p159
      %p161 = scmp.ne.s32.totalorder %s147, %s148
      %p162 = scmp.eq.s32.totalorder %s24, 1
      %p163 = por %p161, %p162
      %p165 = scmp.ne.s32.totalorder %s148, %s164
      %p166 = scmp.eq.s32.totalorder %s24, 0
      %p167 = por %p165, %p166
      %s169 = sadd.s32 %s168, 1
      %p172 = scmp.eq.s32.totalorder %s18, 1
      %p173 = scmp.ne.s32.totalorder %s168, %s170
      %p174 = scmp.eq.s32.totalorder %s18, 0
      %p175 = por %p173, %p174
      %p176 = scmp.ne.s32.totalorder %s168, %s170
      %p177 = scmp.eq.s32.totalorder %s23, 1
      %p178 = por %p176, %p177
      %p179 = scmp.ne.s32.totalorder %s170, %s171
      %p180 = scmp.eq.s32.totalorder %s23, 0
      %p181 = por %p179, %p180
      %p182 = scmp.ne.s32.totalorder %s170, %s171
      %p183 = scmp.eq.s32.totalorder %s24, 1
      %p184 = por %p182, %p183
      %p186 = scmp.ne.s32.totalorder %s171, %s185
      %p187 = scmp.eq.s32.totalorder %s24, 0
      %p188 = por %p186, %p187
      %s190 = sadd.s32 %s189, 1
      %p193 = scmp.eq.s32.totalorder %s18, 1
      %p194 = scmp.ne.s32.totalorder %s189, %s191
      %p195 = scmp.eq.s32.totalorder %s18, 0
      %p196 = por %p194, %p195
      %p197 = scmp.ne.s32.totalorder %s189, %s191
      %p198 = scmp.eq.s32.totalorder %s23, 1
      %p199 = por %p197, %p198
      %p200 = scmp.ne.s32.totalorder %s191, %s192
      %p201 = scmp.eq.s32.totalorder %s23, 0
      %p202 = por %p200, %p201
      %p203 = scmp.ne.s32.totalorder %s191, %s192
      %p204 = scmp.eq.s32.totalorder %s24, 1
      %p205 = por %p203, %p204
      %p207 = scmp.ne.s32.totalorder %s192, %s206
      %p208 = scmp.eq.s32.totalorder %s24, 0
      %p209 = por %p207, %p208
      %s211 = sadd.s32 %s210, 1
      %p214 = scmp.eq.s32.totalorder %s18, 1
      %p215 = scmp.ne.s32.totalorder %s210, %s212
      %p216 = scmp.eq.s32.totalorder %s18, 0
      %p217 = por %p215, %p216
      %p218 = scmp.ne.s32.totalorder %s210, %s212
      %p219 = scmp.eq.s32.totalorder %s23, 1
      %p220 = por %p218, %p219
      %p221 = scmp.ne.s32.totalorder %s212, %s213
      %p222 = scmp.eq.s32.totalorder %s23, 0
      %p223 = por %p221, %p222
      %p224 = scmp.ne.s32.totalorder %s212, %s213
      %p225 = scmp.eq.s32.totalorder %s24, 1
      %p226 = por %p224, %p225
      %p228 = scmp.ne.s32.totalorder %s213, %s227
      %p229 = scmp.eq.s32.totalorder %s24, 0
      %p230 = por %p228, %p229
      %s232 = sadd.s32 %s231, 1
      %p235 = scmp.eq.s32.totalorder %s18, 1
      %p236 = scmp.ne.s32.totalorder %s231, %s233
      %p237 = scmp.eq.s32.totalorder %s18, 0
      %p238 = por %p236, %p237
      %p239 = scmp.ne.s32.totalorder %s231, %s233
      %p240 = scmp.eq.s32.totalorder %s23, 1
      %p241 = por %p239, %p240
      %p242 = scmp.ne.s32.totalorder %s233, %s234
      %p243 = scmp.eq.s32.totalorder %s23, 0
      %p244 = por %p242, %p243
      %p245 = scmp.ne.s32.totalorder %s233, %s234
      %p246 = scmp.eq.s32.totalorder %s24, 1
      %p247 = por %p245, %p246
      %p249 = scmp.ne.s32.totalorder %s234, %s248
      %p250 = scmp.eq.s32.totalorder %s24, 0
      %p251 = por %p249, %p250
      %s252 = ssub.s32 %s26, %s33
      %s253 = ssub.s32 %s25, %s37
      %s254 = sor.u32 %s252, %s253
      %p255 = scmp.eq.s32.totalorder %s254, 0
      %s257 = sadd.s32 %s256, 1
      %s258 = scalar_select %p255, %s256, %s257
      %p261 = pneg %p255
      %p262 = scmp.eq.s32.totalorder %s18, 1
      %p263 = por %p261, %p262
      %p264 = scmp.ne.s32.totalorder %s256, %s259
      %p265 = scmp.eq.s32.totalorder %s18, 0
      %p266 = por %p264, %p265
      %p267 = scmp.ne.s32.totalorder %s256, %s259
      %p268 = scmp.eq.s32.totalorder %s23, 1
      %p269 = por %p267, %p268
      %p270 = scmp.ne.s32.totalorder %s259, %s260
      %p271 = scmp.eq.s32.totalorder %s23, 0
      %p272 = por %p270, %p271
      %p273 = scmp.ne.s32.totalorder %s259, %s260
      %p274 = scmp.eq.s32.totalorder %s24, 1
      %p275 = por %p273, %p274
      %p277 = scmp.ne.s32.totalorder %s260, %s276
      %p278 = scmp.eq.s32.totalorder %s24, 0
      %p279 = por %p277, %p278
      %p280 = scmp.le.s32.totalorder 1, %s18
      %p281 = scmp.lt.s32.totalorder %s18, 3
      %p282 = pnand %p280, %p281
      %p283 = pneg %p282
      // Predicated region
      $region9: #{tpu_custom_call.1} parent=5 // pred_check
        _
      $region10: #{tpu_custom_call.1} parent=5 // pred_check_branch
        %285 = sbr.rel (%p282) target = $region12
      $region11: #{tpu_custom_call.1} parent=5 // pred_region
        %s286 = ssub.s32 %s18, 1
        // Predicated region
        $region13: #{tpu_custom_call.1} parent=11 // pred_check
          %p287 = pneg %p82
        $region14: #{tpu_custom_call.1} parent=11 // pred_check_branch
          %289 = sbr.rel (%p287) target = $region16
        $region15: #{tpu_custom_call.1} parent=11 // pred_region
          %p290 = scmp.lt.s32.totalorder %s27, 0
          %s291 = scalar_select %p290, %s27, 0
          %s292 = smul.addr %s291, 4
          %s293 = smul.addr %s292, 4
          %s294 = scalar_lea.vmem %s1, %s293
        $region16: #{tpu_custom_call.1} parent=11 // pred_fallthru
          _
        // Predicated region
        $region17: #{tpu_custom_call.1} parent=11 // pred_check
          %p295 = pneg %p108
        $region18: #{tpu_custom_call.1} parent=11 // pred_check_branch
          %297 = sbr.rel (%p295) target = $region20
        $region19: #{tpu_custom_call.1} parent=11 // pred_region
          %p298 = scmp.lt.s32.totalorder %s27, 0
          %s299 = scalar_select %p298, %s27, 0
          %s300 = scalar_lea.vmem %s2, %s299
        $region20: #{tpu_custom_call.1} parent=11 // pred_fallthru
          _
        // Predicated region
        $region21: #{tpu_custom_call.1} parent=11 // pred_check
          %p301 = pneg %p181
        $region22: #{tpu_custom_call.1} parent=11 // pred_check_branch
          %303 = sbr.rel (%p301) target = $region24
        $region23: #{tpu_custom_call.1} parent=11 // pred_region
          _
        $region24: #{tpu_custom_call.1} parent=11 // pred_fallthru
          _
        // Predicated region
        $region25: #{tpu_custom_call.1} parent=11 // pred_check
          %p304 = pneg %p202
        $region26: #{tpu_custom_call.1} parent=11 // pred_check_branch
          %306 = sbr.rel (%p304) target = $region28
        $region27: #{tpu_custom_call.1} parent=11 // pred_region
          _
        $region28: #{tpu_custom_call.1} parent=11 // pred_fallthru
          _
        // Predicated region
        $region29: #{tpu_custom_call.1} parent=11 // pred_check
          %p307 = pneg %p223
        $region30: #{tpu_custom_call.1} parent=11 // pred_check_branch
          %309 = sbr.rel (%p307) target = $region32
        $region31: #{tpu_custom_call.1} parent=11 // pred_region
          _
        $region32: #{tpu_custom_call.1} parent=11 // pred_fallthru
          _
        // Predicated region
        $region33: #{tpu_custom_call.1} parent=11 // pred_check
          %p310 = pneg %p244
        $region34: #{tpu_custom_call.1} parent=11 // pred_check_branch
          %312 = sbr.rel (%p310) target = $region36
        $region35: #{tpu_custom_call.1} parent=11 // pred_region
          _
        $region36: #{tpu_custom_call.1} parent=11 // pred_fallthru
          _
      $region12: #{tpu_custom_call.1} parent=5 // pred_fallthru
        _
      %p313 = scmp.lt.s32.totalorder %s18, 2
      // Predicated region
      $region37: #{tpu_custom_call.1} parent=5 // pred_check
        %p314 = pneg %p313
      $region38: #{tpu_custom_call.1} parent=5 // pred_check_branch
        %316 = sbr.rel (%p314) target = $region40
      $region39: #{tpu_custom_call.1} parent=5 // pred_region
        // Predicated region
        $region41: #{tpu_custom_call.1} parent=39 // pred_check
          %p317 = pneg %p50
        $region42: #{tpu_custom_call.1} parent=39 // pred_check_branch
          %319 = sbr.rel (%p317) target = $region44
        $region43: #{tpu_custom_call.1} parent=39 // pred_region
          %p320 = scmp.lt.s32.totalorder %s26, 1
          %s321 = scalar_select %p320, %s26, 1
          %s322 = smul.addr %s321, 16
          %s323 = smul.addr %s322, 4
          %s324 = scalar_lea.vmem %s0, %s323
        $region44: #{tpu_custom_call.1} parent=39 // pred_fallthru
          _
        // Predicated region
        $region45: #{tpu_custom_call.1} parent=39 // pred_check
          %p325 = pneg %p128
        $region46: #{tpu_custom_call.1} parent=39 // pred_check_branch
          %327 = sbr.rel (%p325) target = $region48
        $region47: #{tpu_custom_call.1} parent=39 // pred_region
          %p328 = scmp.lt.s32.totalorder %s26, 1
          %s329 = scalar_select %p328, %s26, 1
          %s330 = smul.addr %s329, 16
          %s331 = smul.addr %s330, 8
          %s332 = scalar_lea.vmem %s3, %s331
        $region48: #{tpu_custom_call.1} parent=39 // pred_fallthru
          _
        // Predicated region
        $region49: #{tpu_custom_call.1} parent=39 // pred_check
          %p333 = pneg %p154
        $region50: #{tpu_custom_call.1} parent=39 // pred_check_branch
          %335 = sbr.rel (%p333) target = $region52
        $region51: #{tpu_custom_call.1} parent=39 // pred_region
          %p336 = scmp.lt.s32.totalorder %s26, 1
          %s337 = scalar_select %p336, %s26, 1
          %s338 = scalar_lea.vmem %s4, %s337
        $region52: #{tpu_custom_call.1} parent=39 // pred_fallthru
          _
      $region40: #{tpu_custom_call.1} parent=5 // pred_fallthru
        _
      %p339 = scmp.le.s32.totalorder 1, %s18
      %p340 = scmp.lt.s32.totalorder %s18, 3
      %p341 = pnand %p339, %p340
      %p342 = pneg %p341
      // Predicated region
      $region53: #{tpu_custom_call.1} parent=5 // pred_check
        _
      $region54: #{tpu_custom_call.1} parent=5 // pred_check_branch
        %344 = sbr.rel (%p341) target = $region56
      $region55: #{tpu_custom_call.1} parent=5 // pred_region
        %s345 = ssub.s32 %s18, 1
        %p346 = scmp.lt.s32.totalorder %s28, 1
        %s347 = scalar_select %p346, %s28, 1
        %s348 = smul.addr %s347, 16
        %s349 = smul.addr %s348, 4
        %s350 = scalar_lea.vmem %s0, %s349
        %p351 = pneg %p56
        %p352 = pneg %p53
        %p353 = scmp.lt.s32.totalorder %s27, 0
        %s354 = scalar_select %p353, %s27, 0
        %s355 = smul.addr %s354, 4
        %s356 = smul.addr %s355, 4
        %s357 = scalar_lea.vmem %s1, %s356
        %p358 = pneg %p82
        %p359 = pneg %p79
        %p360 = scmp.lt.s32.totalorder %s27, 0
        %s361 = scalar_select %p360, %s27, 0
        %s362 = scalar_lea.vmem %s2, %s361
        %p363 = pneg %p108
        %p364 = pneg %p105
        %p365 = scmp.lt.s32.totalorder %s28, 1
        %s366 = scalar_select %p365, %s28, 1
        %s367 = smul.addr %s366, 16
        %s368 = smul.addr %s367, 8
        %s369 = scalar_lea.vmem %s3, %s368
        %p370 = pneg %p134
        %p371 = pneg %p131
        %p372 = scmp.lt.s32.totalorder %s28, 1
        %s373 = scalar_select %p372, %s28, 1
        %s374 = scalar_lea.vmem %s4, %s373
        %p375 = pneg %p160
        %p376 = pneg %p157
        %p377 = pneg %p181
        %p378 = pneg %p178
        %p379 = pneg %p202
        %p380 = pneg %p199
        %p381 = pneg %p223
        %p382 = pneg %p220
        %p383 = pneg %p244
        %p384 = pneg %p241
        %p385 = pneg %p272
        %p386 = pneg %p269
        %s387 = sand.u32 %s259, 1
        %s388 = scalar_lea.sflag [#allocation5], %s387
        %s389 = sand.u32 %s259, 1
        %s390 = smul.addr %s389, 32
        %s391 = scalar_lea.vmem [#allocation4], %s390
        %p392 = scmp.lt.s32.totalorder %s28, 1
        %s393 = scalar_select %p392, %s28, 1
        %s394 = smul.addr %s393, 16
        %s395 = smul.addr %s394, 4
        %s396 = scalar_lea.vmem %s0, %s395
        %p397 = scmp.lt.s32.totalorder %s27, 0
        %s398 = scalar_select %p397, %s27, 0
        %s399 = smul.addr %s398, 4
        %s400 = smul.addr %s399, 4
        %s401 = scalar_lea.vmem %s1, %s400
        %p402 = scmp.lt.s32.totalorder %s27, 0
        %s403 = scalar_select %p402, %s27, 0
        %s404 = scalar_lea.vmem %s2, %s403
        %p405 = scmp.lt.s32.totalorder %s28, 1
        %s406 = scalar_select %p405, %s28, 1
        %s407 = smul.addr %s406, 16
        %s408 = smul.addr %s407, 8
        %s409 = scalar_lea.vmem %s3, %s408
        %p410 = scmp.lt.s32.totalorder %s28, 1
        %s411 = scalar_select %p410, %s28, 1
        %s412 = scalar_lea.vmem %s4, %s411
        %s413 = smul.u32 4, %s27
        %v415 = vld [vmem:[%s396] sm:$0xf]
        %v416 = vld [vmem:[%s396 + $0x4] sm:$0xf]
        %v417 = vld [vmem:[%s396 + $0x8] sm:$0xf]
        %v418 = vld [vmem:[%s396 + $0xc] sm:$0xf]
        %v419 = vld [vmem:[%s396 + $0x10] sm:$0xf]
        %v420 = vld [vmem:[%s396 + $0x14] sm:$0xf]
        %v421 = vld [vmem:[%s396 + $0x18] sm:$0xf]
        %v422 = vld [vmem:[%s396 + $0x1c] sm:$0xf]
        %v423 = vld [vmem:[%s396 + $0x20] sm:$0xf]
        %v424 = vld [vmem:[%s396 + $0x24] sm:$0xf]
        %v425 = vld [vmem:[%s396 + $0x28] sm:$0xf]
        %v426 = vld [vmem:[%s396 + $0x2c] sm:$0xf]
        %v427 = vld [vmem:[%s396 + $0x30] sm:$0xf]
        %v428 = vld [vmem:[%s396 + $0x34] sm:$0xf]
        %v429 = vld [vmem:[%s396 + $0x38] sm:$0xf]
        %v430 = vld [vmem:[%s396 + $0x3c] sm:$0xf]
        %v431 = vld [vmem:[%s401] sm:$0xf]
        %v432 = vld [vmem:[%s401 + $0x4] sm:$0xf]
        %v433 = vld [vmem:[%s401 + $0x8] sm:$0xf]
        %v434 = vld [vmem:[%s401 + $0xc] sm:$0xf]
        %v435 = vld [vmem:[%s404] sm:$0x1]
        %v437 = vlaneseq
        %v438 = vshrl.u32 %v437, 7
        %v439 = vsub.s32 0, %v438
        %v440 = vrot.slane %v435, %v439
        %v458 = vunpack.c.l.b16 %v415
        %v459 = vunpack.c.l.b16 %v416
        %v460 = vunpack.c.l.b16 %v417
        %v461 = vunpack.c.l.b16 %v418
        %v462 = vunpack.c.l.b16 %v419
        %v463 = vunpack.c.l.b16 %v420
        %v464 = vunpack.c.l.b16 %v421
        %v465 = vunpack.c.l.b16 %v422
        %v466 = vunpack.c.l.b16 %v423
        %v467 = vunpack.c.l.b16 %v424
        %v468 = vunpack.c.l.b16 %v425
        %v469 = vunpack.c.l.b16 %v426
        %v470 = vunpack.c.l.b16 %v427
        %v471 = vunpack.c.l.b16 %v428
        %v472 = vunpack.c.l.b16 %v429
        %v473 = vunpack.c.l.b16 %v430
        %v474 = vpack.c.b16 %v459, %v458
        %v475 = vpack.c.b16 %v461, %v460
        %v476 = vpack.c.b16 %v463, %v462
        %v477 = vpack.c.b16 %v465, %v464
        %v478 = vpack.c.b16 %v467, %v466
        %v479 = vpack.c.b16 %v469, %v468
        %v480 = vpack.c.b16 %v471, %v470
        %v481 = vpack.c.b16 %v473, %v472
        %v486 = vunpack.c.l.b16 %v431
        %v487 = vunpack.c.l.b16 %v432
        %v488 = vunpack.c.l.b16 %v433
        %v489 = vunpack.c.l.b16 %v434
        %v490 = vpack.c.b16 %v487, %v486
        %v491 = vpack.c.b16 %v489, %v488
        %vm494 = vcmask 261120
        %v496 = vsel %vm494, %v474, 0
        %v499 = vsel %vm494, %v475, 0
        %v502 = vsel %vm494, %v476, 0
        %v505 = vsel %vm494, %v477, 0
        %v508 = vsel %vm494, %v478, 0
        %v511 = vsel %vm494, %v479, 0
        %v514 = vsel %vm494, %v480, 0
        %v517 = vsel %vm494, %v481, 0
        %519 = vmatprep.subr.bf16.mxu0 0
        %520 = vmatpush1.bf16.msra.mxu0 0
        %521 = vmatprep.subr.bf16.mxu0 0
        %522 = vmatpush1.bf16.msra.mxu0 0
        %523 = vmatprep.subr.bf16.mxu0 0
        %524 = vmatpush1.bf16.msra.mxu0 0
        %525 = vmatprep.subr.bf16.mxu0 0
        %526 = vmatpush1.bf16.msra.mxu0 0
        %527 = vmatprep.subr.bf16.mxu0 0
        %528 = vmatpush1.bf16.msra.mxu0 0
        %529 = vmatprep.subr.bf16.mxu0 0
        %530 = vmatpush1.bf16.msra.mxu0 0
        %531 = vmatprep.subr.bf16.mxu0 0
        %532 = vmatpush1.bf16.msra.mxu0 %v491
        %533 = vmatprep.subr.bf16.mxu0 0
        %534 = vmatpush1.bf16.msra.mxu0 %v490
        %535 = vmatprep.subr.bf16.mxu0 0
        %536 = vmatpush2.bf16.msra.mxu0 0
        %537 = vmatprep.subr.bf16.mxu0 0
        %538 = vmatpush2.bf16.msra.mxu0 0
        %539 = vmatprep.subr.bf16.mxu0 0
        %540 = vmatpush2.bf16.msra.mxu0 0
        %541 = vmatprep.subr.bf16.mxu0 0
        %542 = vmatpush2.bf16.msra.mxu0 0
        %543 = vmatprep.subr.bf16.mxu0 0
        %544 = vmatpush2.bf16.msra.mxu0 0
        %545 = vmatprep.subr.bf16.mxu0 0
        %546 = vmatpush2.bf16.msra.mxu0 0
        %547 = vmatprep.subr.bf16.mxu0 0
        %548 = vmatpush2.bf16.msra.mxu0 0
        %549 = vmatprep.subr.bf16.mxu0 0
        %550 = vmatpush2.bf16.msra.mxu0 0
        %551 = vmatprep.mubr.bf16.mxu0 0
        %552 = vmatmul.mubr.bf16.gmra.mxu0 %v496
        %v553 = vpop.f32.mrf.mxu0
        %v554 = vadd.f32 %v440, %v553
        %v555 = vpop.f32.mrf.mxu0
        %v556 = vpop.f32.mrf.mxu0
        %v557 = vadd.f32 %v440, %v556
        %v558 = vpop.f32.mrf.mxu0
        %559 = vmatprep.mubr.bf16.mxu0 0
        %560 = vmatmul.mubr.bf16.gmra.mxu0 %v499
        %v561 = vpop.f32.mrf.mxu0
        %v562 = vadd.f32 %v440, %v561
        %v563 = vpop.f32.mrf.mxu0
        %v564 = vpop.f32.mrf.mxu0
        %v565 = vadd.f32 %v440, %v564
        %v566 = vpop.f32.mrf.mxu0
        %567 = vmatprep.mubr.bf16.mxu0 0
        %568 = vmatmul.mubr.bf16.gmra.mxu0 %v502
        %v569 = vpop.f32.mrf.mxu0
        %v570 = vadd.f32 %v440, %v569
        %v571 = vpop.f32.mrf.mxu0
        %v572 = vpop.f32.mrf.mxu0
        %v573 = vadd.f32 %v440, %v572
        %v574 = vpop.f32.mrf.mxu0
        %575 = vmatprep.mubr.bf16.mxu0 0
        %576 = vmatmul.mubr.bf16.gmra.mxu0 %v505
        %v577 = vpop.f32.mrf.mxu0
        %v578 = vadd.f32 %v440, %v577
        %v579 = vpop.f32.mrf.mxu0
        %v580 = vpop.f32.mrf.mxu0
        %v581 = vadd.f32 %v440, %v580
        %v582 = vpop.f32.mrf.mxu0
        %583 = vmatprep.mubr.bf16.mxu0 0
        %584 = vmatmul.mubr.bf16.gmra.mxu0 %v508
        %v585 = vpop.f32.mrf.mxu0
        %v586 = vadd.f32 %v440, %v585
        %v587 = vpop.f32.mrf.mxu0
        %v588 = vpop.f32.mrf.mxu0
        %v589 = vadd.f32 %v440, %v588
        %v590 = vpop.f32.mrf.mxu0
        %591 = vmatprep.mubr.bf16.mxu0 0
        %592 = vmatmul.mubr.bf16.gmra.mxu0 %v511
        %v593 = vpop.f32.mrf.mxu0
        %v594 = vadd.f32 %v440, %v593
        %v595 = vpop.f32.mrf.mxu0
        %v596 = vpop.f32.mrf.mxu0
        %v597 = vadd.f32 %v440, %v596
        %v598 = vpop.f32.mrf.mxu0
        %599 = vmatprep.mubr.bf16.mxu0 0
        %600 = vmatmul.mubr.bf16.gmra.mxu0 %v514
        %v601 = vpop.f32.mrf.mxu0
        %v602 = vadd.f32 %v440, %v601
        %v603 = vpop.f32.mrf.mxu0
        %v604 = vpop.f32.mrf.mxu0
        %v605 = vadd.f32 %v440, %v604
        %v606 = vpop.f32.mrf.mxu0
        %607 = vmatprep.mubr.bf16.mxu0 0
        %608 = vmatmul.mubr.bf16.gmra.mxu0 %v517
        %v609 = vpop.f32.mrf.mxu0
        %v610 = vadd.f32 %v440, %v609
        %v611 = vpop.f32.mrf.mxu0
        %v612 = vpop.f32.mrf.mxu0
        %v613 = vadd.f32 %v440, %v612
        %v614 = vpop.f32.mrf.mxu0
        %615 = vdwg.mxu0
        %v616 = vld [vmem:[%s409] sm:$0xff]
        %v617 = vld [vmem:[%s409 + $0x8] sm:$0xff]
        %v618 = vld [vmem:[%s409 + $0x10] sm:$0xff]
        %v619 = vld [vmem:[%s409 + $0x18] sm:$0xff]
        %v620 = vld [vmem:[%s409 + $0x20] sm:$0xff]
        %v621 = vld [vmem:[%s409 + $0x28] sm:$0xff]
        %v622 = vld [vmem:[%s409 + $0x30] sm:$0xff]
        %v623 = vld [vmem:[%s409 + $0x38] sm:$0xff]
        %v624 = vld [vmem:[%s409 + $0x40] sm:$0xff]
        %v625 = vld [vmem:[%s409 + $0x48] sm:$0xff]
        %v626 = vld [vmem:[%s409 + $0x50] sm:$0xff]
        %v627 = vld [vmem:[%s409 + $0x58] sm:$0xff]
        %v628 = vld [vmem:[%s409 + $0x60] sm:$0xff]
        %v629 = vld [vmem:[%s409 + $0x68] sm:$0xff]
        %v630 = vld [vmem:[%s409 + $0x70] sm:$0xff]
        %v631 = vld [vmem:[%s409 + $0x78] sm:$0xff]
        %v632 = vld [vmem:[%s412] sm:$0x1]
        %v633 = vld [vmem:[%s5] sm:$0xff]
        %v634 = vld [vmem:[%s6] sm:$0xff]
        %v635 = vld [vmem:[%s7] sm:$0xff]
        %v636 = vld [vmem:[%s7 + $0x8] sm:$0xff]
        %v637 = vld [vmem:[%s7 + $0x10] sm:$0xff]
        %v638 = vld [vmem:[%s7 + $0x18] sm:$0xff]
        %v639 = vld [vmem:[%s7 + $0x20] sm:$0xff]
        %v640 = vld [vmem:[%s7 + $0x28] sm:$0xff]
        %v641 = vld [vmem:[%s7 + $0x30] sm:$0xff]
        %v642 = vld [vmem:[%s7 + $0x38] sm:$0xff]
        %v643 = vld [vmem:[%s7 + $0x40] sm:$0xff]
        %v644 = vld [vmem:[%s7 + $0x48] sm:$0xff]
        %v645 = vld [vmem:[%s7 + $0x50] sm:$0xff]
        %v646 = vld [vmem:[%s7 + $0x58] sm:$0xff]
        %v647 = vld [vmem:[%s7 + $0x60] sm:$0xff]
        %v648 = vld [vmem:[%s7 + $0x68] sm:$0xff]
        %v649 = vld [vmem:[%s7 + $0x70] sm:$0xff]
        %v650 = vld [vmem:[%s7 + $0x78] sm:$0xff]
        %652 = vset.pattern.permute.xlu0 0
        %653 = vperm.xlu0 %652, %v616
        %v654 = vpop.permute.xlu0 %653
        %657 = vset.pattern.permute.xlu0 0
        %658 = vperm.xlu0 %657, %v617
        %v659 = vpop.permute.xlu0 %658
        %662 = vset.pattern.permute.xlu0 0
        %663 = vperm.xlu0 %662, %v618
        %v664 = vpop.permute.xlu0 %663
        %667 = vset.pattern.permute.xlu0 0
        %668 = vperm.xlu0 %667, %v619
        %v669 = vpop.permute.xlu0 %668
        %672 = vset.pattern.permute.xlu0 0
        %673 = vperm.xlu0 %672, %v620
        %v674 = vpop.permute.xlu0 %673
        %677 = vset.pattern.permute.xlu0 0
        %678 = vperm.xlu0 %677, %v621
        %v679 = vpop.permute.xlu0 %678
        %682 = vset.pattern.permute.xlu0 0
        %683 = vperm.xlu0 %682, %v622
        %v684 = vpop.permute.xlu0 %683
        %687 = vset.pattern.permute.xlu0 0
        %688 = vperm.xlu0 %687, %v623
        %v689 = vpop.permute.xlu0 %688
        %692 = vset.pattern.permute.xlu0 0
        %693 = vperm.xlu0 %692, %v624
        %v694 = vpop.permute.xlu0 %693
        %697 = vset.pattern.permute.xlu0 0
        %698 = vperm.xlu0 %697, %v625
        %v699 = vpop.permute.xlu0 %698
        %702 = vset.pattern.permute.xlu0 0
        %703 = vperm.xlu0 %702, %v626
        %v704 = vpop.permute.xlu0 %703
        %707 = vset.pattern.permute.xlu0 0
        %708 = vperm.xlu0 %707, %v627
        %v709 = vpop.permute.xlu0 %708
        %712 = vset.pattern.permute.xlu0 0
        %713 = vperm.xlu0 %712, %v628
        %v714 = vpop.permute.xlu0 %713
        %717 = vset.pattern.permute.xlu0 0
        %718 = vperm.xlu0 %717, %v629
        %v719 = vpop.permute.xlu0 %718
        %722 = vset.pattern.permute.xlu0 0
        %723 = vperm.xlu0 %722, %v630
        %v724 = vpop.permute.xlu0 %723
        %727 = vset.pattern.permute.xlu0 0
        %728 = vperm.xlu0 %727, %v631
        %v729 = vpop.permute.xlu0 %728
        %v731 = vmul.f32 %v635, %v654
        %v732 = vmul.f32 %v636, %v659
        %v733 = vmul.f32 %v637, %v664
        %v734 = vmul.f32 %v638, %v669
        %v735 = vmul.f32 %v639, %v674
        %v736 = vmul.f32 %v640, %v679
        %v737 = vmul.f32 %v641, %v684
        %v738 = vmul.f32 %v642, %v689
        %v739 = vmul.f32 %v643, %v694
        %v740 = vmul.f32 %v644, %v699
        %v741 = vmul.f32 %v645, %v704
        %v742 = vmul.f32 %v646, %v709
        %v743 = vmul.f32 %v647, %v714
        %v744 = vmul.f32 %v648, %v719
        %v745 = vmul.f32 %v649, %v724
        %v746 = vmul.f32 %v650, %v729
        %v747 = vld [vmem:[%s8] sm:$0xff]
        %v748 = vld [vmem:[%s8 + $0x8] sm:$0xff]
        %v749 = vld [vmem:[%s8 + $0x10] sm:$0xff]
        %v750 = vld [vmem:[%s8 + $0x18] sm:$0xff]
        %v751 = vld [vmem:[%s8 + $0x20] sm:$0xff]
        %v752 = vld [vmem:[%s8 + $0x28] sm:$0xff]
        %v753 = vld [vmem:[%s8 + $0x30] sm:$0xff]
        %v754 = vld [vmem:[%s8 + $0x38] sm:$0xff]
        %v755 = vld [vmem:[%s8 + $0x40] sm:$0xff]
        %v756 = vld [vmem:[%s8 + $0x48] sm:$0xff]
        %v757 = vld [vmem:[%s8 + $0x50] sm:$0xff]
        %v758 = vld [vmem:[%s8 + $0x58] sm:$0xff]
        %v759 = vld [vmem:[%s8 + $0x60] sm:$0xff]
        %v760 = vld [vmem:[%s8 + $0x68] sm:$0xff]
        %v761 = vld [vmem:[%s8 + $0x70] sm:$0xff]
        %v762 = vld [vmem:[%s8 + $0x78] sm:$0xff]
        %v763 = vmul.f32 %v747, %v654
        %v764 = vmul.f32 %v748, %v659
        %v765 = vmul.f32 %v749, %v664
        %v766 = vmul.f32 %v750, %v669
        %v767 = vmul.f32 %v751, %v674
        %v768 = vmul.f32 %v752, %v679
        %v769 = vmul.f32 %v753, %v684
        %v770 = vmul.f32 %v754, %v689
        %v771 = vmul.f32 %v755, %v694
        %v772 = vmul.f32 %v756, %v699
        %v773 = vmul.f32 %v757, %v704
        %v774 = vmul.f32 %v758, %v709
        %v775 = vmul.f32 %v759, %v714
        %v776 = vmul.f32 %v760, %v719
        %v777 = vmul.f32 %v761, %v724
        %v778 = vmul.f32 %v762, %v729
        %v779 = vlaneseq
        %v780 = vshrl.u32 %v779, 7
        %v781 = vlaneseq
        %v782 = vand.u32 %v781, 127
        %vm783 = vcmp.gt.s32.totalorder %v780, %v782
        %v784 = vsel %vm783, 1, 0
        %v785 = vcvt.s32.f32 %v784
        %v786 = vsub.f32 1.0, %v632
        %v788 = vlaneseq
        %v789 = vshrl.u32 %v788, 7
        %v790 = vsub.s32 0, %v789
        %v791 = vrot.slane %v786, %v790
        %v793 = vadd.f32 %v785, %v791
        %v794 = vmul.f32 %v793, 2.5e+11
        %v795 = vmul.f32 %v554, %v633
        %797 = vrot.lane.b32.xlu0 %v634, 8
        %v798 = vpop.permute.xlu0 %797
        %v800 = vmul.f32 %v554, %v798
        %802 = vrot.lane.b32.xlu0 %v800, 120
        %v803 = vpop.permute.xlu0 %802
        %v805 = vsub.f32 %v795, %v803
        %v806 = vpack.c.bf16 %v805, %v805
        %vm807 = vcmask 60416
        %808 = vst.msk [vmem:[#allocation2] sm:$0xf] %vm807, %v806
        %810 = vrot.lane.b32.xlu0 %v633, 8
        %v811 = vpop.permute.xlu0 %810
        %v813 = vmul.f32 %v554, %v811
        %v814 = vmul.f32 %v554, %v634
        %816 = vrot.lane.b32.xlu0 %v814, 8
        %v817 = vpop.permute.xlu0 %816
        %v819 = vadd.f32 %v813, %v817
        %v820 = vpack.c.bf16 %v819, %v819
        %vm821 = vcmask 126016
        %822 = vst.msk [vmem:[#allocation2] sm:$0xf] %vm821, %v820
        %839 = vrot.lane.b32.xlu0 %v731, 16
        %v840 = vpop.permute.xlu0 %839
        %841 = vrot.lane.b32.xlu0 %v732, 16
        %v842 = vpop.permute.xlu0 %841
        %843 = vrot.lane.b32.xlu0 %v733, 16
        %v844 = vpop.permute.xlu0 %843
        %845 = vrot.lane.b32.xlu0 %v734, 16
        %v846 = vpop.permute.xlu0 %845
        %847 = vrot.lane.b32.xlu0 %v735, 16
        %v848 = vpop.permute.xlu0 %847
        %849 = vrot.lane.b32.xlu0 %v736, 16
        %v850 = vpop.permute.xlu0 %849
        %851 = vrot.lane.b32.xlu0 %v737, 16
        %v852 = vpop.permute.xlu0 %851
        %853 = vrot.lane.b32.xlu0 %v738, 16
        %v854 = vpop.permute.xlu0 %853
        %855 = vrot.lane.b32.xlu0 %v739, 16
        %v856 = vpop.permute.xlu0 %855
        %857 = vrot.lane.b32.xlu0 %v740, 16
        %v858 = vpop.permute.xlu0 %857
        %859 = vrot.lane.b32.xlu0 %v741, 16
        %v860 = vpop.permute.xlu0 %859
        %861 = vrot.lane.b32.xlu0 %v742, 16
        %v862 = vpop.permute.xlu0 %861
        %863 = vrot.lane.b32.xlu0 %v743, 16
        %v864 = vpop.permute.xlu0 %863
        %865 = vrot.lane.b32.xlu0 %v744, 16
        %v866 = vpop.permute.xlu0 %865
        %867 = vrot.lane.b32.xlu0 %v745, 16
        %v868 = vpop.permute.xlu0 %867
        %869 = vrot.lane.b32.xlu0 %v746, 16
        %v870 = vpop.permute.xlu0 %869
        %v887 = vmul.f32 %v554, %v840
        %v888 = vmul.f32 %v557, %v842
        %v889 = vmul.f32 %v562, %v844
        %v890 = vmul.f32 %v565, %v846
        %v891 = vmul.f32 %v570, %v848
        %v892 = vmul.f32 %v573, %v850
        %v893 = vmul.f32 %v578, %v852
        %v894 = vmul.f32 %v581, %v854
        %v895 = vmul.f32 %v586, %v856
        %v896 = vmul.f32 %v589, %v858
        %v897 = vmul.f32 %v594, %v860
        %v898 = vmul.f32 %v597, %v862
        %v899 = vmul.f32 %v602, %v864
        %v900 = vmul.f32 %v605, %v866
        %v901 = vmul.f32 %v610, %v868
        %v902 = vmul.f32 %v613, %v870
        %919 = vrot.lane.b32.xlu0 %v763, 24
        %v920 = vpop.permute.xlu0 %919
        %921 = vrot.lane.b32.xlu0 %v764, 24
        %v922 = vpop.permute.xlu0 %921
        %923 = vrot.lane.b32.xlu0 %v765, 24
        %v924 = vpop.permute.xlu0 %923
        %925 = vrot.lane.b32.xlu0 %v766, 24
        %v926 = vpop.permute.xlu0 %925
        %927 = vrot.lane.b32.xlu0 %v767, 24
        %v928 = vpop.permute.xlu0 %927
        %929 = vrot.lane.b32.xlu0 %v768, 24
        %v930 = vpop.permute.xlu0 %929
        %931 = vrot.lane.b32.xlu0 %v769, 24
        %v932 = vpop.permute.xlu0 %931
        %933 = vrot.lane.b32.xlu0 %v770, 24
        %v934 = vpop.permute.xlu0 %933
        %935 = vrot.lane.b32.xlu0 %v771, 24
        %v936 = vpop.permute.xlu0 %935
        %937 = vrot.lane.b32.xlu0 %v772, 24
        %v938 = vpop.permute.xlu0 %937
        %939 = vrot.lane.b32.xlu0 %v773, 24
        %v940 = vpop.permute.xlu0 %939
        %941 = vrot.lane.b32.xlu0 %v774, 24
        %v942 = vpop.permute.xlu0 %941
        %943 = vrot.lane.b32.xlu0 %v775, 24
        %v944 = vpop.permute.xlu0 %943
        %945 = vrot.lane.b32.xlu0 %v776, 24
        %v946 = vpop.permute.xlu0 %945
        %947 = vrot.lane.b32.xlu0 %v777, 24
        %v948 = vpop.permute.xlu0 %947
        %949 = vrot.lane.b32.xlu0 %v778, 24
        %v950 = vpop.permute.xlu0 %949
        %v967 = vmul.f32 %v554, %v920
        %v968 = vmul.f32 %v557, %v922
        %v969 = vmul.f32 %v562, %v924
        %v970 = vmul.f32 %v565, %v926
        %v971 = vmul.f32 %v570, %v928
        %v972 = vmul.f32 %v573, %v930
        %v973 = vmul.f32 %v578, %v932
        %v974 = vmul.f32 %v581, %v934
        %v975 = vmul.f32 %v586, %v936
        %v976 = vmul.f32 %v589, %v938
        %v977 = vmul.f32 %v594, %v940
        %v978 = vmul.f32 %v597, %v942
        %v979 = vmul.f32 %v602, %v944
        %v980 = vmul.f32 %v605, %v946
        %v981 = vmul.f32 %v610, %v948
        %v982 = vmul.f32 %v613, %v950
        %999 = vrot.lane.b32.xlu0 %v967, 120
        %v1000 = vpop.permute.xlu0 %999
        %1001 = vrot.lane.b32.xlu0 %v968, 120
        %v1002 = vpop.permute.xlu0 %1001
        %1003 = vrot.lane.b32.xlu0 %v969, 120
        %v1004 = vpop.permute.xlu0 %1003
        %1005 = vrot.lane.b32.xlu0 %v970, 120
        %v1006 = vpop.permute.xlu0 %1005
        %1007 = vrot.lane.b32.xlu0 %v971, 120
        %v1008 = vpop.permute.xlu0 %1007
        %1009 = vrot.lane.b32.xlu0 %v972, 120
        %v1010 = vpop.permute.xlu0 %1009
        %1011 = vrot.lane.b32.xlu0 %v973, 120
        %v1012 = vpop.permute.xlu0 %1011
        %1013 = vrot.lane.b32.xlu0 %v974, 120
        %v1014 = vpop.permute.xlu0 %1013
        %1015 = vrot.lane.b32.xlu0 %v975, 120
        %v1016 = vpop.permute.xlu0 %1015
        %1017 = vrot.lane.b32.xlu0 %v976, 120
        %v1018 = vpop.permute.xlu0 %1017
        %1019 = vrot.lane.b32.xlu0 %v977, 120
        %v1020 = vpop.permute.xlu0 %1019
        %1021 = vrot.lane.b32.xlu0 %v978, 120
        %v1022 = vpop.permute.xlu0 %1021
        %1023 = vrot.lane.b32.xlu0 %v979, 120
        %v1024 = vpop.permute.xlu0 %1023
        %1025 = vrot.lane.b32.xlu0 %v980, 120
        %v1026 = vpop.permute.xlu0 %1025
        %1027 = vrot.lane.b32.xlu0 %v981, 120
        %v1028 = vpop.permute.xlu0 %1027
        %1029 = vrot.lane.b32.xlu0 %v982, 120
        %v1030 = vpop.permute.xlu0 %1029
        %v1047 = vsub.f32 %v887, %v1000
        %v1048 = vsub.f32 %v888, %v1002
        %v1049 = vsub.f32 %v889, %v1004
        %v1050 = vsub.f32 %v890, %v1006
        %v1051 = vsub.f32 %v891, %v1008
        %v1052 = vsub.f32 %v892, %v1010
        %v1053 = vsub.f32 %v893, %v1012
        %v1054 = vsub.f32 %v894, %v1014
        %v1055 = vsub.f32 %v895, %v1016
        %v1056 = vsub.f32 %v896, %v1018
        %v1057 = vsub.f32 %v897, %v1020
        %v1058 = vsub.f32 %v898, %v1022
        %v1059 = vsub.f32 %v899, %v1024
        %v1060 = vsub.f32 %v900, %v1026
        %v1061 = vsub.f32 %v901, %v1028
        %v1062 = vsub.f32 %v902, %v1030
        %v1063 = vpack.c.bf16 %v1048, %v1047
        %v1064 = vpack.c.bf16 %v1050, %v1049
        %v1065 = vpack.c.bf16 %v1052, %v1051
        %v1066 = vpack.c.bf16 %v1054, %v1053
        %v1067 = vpack.c.bf16 %v1056, %v1055
        %v1068 = vpack.c.bf16 %v1058, %v1057
        %v1069 = vpack.c.bf16 %v1060, %v1059
        %v1070 = vpack.c.bf16 %v1062, %v1061
        %v1079 = vunpack.c.l.b16 %v1063
        %v1080 = vunpack.c.h.b16 %v1063
        %v1081 = vunpack.c.l.b16 %v1064
        %v1082 = vunpack.c.h.b16 %v1064
        %v1083 = vunpack.c.l.b16 %v1065
        %v1084 = vunpack.c.h.b16 %v1065
        %v1085 = vunpack.c.l.b16 %v1066
        %v1086 = vunpack.c.h.b16 %v1066
        %v1087 = vunpack.c.l.b16 %v1067
        %v1088 = vunpack.c.h.b16 %v1067
        %v1089 = vunpack.c.l.b16 %v1068
        %v1090 = vunpack.c.h.b16 %v1068
        %v1091 = vunpack.c.l.b16 %v1069
        %v1092 = vunpack.c.h.b16 %v1069
        %v1093 = vunpack.c.l.b16 %v1070
        %v1094 = vunpack.c.h.b16 %v1070
        %v1095 = vpack.c.b16 %v1079, %v1079
        %v1096 = vpack.c.b16 %v1080, %v1080
        %v1097 = vpack.c.b16 %v1081, %v1081
        %v1098 = vpack.c.b16 %v1082, %v1082
        %v1099 = vpack.c.b16 %v1083, %v1083
        %v1100 = vpack.c.b16 %v1084, %v1084
        %v1101 = vpack.c.b16 %v1085, %v1085
        %v1102 = vpack.c.b16 %v1086, %v1086
        %v1103 = vpack.c.b16 %v1087, %v1087
        %v1104 = vpack.c.b16 %v1088, %v1088
        %v1105 = vpack.c.b16 %v1089, %v1089
        %v1106 = vpack.c.b16 %v1090, %v1090
        %v1107 = vpack.c.b16 %v1091, %v1091
        %v1108 = vpack.c.b16 %v1092, %v1092
        %v1109 = vpack.c.b16 %v1093, %v1093
        %v1110 = vpack.c.b16 %v1094, %v1094
        %1111 = vrot.lane.b32.xlu0 %v1095, 112
        %v1112 = vpop.permute.xlu0 %1111
        %1113 = vrot.lane.b32.xlu0 %v1096, 112
        %v1114 = vpop.permute.xlu0 %1113
        %1115 = vrot.lane.b32.xlu0 %v1097, 112
        %v1116 = vpop.permute.xlu0 %1115
        %1117 = vrot.lane.b32.xlu0 %v1098, 112
        %v1118 = vpop.permute.xlu0 %1117
        %1119 = vrot.lane.b32.xlu0 %v1099, 112
        %v1120 = vpop.permute.xlu0 %1119
        %1121 = vrot.lane.b32.xlu0 %v1100, 112
        %v1122 = vpop.permute.xlu0 %1121
        %1123 = vrot.lane.b32.xlu0 %v1101, 112
        %v1124 = vpop.permute.xlu0 %1123
        %1125 = vrot.lane.b32.xlu0 %v1102, 112
        %v1126 = vpop.permute.xlu0 %1125
        %1127 = vrot.lane.b32.xlu0 %v1103, 112
        %v1128 = vpop.permute.xlu0 %1127
        %1129 = vrot.lane.b32.xlu0 %v1104, 112
        %v1130 = vpop.permute.xlu0 %1129
        %1131 = vrot.lane.b32.xlu0 %v1105, 112
        %v1132 = vpop.permute.xlu0 %1131
        %1133 = vrot.lane.b32.xlu0 %v1106, 112
        %v1134 = vpop.permute.xlu0 %1133
        %1135 = vrot.lane.b32.xlu0 %v1107, 112
        %v1136 = vpop.permute.xlu0 %1135
        %1137 = vrot.lane.b32.xlu0 %v1108, 112
        %v1138 = vpop.permute.xlu0 %1137
        %1139 = vrot.lane.b32.xlu0 %v1109, 112
        %v1140 = vpop.permute.xlu0 %1139
        %1141 = vrot.lane.b32.xlu0 %v1110, 112
        %v1142 = vpop.permute.xlu0 %1141
        %1159 = vst.msk [vmem:[#allocation3] sm:$0xf] %vm807, %v1112
        %1160 = vst.msk [vmem:[#allocation3 + $0x4] sm:$0xf] %vm807, %v1114
        %1161 = vst.msk [vmem:[#allocation3 + $0x8] sm:$0xf] %vm807, %v1116
        %1162 = vst.msk [vmem:[#allocation3 + $0xc] sm:$0xf] %vm807, %v1118
        %1163 = vst.msk [vmem:[#allocation3 + $0x10] sm:$0xf] %vm807, %v1120
        %1164 = vst.msk [vmem:[#allocation3 + $0x14] sm:$0xf] %vm807, %v1122
        %1165 = vst.msk [vmem:[#allocation3 + $0x18] sm:$0xf] %vm807, %v1124
        %1166 = vst.msk [vmem:[#allocation3 + $0x1c] sm:$0xf] %vm807, %v1126
        %1167 = vst.msk [vmem:[#allocation3 + $0x20] sm:$0xf] %vm807, %v1128
        %1168 = vst.msk [vmem:[#allocation3 + $0x24] sm:$0xf] %vm807, %v1130
        %1169 = vst.msk [vmem:[#allocation3 + $0x28] sm:$0xf] %vm807, %v1132
        %1170 = vst.msk [vmem:[#allocation3 + $0x2c] sm:$0xf] %vm807, %v1134
        %1171 = vst.msk [vmem:[#allocation3 + $0x30] sm:$0xf] %vm807, %v1136
        %1172 = vst.msk [vmem:[#allocation3 + $0x34] sm:$0xf] %vm807, %v1138
        %1173 = vst.msk [vmem:[#allocation3 + $0x38] sm:$0xf] %vm807, %v1140
        %1174 = vst.msk [vmem:[#allocation3 + $0x3c] sm:$0xf] %vm807, %v1142
        %1175 = vrot.lane.b32.xlu0 %v731, 24
        %v1176 = vpop.permute.xlu0 %1175
        %1177 = vrot.lane.b32.xlu0 %v732, 24
        %v1178 = vpop.permute.xlu0 %1177
        %1179 = vrot.lane.b32.xlu0 %v733, 24
        %v1180 = vpop.permute.xlu0 %1179
        %1181 = vrot.lane.b32.xlu0 %v734, 24
        %v1182 = vpop.permute.xlu0 %1181
        %1183 = vrot.lane.b32.xlu0 %v735, 24
        %v1184 = vpop.permute.xlu0 %1183
        %1185 = vrot.lane.b32.xlu0 %v736, 24
        %v1186 = vpop.permute.xlu0 %1185
        %1187 = vrot.lane.b32.xlu0 %v737, 24
        %v1188 = vpop.permute.xlu0 %1187
        %1189 = vrot.lane.b32.xlu0 %v738, 24
        %v1190 = vpop.permute.xlu0 %1189
        %1191 = vrot.lane.b32.xlu0 %v739, 24
        %v1192 = vpop.permute.xlu0 %1191
        %1193 = vrot.lane.b32.xlu0 %v740, 24
        %v1194 = vpop.permute.xlu0 %1193
        %1195 = vrot.lane.b32.xlu0 %v741, 24
        %v1196 = vpop.permute.xlu0 %1195
        %1197 = vrot.lane.b32.xlu0 %v742, 24
        %v1198 = vpop.permute.xlu0 %1197
        %1199 = vrot.lane.b32.xlu0 %v743, 24
        %v1200 = vpop.permute.xlu0 %1199
        %1201 = vrot.lane.b32.xlu0 %v744, 24
        %v1202 = vpop.permute.xlu0 %1201
        %1203 = vrot.lane.b32.xlu0 %v745, 24
        %v1204 = vpop.permute.xlu0 %1203
        %1205 = vrot.lane.b32.xlu0 %v746, 24
        %v1206 = vpop.permute.xlu0 %1205
        %v1223 = vmul.f32 %v554, %v1176
        %v1224 = vmul.f32 %v557, %v1178
        %v1225 = vmul.f32 %v562, %v1180
        %v1226 = vmul.f32 %v565, %v1182
        %v1227 = vmul.f32 %v570, %v1184
        %v1228 = vmul.f32 %v573, %v1186
        %v1229 = vmul.f32 %v578, %v1188
        %v1230 = vmul.f32 %v581, %v1190
        %v1231 = vmul.f32 %v586, %v1192
        %v1232 = vmul.f32 %v589, %v1194
        %v1233 = vmul.f32 %v594, %v1196
        %v1234 = vmul.f32 %v597, %v1198
        %v1235 = vmul.f32 %v602, %v1200
        %v1236 = vmul.f32 %v605, %v1202
        %v1237 = vmul.f32 %v610, %v1204
        %v1238 = vmul.f32 %v613, %v1206
        %1239 = vrot.lane.b32.xlu0 %v763, 16
        %v1240 = vpop.permute.xlu0 %1239
        %1241 = vrot.lane.b32.xlu0 %v764, 16
        %v1242 = vpop.permute.xlu0 %1241
        %1243 = vrot.lane.b32.xlu0 %v765, 16
        %v1244 = vpop.permute.xlu0 %1243
        %1245 = vrot.lane.b32.xlu0 %v766, 16
        %v1246 = vpop.permute.xlu0 %1245
        %1247 = vrot.lane.b32.xlu0 %v767, 16
        %v1248 = vpop.permute.xlu0 %1247
        %1249 = vrot.lane.b32.xlu0 %v768, 16
        %v1250 = vpop.permute.xlu0 %1249
        %1251 = vrot.lane.b32.xlu0 %v769, 16
        %v1252 = vpop.permute.xlu0 %1251
        %1253 = vrot.lane.b32.xlu0 %v770, 16
        %v1254 = vpop.permute.xlu0 %1253
        %1255 = vrot.lane.b32.xlu0 %v771, 16
        %v1256 = vpop.permute.xlu0 %1255
        %1257 = vrot.lane.b32.xlu0 %v772, 16
        %v1258 = vpop.permute.xlu0 %1257
        %1259 = vrot.lane.b32.xlu0 %v773, 16
        %v1260 = vpop.permute.xlu0 %1259
        %1261 = vrot.lane.b32.xlu0 %v774, 16
        %v1262 = vpop.permute.xlu0 %1261
        %1263 = vrot.lane.b32.xlu0 %v775, 16
        %v1264 = vpop.permute.xlu0 %1263
        %1265 = vrot.lane.b32.xlu0 %v776, 16
        %v1266 = vpop.permute.xlu0 %1265
        %1267 = vrot.lane.b32.xlu0 %v777, 16
        %v1268 = vpop.permute.xlu0 %1267
        %1269 = vrot.lane.b32.xlu0 %v778, 16
        %v1270 = vpop.permute.xlu0 %1269
        %v1287 = vmul.f32 %v554, %v1240
        %v1288 = vmul.f32 %v557, %v1242
        %v1289 = vmul.f32 %v562, %v1244
        %v1290 = vmul.f32 %v565, %v1246
        %v1291 = vmul.f32 %v570, %v1248
        %v1292 = vmul.f32 %v573, %v1250
        %v1293 = vmul.f32 %v578, %v1252
        %v1294 = vmul.f32 %v581, %v1254
        %v1295 = vmul.f32 %v586, %v1256
        %v1296 = vmul.f32 %v589, %v1258
        %v1297 = vmul.f32 %v594, %v1260
        %v1298 = vmul.f32 %v597, %v1262
        %v1299 = vmul.f32 %v602, %v1264
        %v1300 = vmul.f32 %v605, %v1266
        %v1301 = vmul.f32 %v610, %v1268
        %v1302 = vmul.f32 %v613, %v1270
        %1319 = vrot.lane.b32.xlu0 %v1287, 8
        %v1320 = vpop.permute.xlu0 %1319
        %1321 = vrot.lane.b32.xlu0 %v1288, 8
        %v1322 = vpop.permute.xlu0 %1321
        %1323 = vrot.lane.b32.xlu0 %v1289, 8
        %v1324 = vpop.permute.xlu0 %1323
        %1325 = vrot.lane.b32.xlu0 %v1290, 8
        %v1326 = vpop.permute.xlu0 %1325
        %1327 = vrot.lane.b32.xlu0 %v1291, 8
        %v1328 = vpop.permute.xlu0 %1327
        %1329 = vrot.lane.b32.xlu0 %v1292, 8
        %v1330 = vpop.permute.xlu0 %1329
        %1331 = vrot.lane.b32.xlu0 %v1293, 8
        %v1332 = vpop.permute.xlu0 %1331
        %1333 = vrot.lane.b32.xlu0 %v1294, 8
        %v1334 = vpop.permute.xlu0 %1333
        %1335 = vrot.lane.b32.xlu0 %v1295, 8
        %v1336 = vpop.permute.xlu0 %1335
        %1337 = vrot.lane.b32.xlu0 %v1296, 8
        %v1338 = vpop.permute.xlu0 %1337
        %1339 = vrot.lane.b32.xlu0 %v1297, 8
        %v1340 = vpop.permute.xlu0 %1339
        %1341 = vrot.lane.b32.xlu0 %v1298, 8
        %v1342 = vpop.permute.xlu0 %1341
        %1343 = vrot.lane.b32.xlu0 %v1299, 8
        %v1344 = vpop.permute.xlu0 %1343
        %1345 = vrot.lane.b32.xlu0 %v1300, 8
        %v1346 = vpop.permute.xlu0 %1345
        %1347 = vrot.lane.b32.xlu0 %v1301, 8
        %v1348 = vpop.permute.xlu0 %1347
        %1349 = vrot.lane.b32.xlu0 %v1302, 8
        %v1350 = vpop.permute.xlu0 %1349
        %v1367 = vadd.f32 %v1223, %v1320
        %v1368 = vadd.f32 %v1224, %v1322
        %v1369 = vadd.f32 %v1225, %v1324
        %v1370 = vadd.f32 %v1226, %v1326
        %v1371 = vadd.f32 %v1227, %v1328
        %v1372 = vadd.f32 %v1228, %v1330
        %v1373 = vadd.f32 %v1229, %v1332
        %v1374 = vadd.f32 %v1230, %v1334
        %v1375 = vadd.f32 %v1231, %v1336
        %v1376 = vadd.f32 %v1232, %v1338
        %v1377 = vadd.f32 %v1233, %v1340
        %v1378 = vadd.f32 %v1234, %v1342
        %v1379 = vadd.f32 %v1235, %v1344
        %v1380 = vadd.f32 %v1236, %v1346
        %v1381 = vadd.f32 %v1237, %v1348
        %v1382 = vadd.f32 %v1238, %v1350
        %v1383 = vpack.c.bf16 %v1368, %v1367
        %v1384 = vpack.c.bf16 %v1370, %v1369
        %v1385 = vpack.c.bf16 %v1372, %v1371
        %v1386 = vpack.c.bf16 %v1374, %v1373
        %v1387 = vpack.c.bf16 %v1376, %v1375
        %v1388 = vpack.c.bf16 %v1378, %v1377
        %v1389 = vpack.c.bf16 %v1380, %v1379
        %v1390 = vpack.c.bf16 %v1382, %v1381
        %v1399 = vunpack.c.l.b16 %v1383
        %v1400 = vunpack.c.h.b16 %v1383
        %v1401 = vunpack.c.l.b16 %v1384
        %v1402 = vunpack.c.h.b16 %v1384
        %v1403 = vunpack.c.l.b16 %v1385
        %v1404 = vunpack.c.h.b16 %v1385
        %v1405 = vunpack.c.l.b16 %v1386
        %v1406 = vunpack.c.h.b16 %v1386
        %v1407 = vunpack.c.l.b16 %v1387
        %v1408 = vunpack.c.h.b16 %v1387
        %v1409 = vunpack.c.l.b16 %v1388
        %v1410 = vunpack.c.h.b16 %v1388
        %v1411 = vunpack.c.l.b16 %v1389
        %v1412 = vunpack.c.h.b16 %v1389
        %v1413 = vunpack.c.l.b16 %v1390
        %v1414 = vunpack.c.h.b16 %v1390
        %v1415 = vpack.c.b16 %v1399, %v1399
        %v1416 = vpack.c.b16 %v1400, %v1400
        %v1417 = vpack.c.b16 %v1401, %v1401
        %v1418 = vpack.c.b16 %v1402, %v1402
        %v1419 = vpack.c.b16 %v1403, %v1403
        %v1420 = vpack.c.b16 %v1404, %v1404
        %v1421 = vpack.c.b16 %v1405, %v1405
        %v1422 = vpack.c.b16 %v1406, %v1406
        %v1423 = vpack.c.b16 %v1407, %v1407
        %v1424 = vpack.c.b16 %v1408, %v1408
        %v1425 = vpack.c.b16 %v1409, %v1409
        %v1426 = vpack.c.b16 %v1410, %v1410
        %v1427 = vpack.c.b16 %v1411, %v1411
        %v1428 = vpack.c.b16 %v1412, %v1412
        %v1429 = vpack.c.b16 %v1413, %v1413
        %v1430 = vpack.c.b16 %v1414, %v1414
        %1431 = vrot.lane.b32.xlu0 %v1415, 112
        %v1432 = vpop.permute.xlu0 %1431
        %1433 = vrot.lane.b32.xlu0 %v1416, 112
        %v1434 = vpop.permute.xlu0 %1433
        %1435 = vrot.lane.b32.xlu0 %v1417, 112
        %v1436 = vpop.permute.xlu0 %1435
        %1437 = vrot.lane.b32.xlu0 %v1418, 112
        %v1438 = vpop.permute.xlu0 %1437
        %1439 = vrot.lane.b32.xlu0 %v1419, 112
        %v1440 = vpop.permute.xlu0 %1439
        %1441 = vrot.lane.b32.xlu0 %v1420, 112
        %v1442 = vpop.permute.xlu0 %1441
        %1443 = vrot.lane.b32.xlu0 %v1421, 112
        %v1444 = vpop.permute.xlu0 %1443
        %1445 = vrot.lane.b32.xlu0 %v1422, 112
        %v1446 = vpop.permute.xlu0 %1445
        %1447 = vrot.lane.b32.xlu0 %v1423, 112
        %v1448 = vpop.permute.xlu0 %1447
        %1449 = vrot.lane.b32.xlu0 %v1424, 112
        %v1450 = vpop.permute.xlu0 %1449
        %1451 = vrot.lane.b32.xlu0 %v1425, 112
        %v1452 = vpop.permute.xlu0 %1451
        %1453 = vrot.lane.b32.xlu0 %v1426, 112
        %v1454 = vpop.permute.xlu0 %1453
        %1455 = vrot.lane.b32.xlu0 %v1427, 112
        %v1456 = vpop.permute.xlu0 %1455
        %1457 = vrot.lane.b32.xlu0 %v1428, 112
        %v1458 = vpop.permute.xlu0 %1457
        %1459 = vrot.lane.b32.xlu0 %v1429, 112
        %v1460 = vpop.permute.xlu0 %1459
        %1461 = vrot.lane.b32.xlu0 %v1430, 112
        %v1462 = vpop.permute.xlu0 %1461
        %1479 = vst.msk [vmem:[#allocation3] sm:$0xf] %vm821, %v1432
        %1480 = vst.msk [vmem:[#allocation3 + $0x4] sm:$0xf] %vm821, %v1434
        %1481 = vst.msk [vmem:[#allocation3 + $0x8] sm:$0xf] %vm821, %v1436
        %1482 = vst.msk [vmem:[#allocation3 + $0xc] sm:$0xf] %vm821, %v1438
        %1483 = vst.msk [vmem:[#allocation3 + $0x10] sm:$0xf] %vm821, %v1440
        %1484 = vst.msk [vmem:[#allocation3 + $0x14] sm:$0xf] %vm821, %v1442
        %1485 = vst.msk [vmem:[#allocation3 + $0x18] sm:$0xf] %vm821, %v1444
        %1486 = vst.msk [vmem:[#allocation3 + $0x1c] sm:$0xf] %vm821, %v1446
        %1487 = vst.msk [vmem:[#allocation3 + $0x20] sm:$0xf] %vm821, %v1448
        %1488 = vst.msk [vmem:[#allocation3 + $0x24] sm:$0xf] %vm821, %v1450
        %1489 = vst.msk [vmem:[#allocation3 + $0x28] sm:$0xf] %vm821, %v1452
        %1490 = vst.msk [vmem:[#allocation3 + $0x2c] sm:$0xf] %vm821, %v1454
        %1491 = vst.msk [vmem:[#allocation3 + $0x30] sm:$0xf] %vm821, %v1456
        %1492 = vst.msk [vmem:[#allocation3 + $0x34] sm:$0xf] %vm821, %v1458
        %1493 = vst.msk [vmem:[#allocation3 + $0x38] sm:$0xf] %vm821, %v1460
        %1494 = vst.msk [vmem:[#allocation3 + $0x3c] sm:$0xf] %vm821, %v1462
        %v1495 = vld [vmem:[#allocation2] sm:$0xf]
        %v1496 = vld [vmem:[#allocation3] sm:$0xf]
        %v1497 = vld [vmem:[#allocation3 + $0x4] sm:$0xf]
        %v1498 = vld [vmem:[#allocation3 + $0x8] sm:$0xf]
        %v1499 = vld [vmem:[#allocation3 + $0xc] sm:$0xf]
        %v1500 = vld [vmem:[#allocation3 + $0x10] sm:$0xf]
        %v1501 = vld [vmem:[#allocation3 + $0x14] sm:$0xf]
        %v1502 = vld [vmem:[#allocation3 + $0x18] sm:$0xf]
        %v1503 = vld [vmem:[#allocation3 + $0x1c] sm:$0xf]
        %v1504 = vld [vmem:[#allocation3 + $0x20] sm:$0xf]
        %v1505 = vld [vmem:[#allocation3 + $0x24] sm:$0xf]
        %v1506 = vld [vmem:[#allocation3 + $0x28] sm:$0xf]
        %v1507 = vld [vmem:[#allocation3 + $0x2c] sm:$0xf]
        %v1508 = vld [vmem:[#allocation3 + $0x30] sm:$0xf]
        %v1509 = vld [vmem:[#allocation3 + $0x34] sm:$0xf]
        %v1510 = vld [vmem:[#allocation3 + $0x38] sm:$0xf]
        %v1511 = vld [vmem:[#allocation3 + $0x3c] sm:$0xf]
        %v1528 = vunpack.c.l.b16 %v1496
        %v1529 = vunpack.c.l.b16 %v1497
        %v1530 = vunpack.c.l.b16 %v1498
        %v1531 = vunpack.c.l.b16 %v1499
        %v1532 = vunpack.c.l.b16 %v1500
        %v1533 = vunpack.c.l.b16 %v1501
        %v1534 = vunpack.c.l.b16 %v1502
        %v1535 = vunpack.c.l.b16 %v1503
        %v1536 = vunpack.c.l.b16 %v1504
        %v1537 = vunpack.c.l.b16 %v1505
        %v1538 = vunpack.c.l.b16 %v1506
        %v1539 = vunpack.c.l.b16 %v1507
        %v1540 = vunpack.c.l.b16 %v1508
        %v1541 = vunpack.c.l.b16 %v1509
        %v1542 = vunpack.c.l.b16 %v1510
        %v1543 = vunpack.c.l.b16 %v1511
        %v1544 = vpack.c.b16 %v1529, %v1528
        %v1545 = vpack.c.b16 %v1531, %v1530
        %v1546 = vpack.c.b16 %v1533, %v1532
        %v1547 = vpack.c.b16 %v1535, %v1534
        %v1548 = vpack.c.b16 %v1537, %v1536
        %v1549 = vpack.c.b16 %v1539, %v1538
        %v1550 = vpack.c.b16 %v1541, %v1540
        %v1551 = vpack.c.b16 %v1543, %v1542
        %vm1552 = vcmask 130048
        %v1554 = vsel %vm1552, %v1495, 0
        %v1557 = vsel %vm1552, %v1544, 0
        %v1560 = vsel %vm1552, %v1545, 0
        %v1563 = vsel %vm1552, %v1546, 0
        %v1566 = vsel %vm1552, %v1547, 0
        %v1569 = vsel %vm1552, %v1548, 0
        %v1572 = vsel %vm1552, %v1549, 0
        %v1575 = vsel %vm1552, %v1550, 0
        %v1578 = vsel %vm1552, %v1551, 0
        %1580 = vmatprep.subr.bf16.mxu0 0
        %1581 = vmatpush1.bf16.xpose.msra.mxu0 %v1578
        %1582 = vmatprep.subr.bf16.mxu0 0
        %1583 = vmatpush1.bf16.xpose.msra.mxu0 %v1575
        %1584 = vmatprep.subr.bf16.mxu0 0
        %1585 = vmatpush1.bf16.xpose.msra.mxu0 %v1572
        %1586 = vmatprep.subr.bf16.mxu0 0
        %1587 = vmatpush1.bf16.xpose.msra.mxu0 %v1569
        %1588 = vmatprep.subr.bf16.mxu0 0
        %1589 = vmatpush1.bf16.xpose.msra.mxu0 %v1566
        %1590 = vmatprep.subr.bf16.mxu0 0
        %1591 = vmatpush1.bf16.xpose.msra.mxu0 %v1563
        %1592 = vmatprep.subr.bf16.mxu0 0
        %1593 = vmatpush1.bf16.xpose.msra.mxu0 %v1560
        %1594 = vmatprep.subr.bf16.mxu0 0
        %1595 = vmatpush1.bf16.xpose.msra.mxu0 %v1557
        %1596 = vmatprep.subr.bf16.mxu0 0
        %1597 = vmatpush2.bf16.xpose.msra.mxu0 0
        %1598 = vmatprep.subr.bf16.mxu0 0
        %1599 = vmatpush2.bf16.xpose.msra.mxu0 0
        %1600 = vmatprep.subr.bf16.mxu0 0
        %1601 = vmatpush2.bf16.xpose.msra.mxu0 0
        %1602 = vmatprep.subr.bf16.mxu0 0
        %1603 = vmatpush2.bf16.xpose.msra.mxu0 0
        %1604 = vmatprep.subr.bf16.mxu0 0
        %1605 = vmatpush2.bf16.xpose.msra.mxu0 0
        %1606 = vmatprep.subr.bf16.mxu0 0
        %1607 = vmatpush2.bf16.xpose.msra.mxu0 0
        %1608 = vmatprep.subr.bf16.mxu0 0
        %1609 = vmatpush2.bf16.xpose.msra.mxu0 0
        %1610 = vmatprep.subr.bf16.mxu0 0
        %1611 = vmatpush2.bf16.xpose.msra.mxu0 0
        %1612 = vmatprep.mubr.bf16.mxu0 0
        %1613 = vmatmul.mubr.bf16.gmra.mxu0 %v1554
        %v1614 = vpop.f32.mrf.mxu0
        %v1615 = vadd.f32 0.0, %v1614
        %v1616 = vpop.f32.mrf.mxu0
        %v1617 = vpop.f32.mrf.mxu0
        %v1618 = vpop.f32.mrf.mxu0
        %1619 = vdwg.mxu0
        %v1620 = vsub.f32 %v1615, %v794
        %1621 = vst [vmem:[%s391] sm:$0xff] %v1620
        %1622 = vrot.lane.b32.xlu0 %v633, 32
        %v1623 = vpop.permute.xlu0 %1622
        %v1625 = vmul.f32 %v554, %v1623
        %1626 = vrot.lane.b32.xlu0 %v634, 40
        %v1627 = vpop.permute.xlu0 %1626
        %v1629 = vmul.f32 %v554, %v1627
        %1631 = vrot.lane.b32.xlu0 %v1629, 120
        %v1632 = vpop.permute.xlu0 %1631
        %v1634 = vsub.f32 %v1625, %v1632
        %v1635 = vpack.c.bf16 %v1634, %v1634
        %v1637 = vunpack.c.l.b16 %v1635
        %v1638 = vpack.c.b16 %v1637, %v1637
        %1639 = vrot.lane.b32.xlu0 %v1638, 96
        %v1640 = vpop.permute.xlu0 %1639
        %1642 = vst.msk [vmem:[#allocation2] sm:$0xf] %vm807, %v1640
        %1643 = vrot.lane.b32.xlu0 %v633, 40
        %v1644 = vpop.permute.xlu0 %1643
        %v1646 = vmul.f32 %v554, %v1644
        %1647 = vrot.lane.b32.xlu0 %v634, 32
        %v1648 = vpop.permute.xlu0 %1647
        %v1650 = vmul.f32 %v554, %v1648
        %1652 = vrot.lane.b32.xlu0 %v1650, 8
        %v1653 = vpop.permute.xlu0 %1652
        %v1655 = vadd.f32 %v1646, %v1653
        %v1656 = vpack.c.bf16 %v1655, %v1655
        %v1658 = vunpack.c.l.b16 %v1656
        %v1659 = vpack.c.b16 %v1658, %v1658
        %1660 = vrot.lane.b32.xlu0 %v1659, 96
        %v1661 = vpop.permute.xlu0 %1660
        %1663 = vst.msk [vmem:[#allocation2] sm:$0xf] %vm821, %v1661
        %1664 = vrot.lane.b32.xlu0 %v731, 48
        %v1665 = vpop.permute.xlu0 %1664
        %1666 = vrot.lane.b32.xlu0 %v732, 48
        %v1667 = vpop.permute.xlu0 %1666
        %1668 = vrot.lane.b32.xlu0 %v733, 48
        %v1669 = vpop.permute.xlu0 %1668
        %1670 = vrot.lane.b32.xlu0 %v734, 48
        %v1671 = vpop.permute.xlu0 %1670
        %1672 = vrot.lane.b32.xlu0 %v735, 48
        %v1673 = vpop.permute.xlu0 %1672
        %1674 = vrot.lane.b32.xlu0 %v736, 48
        %v1675 = vpop.permute.xlu0 %1674
        %1676 = vrot.lane.b32.xlu0 %v737, 48
        %v1677 = vpop.permute.xlu0 %1676
        %1678 = vrot.lane.b32.xlu0 %v738, 48
        %v1679 = vpop.permute.xlu0 %1678
        %1680 = vrot.lane.b32.xlu0 %v739, 48
        %v1681 = vpop.permute.xlu0 %1680
        %1682 = vrot.lane.b32.xlu0 %v740, 48
        %v1683 = vpop.permute.xlu0 %1682
        %1684 = vrot.lane.b32.xlu0 %v741, 48
        %v1685 = vpop.permute.xlu0 %1684
        %1686 = vrot.lane.b32.xlu0 %v742, 48
        %v1687 = vpop.permute.xlu0 %1686
        %1688 = vrot.lane.b32.xlu0 %v743, 48
        %v1689 = vpop.permute.xlu0 %1688
        %1690 = vrot.lane.b32.xlu0 %v744, 48
        %v1691 = vpop.permute.xlu0 %1690
        %1692 = vrot.lane.b32.xlu0 %v745, 48
        %v1693 = vpop.permute.xlu0 %1692
        %1694 = vrot.lane.b32.xlu0 %v746, 48
        %v1695 = vpop.permute.xlu0 %1694
        %v1712 = vmul.f32 %v554, %v1665
        %v1713 = vmul.f32 %v557, %v1667
        %v1714 = vmul.f32 %v562, %v1669
        %v1715 = vmul.f32 %v565, %v1671
        %v1716 = vmul.f32 %v570, %v1673
        %v1717 = vmul.f32 %v573, %v1675
        %v1718 = vmul.f32 %v578, %v1677
        %v1719 = vmul.f32 %v581, %v1679
        %v1720 = vmul.f32 %v586, %v1681
        %v1721 = vmul.f32 %v589, %v1683
        %v1722 = vmul.f32 %v594, %v1685
        %v1723 = vmul.f32 %v597, %v1687
        %v1724 = vmul.f32 %v602, %v1689
        %v1725 = vmul.f32 %v605, %v1691
        %v1726 = vmul.f32 %v610, %v1693
        %v1727 = vmul.f32 %v613, %v1695
        %1728 = vrot.lane.b32.xlu0 %v763, 56
        %v1729 = vpop.permute.xlu0 %1728
        %1730 = vrot.lane.b32.xlu0 %v764, 56
        %v1731 = vpop.permute.xlu0 %1730
        %1732 = vrot.lane.b32.xlu0 %v765, 56
        %v1733 = vpop.permute.xlu0 %1732
        %1734 = vrot.lane.b32.xlu0 %v766, 56
        %v1735 = vpop.permute.xlu0 %1734
        %1736 = vrot.lane.b32.xlu0 %v767, 56
        %v1737 = vpop.permute.xlu0 %1736
        %1738 = vrot.lane.b32.xlu0 %v768, 56
        %v1739 = vpop.permute.xlu0 %1738
        %1740 = vrot.lane.b32.xlu0 %v769, 56
        %v1741 = vpop.permute.xlu0 %1740
        %1742 = vrot.lane.b32.xlu0 %v770, 56
        %v1743 = vpop.permute.xlu0 %1742
        %1744 = vrot.lane.b32.xlu0 %v771, 56
        %v1745 = vpop.permute.xlu0 %1744
        %1746 = vrot.lane.b32.xlu0 %v772, 56
        %v1747 = vpop.permute.xlu0 %1746
        %1748 = vrot.lane.b32.xlu0 %v773, 56
        %v1749 = vpop.permute.xlu0 %1748
        %1750 = vrot.lane.b32.xlu0 %v774, 56
        %v1751 = vpop.permute.xlu0 %1750
        %1752 = vrot.lane.b32.xlu0 %v775, 56
        %v1753 = vpop.permute.xlu0 %1752
        %1754 = vrot.lane.b32.xlu0 %v776, 56
        %v1755 = vpop.permute.xlu0 %1754
        %1756 = vrot.lane.b32.xlu0 %v777, 56
        %v1757 = vpop.permute.xlu0 %1756
        %1758 = vrot.lane.b32.xlu0 %v778, 56
        %v1759 = vpop.permute.xlu0 %1758
        %v1776 = vmul.f32 %v554, %v1729
        %v1777 = vmul.f32 %v557, %v1731
        %v1778 = vmul.f32 %v562, %v1733
        %v1779 = vmul.f32 %v565, %v1735
        %v1780 = vmul.f32 %v570, %v1737
        %v1781 = vmul.f32 %v573, %v1739
        %v1782 = vmul.f32 %v578, %v1741
        %v1783 = vmul.f32 %v581, %v1743
        %v1784 = vmul.f32 %v586, %v1745
        %v1785 = vmul.f32 %v589, %v1747
        %v1786 = vmul.f32 %v594, %v1749
        %v1787 = vmul.f32 %v597, %v1751
        %v1788 = vmul.f32 %v602, %v1753
        %v1789 = vmul.f32 %v605, %v1755
        %v1790 = vmul.f32 %v610, %v1757
        %v1791 = vmul.f32 %v613, %v1759
        %1808 = vrot.lane.b32.xlu0 %v1776, 120
        %v1809 = vpop.permute.xlu0 %1808
        %1810 = vrot.lane.b32.xlu0 %v1777, 120
        %v1811 = vpop.permute.xlu0 %1810
        %1812 = vrot.lane.b32.xlu0 %v1778, 120
        %v1813 = vpop.permute.xlu0 %1812
        %1814 = vrot.lane.b32.xlu0 %v1779, 120
        %v1815 = vpop.permute.xlu0 %1814
        %1816 = vrot.lane.b32.xlu0 %v1780, 120
        %v1817 = vpop.permute.xlu0 %1816
        %1818 = vrot.lane.b32.xlu0 %v1781, 120
        %v1819 = vpop.permute.xlu0 %1818
        %1820 = vrot.lane.b32.xlu0 %v1782, 120
        %v1821 = vpop.permute.xlu0 %1820
        %1822 = vrot.lane.b32.xlu0 %v1783, 120
        %v1823 = vpop.permute.xlu0 %1822
        %1824 = vrot.lane.b32.xlu0 %v1784, 120
        %v1825 = vpop.permute.xlu0 %1824
        %1826 = vrot.lane.b32.xlu0 %v1785, 120
        %v1827 = vpop.permute.xlu0 %1826
        %1828 = vrot.lane.b32.xlu0 %v1786, 120
        %v1829 = vpop.permute.xlu0 %1828
        %1830 = vrot.lane.b32.xlu0 %v1787, 120
        %v1831 = vpop.permute.xlu0 %1830
        %1832 = vrot.lane.b32.xlu0 %v1788, 120
        %v1833 = vpop.permute.xlu0 %1832
        %1834 = vrot.lane.b32.xlu0 %v1789, 120
        %v1835 = vpop.permute.xlu0 %1834
        %1836 = vrot.lane.b32.xlu0 %v1790, 120
        %v1837 = vpop.permute.xlu0 %1836
        %1838 = vrot.lane.b32.xlu0 %v1791, 120
        %v1839 = vpop.permute.xlu0 %1838
        %v1856 = vsub.f32 %v1712, %v1809
        %v1857 = vsub.f32 %v1713, %v1811
        %v1858 = vsub.f32 %v1714, %v1813
        %v1859 = vsub.f32 %v1715, %v1815
        %v1860 = vsub.f32 %v1716, %v1817
        %v1861 = vsub.f32 %v1717, %v1819
        %v1862 = vsub.f32 %v1718, %v1821
        %v1863 = vsub.f32 %v1719, %v1823
        %v1864 = vsub.f32 %v1720, %v1825
        %v1865 = vsub.f32 %v1721, %v1827
        %v1866 = vsub.f32 %v1722, %v1829
        %v1867 = vsub.f32 %v1723, %v1831
        %v1868 = vsub.f32 %v1724, %v1833
        %v1869 = vsub.f32 %v1725, %v1835
        %v1870 = vsub.f32 %v1726, %v1837
        %v1871 = vsub.f32 %v1727, %v1839
        %v1872 = vpack.c.bf16 %v1857, %v1856
        %v1873 = vpack.c.bf16 %v1859, %v1858
        %v1874 = vpack.c.bf16 %v1861, %v1860
        %v1875 = vpack.c.bf16 %v1863, %v1862
        %v1876 = vpack.c.bf16 %v1865, %v1864
        %v1877 = vpack.c.bf16 %v1867, %v1866
        %v1878 = vpack.c.bf16 %v1869, %v1868
        %v1879 = vpack.c.bf16 %v1871, %v1870
        %v1888 = vunpack.c.l.b16 %v1872
        %v1889 = vunpack.c.h.b16 %v1872
        %v1890 = vunpack.c.l.b16 %v1873
        %v1891 = vunpack.c.h.b16 %v1873
        %v1892 = vunpack.c.l.b16 %v1874
        %v1893 = vunpack.c.h.b16 %v1874
        %v1894 = vunpack.c.l.b16 %v1875
        %v1895 = vunpack.c.h.b16 %v1875
        %v1896 = vunpack.c.l.b16 %v1876
        %v1897 = vunpack.c.h.b16 %v1876
        %v1898 = vunpack.c.l.b16 %v1877
        %v1899 = vunpack.c.h.b16 %v1877
        %v1900 = vunpack.c.l.b16 %v1878
        %v1901 = vunpack.c.h.b16 %v1878
        %v1902 = vunpack.c.l.b16 %v1879
        %v1903 = vunpack.c.h.b16 %v1879
        %v1904 = vpack.c.b16 %v1888, %v1888
        %v1905 = vpack.c.b16 %v1889, %v1889
        %v1906 = vpack.c.b16 %v1890, %v1890
        %v1907 = vpack.c.b16 %v1891, %v1891
        %v1908 = vpack.c.b16 %v1892, %v1892
        %v1909 = vpack.c.b16 %v1893, %v1893
        %v1910 = vpack.c.b16 %v1894, %v1894
        %v1911 = vpack.c.b16 %v1895, %v1895
        %v1912 = vpack.c.b16 %v1896, %v1896
        %v1913 = vpack.c.b16 %v1897, %v1897
        %v1914 = vpack.c.b16 %v1898, %v1898
        %v1915 = vpack.c.b16 %v1899, %v1899
        %v1916 = vpack.c.b16 %v1900, %v1900
        %v1917 = vpack.c.b16 %v1901, %v1901
        %v1918 = vpack.c.b16 %v1902, %v1902
        %v1919 = vpack.c.b16 %v1903, %v1903
        %1920 = vrot.lane.b32.xlu0 %v1904, 80
        %v1921 = vpop.permute.xlu0 %1920
        %1922 = vrot.lane.b32.xlu0 %v1905, 80
        %v1923 = vpop.permute.xlu0 %1922
        %1924 = vrot.lane.b32.xlu0 %v1906, 80
        %v1925 = vpop.permute.xlu0 %1924
        %1926 = vrot.lane.b32.xlu0 %v1907, 80
        %v1927 = vpop.permute.xlu0 %1926
        %1928 = vrot.lane.b32.xlu0 %v1908, 80
        %v1929 = vpop.permute.xlu0 %1928
        %1930 = vrot.lane.b32.xlu0 %v1909, 80
        %v1931 = vpop.permute.xlu0 %1930
        %1932 = vrot.lane.b32.xlu0 %v1910, 80
        %v1933 = vpop.permute.xlu0 %1932
        %1934 = vrot.lane.b32.xlu0 %v1911, 80
        %v1935 = vpop.permute.xlu0 %1934
        %1936 = vrot.lane.b32.xlu0 %v1912, 80
        %v1937 = vpop.permute.xlu0 %1936
        %1938 = vrot.lane.b32.xlu0 %v1913, 80
        %v1939 = vpop.permute.xlu0 %1938
        %1940 = vrot.lane.b32.xlu0 %v1914, 80
        %v1941 = vpop.permute.xlu0 %1940
        %1942 = vrot.lane.b32.xlu0 %v1915, 80
        %v1943 = vpop.permute.xlu0 %1942
        %1944 = vrot.lane.b32.xlu0 %v1916, 80
        %v1945 = vpop.permute.xlu0 %1944
        %1946 = vrot.lane.b32.xlu0 %v1917, 80
        %v1947 = vpop.permute.xlu0 %1946
        %1948 = vrot.lane.b32.xlu0 %v1918, 80
        %v1949 = vpop.permute.xlu0 %1948
        %1950 = vrot.lane.b32.xlu0 %v1919, 80
        %v1951 = vpop.permute.xlu0 %1950
        %1968 = vst.msk [vmem:[#allocation3] sm:$0xf] %vm807, %v1921
        %1969 = vst.msk [vmem:[#allocation3 + $0x4] sm:$0xf] %vm807, %v1923
        %1970 = vst.msk [vmem:[#allocation3 + $0x8] sm:$0xf] %vm807, %v1925
        %1971 = vst.msk [vmem:[#allocation3 + $0xc] sm:$0xf] %vm807, %v1927
        %1972 = vst.msk [vmem:[#allocation3 + $0x10] sm:$0xf] %vm807, %v1929
        %1973 = vst.msk [vmem:[#allocation3 + $0x14] sm:$0xf] %vm807, %v1931
        %1974 = vst.msk [vmem:[#allocation3 + $0x18] sm:$0xf] %vm807, %v1933
        %1975 = vst.msk [vmem:[#allocation3 + $0x1c] sm:$0xf] %vm807, %v1935
        %1976 = vst.msk [vmem:[#allocation3 + $0x20] sm:$0xf] %vm807, %v1937
        %1977 = vst.msk [vmem:[#allocation3 + $0x24] sm:$0xf] %vm807, %v1939
        %1978 = vst.msk [vmem:[#allocation3 + $0x28] sm:$0xf] %vm807, %v1941
        %1979 = vst.msk [vmem:[#allocation3 + $0x2c] sm:$0xf] %vm807, %v1943
        %1980 = vst.msk [vmem:[#allocation3 + $0x30] sm:$0xf] %vm807, %v1945
        %1981 = vst.msk [vmem:[#allocation3 + $0x34] sm:$0xf] %vm807, %v1947
        %1982 = vst.msk [vmem:[#allocation3 + $0x38] sm:$0xf] %vm807, %v1949
        %1983 = vst.msk [vmem:[#allocation3 + $0x3c] sm:$0xf] %vm807, %v1951
        %1984 = vrot.lane.b32.xlu0 %v731, 56
        %v1985 = vpop.permute.xlu0 %1984
        %1986 = vrot.lane.b32.xlu0 %v732, 56
        %v1987 = vpop.permute.xlu0 %1986
        %1988 = vrot.lane.b32.xlu0 %v733, 56
        %v1989 = vpop.permute.xlu0 %1988
        %1990 = vrot.lane.b32.xlu0 %v734, 56
        %v1991 = vpop.permute.xlu0 %1990
        %1992 = vrot.lane.b32.xlu0 %v735, 56
        %v1993 = vpop.permute.xlu0 %1992
        %1994 = vrot.lane.b32.xlu0 %v736, 56
        %v1995 = vpop.permute.xlu0 %1994
        %1996 = vrot.lane.b32.xlu0 %v737, 56
        %v1997 = vpop.permute.xlu0 %1996
        %1998 = vrot.lane.b32.xlu0 %v738, 56
        %v1999 = vpop.permute.xlu0 %1998
        %2000 = vrot.lane.b32.xlu0 %v739, 56
        %v2001 = vpop.permute.xlu0 %2000
        %2002 = vrot.lane.b32.xlu0 %v740, 56
        %v2003 = vpop.permute.xlu0 %2002
        %2004 = vrot.lane.b32.xlu0 %v741, 56
        %v2005 = vpop.permute.xlu0 %2004
        %2006 = vrot.lane.b32.xlu0 %v742, 56
        %v2007 = vpop.permute.xlu0 %2006
        %2008 = vrot.lane.b32.xlu0 %v743, 56
        %v2009 = vpop.permute.xlu0 %2008
        %2010 = vrot.lane.b32.xlu0 %v744, 56
        %v2011 = vpop.permute.xlu0 %2010
        %2012 = vrot.lane.b32.xlu0 %v745, 56
        %v2013 = vpop.permute.xlu0 %2012
        %2014 = vrot.lane.b32.xlu0 %v746, 56
        %v2015 = vpop.permute.xlu0 %2014
        %v2032 = vmul.f32 %v554, %v1985
        %v2033 = vmul.f32 %v557, %v1987
        %v2034 = vmul.f32 %v562, %v1989
        %v2035 = vmul.f32 %v565, %v1991
        %v2036 = vmul.f32 %v570, %v1993
        %v2037 = vmul.f32 %v573, %v1995
        %v2038 = vmul.f32 %v578, %v1997
        %v2039 = vmul.f32 %v581, %v1999
        %v2040 = vmul.f32 %v586, %v2001
        %v2041 = vmul.f32 %v589, %v2003
        %v2042 = vmul.f32 %v594, %v2005
        %v2043 = vmul.f32 %v597, %v2007
        %v2044 = vmul.f32 %v602, %v2009
        %v2045 = vmul.f32 %v605, %v2011
        %v2046 = vmul.f32 %v610, %v2013
        %v2047 = vmul.f32 %v613, %v2015
        %2048 = vrot.lane.b32.xlu0 %v763, 48
        %v2049 = vpop.permute.xlu0 %2048
        %2050 = vrot.lane.b32.xlu0 %v764, 48
        %v2051 = vpop.permute.xlu0 %2050
        %2052 = vrot.lane.b32.xlu0 %v765, 48
        %v2053 = vpop.permute.xlu0 %2052
        %2054 = vrot.lane.b32.xlu0 %v766, 48
        %v2055 = vpop.permute.xlu0 %2054
        %2056 = vrot.lane.b32.xlu0 %v767, 48
        %v2057 = vpop.permute.xlu0 %2056
        %2058 = vrot.lane.b32.xlu0 %v768, 48
        %v2059 = vpop.permute.xlu0 %2058
        %2060 = vrot.lane.b32.xlu0 %v769, 48
        %v2061 = vpop.permute.xlu0 %2060
        %2062 = vrot.lane.b32.xlu0 %v770, 48
        %v2063 = vpop.permute.xlu0 %2062
        %2064 = vrot.lane.b32.xlu0 %v771, 48
        %v2065 = vpop.permute.xlu0 %2064
        %2066 = vrot.lane.b32.xlu0 %v772, 48
        %v2067 = vpop.permute.xlu0 %2066
        %2068 = vrot.lane.b32.xlu0 %v773, 48
        %v2069 = vpop.permute.xlu0 %2068
        %2070 = vrot.lane.b32.xlu0 %v774, 48
        %v2071 = vpop.permute.xlu0 %2070
        %2072 = vrot.lane.b32.xlu0 %v775, 48
        %v2073 = vpop.permute.xlu0 %2072
        %2074 = vrot.lane.b32.xlu0 %v776, 48
        %v2075 = vpop.permute.xlu0 %2074
        %2076 = vrot.lane.b32.xlu0 %v777, 48
        %v2077 = vpop.permute.xlu0 %2076
        %2078 = vrot.lane.b32.xlu0 %v778, 48
        %v2079 = vpop.permute.xlu0 %2078
        %v2096 = vmul.f32 %v554, %v2049
        %v2097 = vmul.f32 %v557, %v2051
        %v2098 = vmul.f32 %v562, %v2053
        %v2099 = vmul.f32 %v565, %v2055
        %v2100 = vmul.f32 %v570, %v2057
        %v2101 = vmul.f32 %v573, %v2059
        %v2102 = vmul.f32 %v578, %v2061
        %v2103 = vmul.f32 %v581, %v2063
        %v2104 = vmul.f32 %v586, %v2065
        %v2105 = vmul.f32 %v589, %v2067
        %v2106 = vmul.f32 %v594, %v2069
        %v2107 = vmul.f32 %v597, %v2071
        %v2108 = vmul.f32 %v602, %v2073
        %v2109 = vmul.f32 %v605, %v2075
        %v2110 = vmul.f32 %v610, %v2077
        %v2111 = vmul.f32 %v613, %v2079
        %2128 = vrot.lane.b32.xlu0 %v2096, 8
        %v2129 = vpop.permute.xlu0 %2128
        %2130 = vrot.lane.b32.xlu0 %v2097, 8
        %v2131 = vpop.permute.xlu0 %2130
        %2132 = vrot.lane.b32.xlu0 %v2098, 8
        %v2133 = vpop.permute.xlu0 %2132
        %2134 = vrot.lane.b32.xlu0 %v2099, 8
        %v2135 = vpop.permute.xlu0 %2134
        %2136 = vrot.lane.b32.xlu0 %v2100, 8
        %v2137 = vpop.permute.xlu0 %2136
        %2138 = vrot.lane.b32.xlu0 %v2101, 8
        %v2139 = vpop.permute.xlu0 %2138
        %2140 = vrot.lane.b32.xlu0 %v2102, 8
        %v2141 = vpop.permute.xlu0 %2140
        %2142 = vrot.lane.b32.xlu0 %v2103, 8
        %v2143 = vpop.permute.xlu0 %2142
        %2144 = vrot.lane.b32.xlu0 %v2104, 8
        %v2145 = vpop.permute.xlu0 %2144
        %2146 = vrot.lane.b32.xlu0 %v2105, 8
        %v2147 = vpop.permute.xlu0 %2146
        %2148 = vrot.lane.b32.xlu0 %v2106, 8
        %v2149 = vpop.permute.xlu0 %2148
        %2150 = vrot.lane.b32.xlu0 %v2107, 8
        %v2151 = vpop.permute.xlu0 %2150
        %2152 = vrot.lane.b32.xlu0 %v2108, 8
        %v2153 = vpop.permute.xlu0 %2152
        %2154 = vrot.lane.b32.xlu0 %v2109, 8
        %v2155 = vpop.permute.xlu0 %2154
        %2156 = vrot.lane.b32.xlu0 %v2110, 8
        %v2157 = vpop.permute.xlu0 %2156
        %2158 = vrot.lane.b32.xlu0 %v2111, 8
        %v2159 = vpop.permute.xlu0 %2158
        %v2176 = vadd.f32 %v2032, %v2129
        %v2177 = vadd.f32 %v2033, %v2131
        %v2178 = vadd.f32 %v2034, %v2133
        %v2179 = vadd.f32 %v2035, %v2135
        %v2180 = vadd.f32 %v2036, %v2137
        %v2181 = vadd.f32 %v2037, %v2139
        %v2182 = vadd.f32 %v2038, %v2141
        %v2183 = vadd.f32 %v2039, %v2143
        %v2184 = vadd.f32 %v2040, %v2145
        %v2185 = vadd.f32 %v2041, %v2147
        %v2186 = vadd.f32 %v2042, %v2149
        %v2187 = vadd.f32 %v2043, %v2151
        %v2188 = vadd.f32 %v2044, %v2153
        %v2189 = vadd.f32 %v2045, %v2155
        %v2190 = vadd.f32 %v2046, %v2157
        %v2191 = vadd.f32 %v2047, %v2159
        %v2192 = vpack.c.bf16 %v2177, %v2176
        %v2193 = vpack.c.bf16 %v2179, %v2178
        %v2194 = vpack.c.bf16 %v2181, %v2180
        %v2195 = vpack.c.bf16 %v2183, %v2182
        %v2196 = vpack.c.bf16 %v2185, %v2184
        %v2197 = vpack.c.bf16 %v2187, %v2186
        %v2198 = vpack.c.bf16 %v2189, %v2188
        %v2199 = vpack.c.bf16 %v2191, %v2190
        %v2208 = vunpack.c.l.b16 %v2192
        %v2209 = vunpack.c.h.b16 %v2192
        %v2210 = vunpack.c.l.b16 %v2193
        %v2211 = vunpack.c.h.b16 %v2193
        %v2212 = vunpack.c.l.b16 %v2194
        %v2213 = vunpack.c.h.b16 %v2194
        %v2214 = vunpack.c.l.b16 %v2195
        %v2215 = vunpack.c.h.b16 %v2195
        %v2216 = vunpack.c.l.b16 %v2196
        %v2217 = vunpack.c.h.b16 %v2196
        %v2218 = vunpack.c.l.b16 %v2197
        %v2219 = vunpack.c.h.b16 %v2197
        %v2220 = vunpack.c.l.b16 %v2198
        %v2221 = vunpack.c.h.b16 %v2198
        %v2222 = vunpack.c.l.b16 %v2199
        %v2223 = vunpack.c.h.b16 %v2199
        %v2224 = vpack.c.b16 %v2208, %v2208
        %v2225 = vpack.c.b16 %v2209, %v2209
        %v2226 = vpack.c.b16 %v2210, %v2210
        %v2227 = vpack.c.b16 %v2211, %v2211
        %v2228 = vpack.c.b16 %v2212, %v2212
        %v2229 = vpack.c.b16 %v2213, %v2213
        %v2230 = vpack.c.b16 %v2214, %v2214
        %v2231 = vpack.c.b16 %v2215, %v2215
        %v2232 = vpack.c.b16 %v2216, %v2216
        %v2233 = vpack.c.b16 %v2217, %v2217
        %v2234 = vpack.c.b16 %v2218, %v2218
        %v2235 = vpack.c.b16 %v2219, %v2219
        %v2236 = vpack.c.b16 %v2220, %v2220
        %v2237 = vpack.c.b16 %v2221, %v2221
        %v2238 = vpack.c.b16 %v2222, %v2222
        %v2239 = vpack.c.b16 %v2223, %v2223
        %2240 = vrot.lane.b32.xlu0 %v2224, 80
        %v2241 = vpop.permute.xlu0 %2240
        %2242 = vrot.lane.b32.xlu0 %v2225, 80
        %v2243 = vpop.permute.xlu0 %2242
        %2244 = vrot.lane.b32.xlu0 %v2226, 80
        %v2245 = vpop.permute.xlu0 %2244
        %2246 = vrot.lane.b32.xlu0 %v2227, 80
        %v2247 = vpop.permute.xlu0 %2246
        %2248 = vrot.lane.b32.xlu0 %v2228, 80
        %v2249 = vpop.permute.xlu0 %2248
        %2250 = vrot.lane.b32.xlu0 %v2229, 80
        %v2251 = vpop.permute.xlu0 %2250
        %2252 = vrot.lane.b32.xlu0 %v2230, 80
        %v2253 = vpop.permute.xlu0 %2252
        %2254 = vrot.lane.b32.xlu0 %v2231, 80
        %v2255 = vpop.permute.xlu0 %2254
        %2256 = vrot.lane.b32.xlu0 %v2232, 80
        %v2257 = vpop.permute.xlu0 %2256
        %2258 = vrot.lane.b32.xlu0 %v2233, 80
        %v2259 = vpop.permute.xlu0 %2258
        %2260 = vrot.lane.b32.xlu0 %v2234, 80
        %v2261 = vpop.permute.xlu0 %2260
        %2262 = vrot.lane.b32.xlu0 %v2235, 80
        %v2263 = vpop.permute.xlu0 %2262
        %2264 = vrot.lane.b32.xlu0 %v2236, 80
        %v2265 = vpop.permute.xlu0 %2264
        %2266 = vrot.lane.b32.xlu0 %v2237, 80
        %v2267 = vpop.permute.xlu0 %2266
        %2268 = vrot.lane.b32.xlu0 %v2238, 80
        %v2269 = vpop.permute.xlu0 %2268
        %2270 = vrot.lane.b32.xlu0 %v2239, 80
        %v2271 = vpop.permute.xlu0 %2270
        %2288 = vst.msk [vmem:[#allocation3] sm:$0xf] %vm821, %v2241
        %2289 = vst.msk [vmem:[#allocation3 + $0x4] sm:$0xf] %vm821, %v2243
        %2290 = vst.msk [vmem:[#allocation3 + $0x8] sm:$0xf] %vm821, %v2245
        %2291 = vst.msk [vmem:[#allocation3 + $0xc] sm:$0xf] %vm821, %v2247
        %2292 = vst.msk [vmem:[#allocation3 + $0x10] sm:$0xf] %vm821, %v2249
        %2293 = vst.msk [vmem:[#allocation3 + $0x14] sm:$0xf] %vm821, %v2251
        %2294 = vst.msk [vmem:[#allocation3 + $0x18] sm:$0xf] %vm821, %v2253
        %2295 = vst.msk [vmem:[#allocation3 + $0x1c] sm:$0xf] %vm821, %v2255
        %2296 = vst.msk [vmem:[#allocation3 + $0x20] sm:$0xf] %vm821, %v2257
        %2297 = vst.msk [vmem:[#allocation3 + $0x24] sm:$0xf] %vm821, %v2259
        %2298 = vst.msk [vmem:[#allocation3 + $0x28] sm:$0xf] %vm821, %v2261
        %2299 = vst.msk [vmem:[#allocation3 + $0x2c] sm:$0xf] %vm821, %v2263
        %2300 = vst.msk [vmem:[#allocation3 + $0x30] sm:$0xf] %vm821, %v2265
        %2301 = vst.msk [vmem:[#allocation3 + $0x34] sm:$0xf] %vm821, %v2267
        %2302 = vst.msk [vmem:[#allocation3 + $0x38] sm:$0xf] %vm821, %v2269
        %2303 = vst.msk [vmem:[#allocation3 + $0x3c] sm:$0xf] %vm821, %v2271
        %v2304 = vld [vmem:[#allocation2] sm:$0xf]
        %v2305 = vld [vmem:[#allocation3] sm:$0xf]
        %v2306 = vld [vmem:[#allocation3 + $0x4] sm:$0xf]
        %v2307 = vld [vmem:[#allocation3 + $0x8] sm:$0xf]
        %v2308 = vld [vmem:[#allocation3 + $0xc] sm:$0xf]
        %v2309 = vld [vmem:[#allocation3 + $0x10] sm:$0xf]
        %v2310 = vld [vmem:[#allocation3 + $0x14] sm:$0xf]
        %v2311 = vld [vmem:[#allocation3 + $0x18] sm:$0xf]
        %v2312 = vld [vmem:[#allocation3 + $0x1c] sm:$0xf]
        %v2313 = vld [vmem:[#allocation3 + $0x20] sm:$0xf]
        %v2314 = vld [vmem:[#allocation3 + $0x24] sm:$0xf]
        %v2315 = vld [vmem:[#allocation3 + $0x28] sm:$0xf]
        %v2316 = vld [vmem:[#allocation3 + $0x2c] sm:$0xf]
        %v2317 = vld [vmem:[#allocation3 + $0x30] sm:$0xf]
        %v2318 = vld [vmem:[#allocation3 + $0x34] sm:$0xf]
        %v2319 = vld [vmem:[#allocation3 + $0x38] sm:$0xf]
        %v2320 = vld [vmem:[#allocation3 + $0x3c] sm:$0xf]
        %v2337 = vunpack.c.l.b16 %v2305
        %v2338 = vunpack.c.l.b16 %v2306
        %v2339 = vunpack.c.l.b16 %v2307
        %v2340 = vunpack.c.l.b16 %v2308
        %v2341 = vunpack.c.l.b16 %v2309
        %v2342 = vunpack.c.l.b16 %v2310
        %v2343 = vunpack.c.l.b16 %v2311
        %v2344 = vunpack.c.l.b16 %v2312
        %v2345 = vunpack.c.l.b16 %v2313
        %v2346 = vunpack.c.l.b16 %v2314
        %v2347 = vunpack.c.l.b16 %v2315
        %v2348 = vunpack.c.l.b16 %v2316
        %v2349 = vunpack.c.l.b16 %v2317
        %v2350 = vunpack.c.l.b16 %v2318
        %v2351 = vunpack.c.l.b16 %v2319
        %v2352 = vunpack.c.l.b16 %v2320
        %v2353 = vpack.c.b16 %v2338, %v2337
        %v2354 = vpack.c.b16 %v2340, %v2339
        %v2355 = vpack.c.b16 %v2342, %v2341
        %v2356 = vpack.c.b16 %v2344, %v2343
        %v2357 = vpack.c.b16 %v2346, %v2345
        %v2358 = vpack.c.b16 %v2348, %v2347
        %v2359 = vpack.c.b16 %v2350, %v2349
        %v2360 = vpack.c.b16 %v2352, %v2351
        %v2362 = vsel %vm1552, %v2304, 0
        %v2365 = vsel %vm1552, %v2353, 0
        %v2368 = vsel %vm1552, %v2354, 0
        %v2371 = vsel %vm1552, %v2355, 0
        %v2374 = vsel %vm1552, %v2356, 0
        %v2377 = vsel %vm1552, %v2357, 0
        %v2380 = vsel %vm1552, %v2358, 0
        %v2383 = vsel %vm1552, %v2359, 0
        %v2386 = vsel %vm1552, %v2360, 0
        %2388 = vmatprep.subr.bf16.mxu0 0
        %2389 = vmatpush1.bf16.xpose.msra.mxu0 %v2386
        %2390 = vmatprep.subr.bf16.mxu0 0
        %2391 = vmatpush1.bf16.xpose.msra.mxu0 %v2383
        %2392 = vmatprep.subr.bf16.mxu0 0
        %2393 = vmatpush1.bf16.xpose.msra.mxu0 %v2380
        %2394 = vmatprep.subr.bf16.mxu0 0
        %2395 = vmatpush1.bf16.xpose.msra.mxu0 %v2377
        %2396 = vmatprep.subr.bf16.mxu0 0
        %2397 = vmatpush1.bf16.xpose.msra.mxu0 %v2374
        %2398 = vmatprep.subr.bf16.mxu0 0
        %2399 = vmatpush1.bf16.xpose.msra.mxu0 %v2371
        %2400 = vmatprep.subr.bf16.mxu0 0
        %2401 = vmatpush1.bf16.xpose.msra.mxu0 %v2368
        %2402 = vmatprep.subr.bf16.mxu0 0
        %2403 = vmatpush1.bf16.xpose.msra.mxu0 %v2365
        %2404 = vmatprep.subr.bf16.mxu0 0
        %2405 = vmatpush2.bf16.xpose.msra.mxu0 0
        %2406 = vmatprep.subr.bf16.mxu0 0
        %2407 = vmatpush2.bf16.xpose.msra.mxu0 0
        %2408 = vmatprep.subr.bf16.mxu0 0
        %2409 = vmatpush2.bf16.xpose.msra.mxu0 0
        %2410 = vmatprep.subr.bf16.mxu0 0
        %2411 = vmatpush2.bf16.xpose.msra.mxu0 0
        %2412 = vmatprep.subr.bf16.mxu0 0
        %2413 = vmatpush2.bf16.xpose.msra.mxu0 0
        %2414 = vmatprep.subr.bf16.mxu0 0
        %2415 = vmatpush2.bf16.xpose.msra.mxu0 0
        %2416 = vmatprep.subr.bf16.mxu0 0
        %2417 = vmatpush2.bf16.xpose.msra.mxu0 0
        %2418 = vmatprep.subr.bf16.mxu0 0
        %2419 = vmatpush2.bf16.xpose.msra.mxu0 0
        %2420 = vmatprep.mubr.bf16.mxu0 0
        %2421 = vmatmul.mubr.bf16.gmra.mxu0 %v2362
        %v2422 = vpop.f32.mrf.mxu0
        %v2423 = vadd.f32 0.0, %v2422
        %v2424 = vpop.f32.mrf.mxu0
        %v2425 = vpop.f32.mrf.mxu0
        %v2426 = vpop.f32.mrf.mxu0
        %2427 = vdwg.mxu0
        %v2428 = vsub.f32 %v2423, %v794
        %s2429 = scalar_lea.vmem %s391, 8 [#allocation4]
        %2430 = vst [vmem:[%s2429] sm:$0xff] %v2428
        %2431 = vrot.lane.b32.xlu0 %v633, 64
        %v2432 = vpop.permute.xlu0 %2431
        %v2434 = vmul.f32 %v554, %v2432
        %2435 = vrot.lane.b32.xlu0 %v634, 72
        %v2436 = vpop.permute.xlu0 %2435
        %v2438 = vmul.f32 %v554, %v2436
        %2440 = vrot.lane.b32.xlu0 %v2438, 120
        %v2441 = vpop.permute.xlu0 %2440
        %v2443 = vsub.f32 %v2434, %v2441
        %v2444 = vpack.c.bf16 %v2443, %v2443
        %v2446 = vunpack.c.l.b16 %v2444
        %v2447 = vpack.c.b16 %v2446, %v2446
        %2448 = vrot.lane.b32.xlu0 %v2447, 64
        %v2449 = vpop.permute.xlu0 %2448
        %2451 = vst.msk [vmem:[#allocation2] sm:$0xf] %vm807, %v2449
        %2452 = vrot.lane.b32.xlu0 %v633, 72
        %v2453 = vpop.permute.xlu0 %2452
        %v2455 = vmul.f32 %v554, %v2453
        %2456 = vrot.lane.b32.xlu0 %v634, 64
        %v2457 = vpop.permute.xlu0 %2456
        %v2459 = vmul.f32 %v554, %v2457
        %2461 = vrot.lane.b32.xlu0 %v2459, 8
        %v2462 = vpop.permute.xlu0 %2461
        %v2464 = vadd.f32 %v2455, %v2462
        %v2465 = vpack.c.bf16 %v2464, %v2464
        %v2467 = vunpack.c.l.b16 %v2465
        %v2468 = vpack.c.b16 %v2467, %v2467
        %2469 = vrot.lane.b32.xlu0 %v2468, 64
        %v2470 = vpop.permute.xlu0 %2469
        %2472 = vst.msk [vmem:[#allocation2] sm:$0xf] %vm821, %v2470
        %2473 = vrot.lane.b32.xlu0 %v731, 80
        %v2474 = vpop.permute.xlu0 %2473
        %2475 = vrot.lane.b32.xlu0 %v732, 80
        %v2476 = vpop.permute.xlu0 %2475
        %2477 = vrot.lane.b32.xlu0 %v733, 80
        %v2478 = vpop.permute.xlu0 %2477
        %2479 = vrot.lane.b32.xlu0 %v734, 80
        %v2480 = vpop.permute.xlu0 %2479
        %2481 = vrot.lane.b32.xlu0 %v735, 80
        %v2482 = vpop.permute.xlu0 %2481
        %2483 = vrot.lane.b32.xlu0 %v736, 80
        %v2484 = vpop.permute.xlu0 %2483
        %2485 = vrot.lane.b32.xlu0 %v737, 80
        %v2486 = vpop.permute.xlu0 %2485
        %2487 = vrot.lane.b32.xlu0 %v738, 80
        %v2488 = vpop.permute.xlu0 %2487
        %2489 = vrot.lane.b32.xlu0 %v739, 80
        %v2490 = vpop.permute.xlu0 %2489
        %2491 = vrot.lane.b32.xlu0 %v740, 80
        %v2492 = vpop.permute.xlu0 %2491
        %2493 = vrot.lane.b32.xlu0 %v741, 80
        %v2494 = vpop.permute.xlu0 %2493
        %2495 = vrot.lane.b32.xlu0 %v742, 80
        %v2496 = vpop.permute.xlu0 %2495
        %2497 = vrot.lane.b32.xlu0 %v743, 80
        %v2498 = vpop.permute.xlu0 %2497
        %2499 = vrot.lane.b32.xlu0 %v744, 80
        %v2500 = vpop.permute.xlu0 %2499
        %2501 = vrot.lane.b32.xlu0 %v745, 80
        %v2502 = vpop.permute.xlu0 %2501
        %2503 = vrot.lane.b32.xlu0 %v746, 80
        %v2504 = vpop.permute.xlu0 %2503
        %v2521 = vmul.f32 %v554, %v2474
        %v2522 = vmul.f32 %v557, %v2476
        %v2523 = vmul.f32 %v562, %v2478
        %v2524 = vmul.f32 %v565, %v2480
        %v2525 = vmul.f32 %v570, %v2482
        %v2526 = vmul.f32 %v573, %v2484
        %v2527 = vmul.f32 %v578, %v2486
        %v2528 = vmul.f32 %v581, %v2488
        %v2529 = vmul.f32 %v586, %v2490
        %v2530 = vmul.f32 %v589, %v2492
        %v2531 = vmul.f32 %v594, %v2494
        %v2532 = vmul.f32 %v597, %v2496
        %v2533 = vmul.f32 %v602, %v2498
        %v2534 = vmul.f32 %v605, %v2500
        %v2535 = vmul.f32 %v610, %v2502
        %v2536 = vmul.f32 %v613, %v2504
        %2537 = vrot.lane.b32.xlu0 %v763, 88
        %v2538 = vpop.permute.xlu0 %2537
        %2539 = vrot.lane.b32.xlu0 %v764, 88
        %v2540 = vpop.permute.xlu0 %2539
        %2541 = vrot.lane.b32.xlu0 %v765, 88
        %v2542 = vpop.permute.xlu0 %2541
        %2543 = vrot.lane.b32.xlu0 %v766, 88
        %v2544 = vpop.permute.xlu0 %2543
        %2545 = vrot.lane.b32.xlu0 %v767, 88
        %v2546 = vpop.permute.xlu0 %2545
        %2547 = vrot.lane.b32.xlu0 %v768, 88
        %v2548 = vpop.permute.xlu0 %2547
        %2549 = vrot.lane.b32.xlu0 %v769, 88
        %v2550 = vpop.permute.xlu0 %2549
        %2551 = vrot.lane.b32.xlu0 %v770, 88
        %v2552 = vpop.permute.xlu0 %2551
        %2553 = vrot.lane.b32.xlu0 %v771, 88
        %v2554 = vpop.permute.xlu0 %2553
        %2555 = vrot.lane.b32.xlu0 %v772, 88
        %v2556 = vpop.permute.xlu0 %2555
        %2557 = vrot.lane.b32.xlu0 %v773, 88
        %v2558 = vpop.permute.xlu0 %2557
        %2559 = vrot.lane.b32.xlu0 %v774, 88
        %v2560 = vpop.permute.xlu0 %2559
        %2561 = vrot.lane.b32.xlu0 %v775, 88
        %v2562 = vpop.permute.xlu0 %2561
        %2563 = vrot.lane.b32.xlu0 %v776, 88
        %v2564 = vpop.permute.xlu0 %2563
        %2565 = vrot.lane.b32.xlu0 %v777, 88
        %v2566 = vpop.permute.xlu0 %2565
        %2567 = vrot.lane.b32.xlu0 %v778, 88
        %v2568 = vpop.permute.xlu0 %2567
        %v2585 = vmul.f32 %v554, %v2538
        %v2586 = vmul.f32 %v557, %v2540
        %v2587 = vmul.f32 %v562, %v2542
        %v2588 = vmul.f32 %v565, %v2544
        %v2589 = vmul.f32 %v570, %v2546
        %v2590 = vmul.f32 %v573, %v2548
        %v2591 = vmul.f32 %v578, %v2550
        %v2592 = vmul.f32 %v581, %v2552
        %v2593 = vmul.f32 %v586, %v2554
        %v2594 = vmul.f32 %v589, %v2556
        %v2595 = vmul.f32 %v594, %v2558
        %v2596 = vmul.f32 %v597, %v2560
        %v2597 = vmul.f32 %v602, %v2562
        %v2598 = vmul.f32 %v605, %v2564
        %v2599 = vmul.f32 %v610, %v2566
        %v2600 = vmul.f32 %v613, %v2568
        %2617 = vrot.lane.b32.xlu0 %v2585, 120
        %v2618 = vpop.permute.xlu0 %2617
        %2619 = vrot.lane.b32.xlu0 %v2586, 120
        %v2620 = vpop.permute.xlu0 %2619
        %2621 = vrot.lane.b32.xlu0 %v2587, 120
        %v2622 = vpop.permute.xlu0 %2621
        %2623 = vrot.lane.b32.xlu0 %v2588, 120
        %v2624 = vpop.permute.xlu0 %2623
        %2625 = vrot.lane.b32.xlu0 %v2589, 120
        %v2626 = vpop.permute.xlu0 %2625
        %2627 = vrot.lane.b32.xlu0 %v2590, 120
        %v2628 = vpop.permute.xlu0 %2627
        %2629 = vrot.lane.b32.xlu0 %v2591, 120
        %v2630 = vpop.permute.xlu0 %2629
        %2631 = vrot.lane.b32.xlu0 %v2592, 120
        %v2632 = vpop.permute.xlu0 %2631
        %2633 = vrot.lane.b32.xlu0 %v2593, 120
        %v2634 = vpop.permute.xlu0 %2633
        %2635 = vrot.lane.b32.xlu0 %v2594, 120
        %v2636 = vpop.permute.xlu0 %2635
        %2637 = vrot.lane.b32.xlu0 %v2595, 120
        %v2638 = vpop.permute.xlu0 %2637
        %2639 = vrot.lane.b32.xlu0 %v2596, 120
        %v2640 = vpop.permute.xlu0 %2639
        %2641 = vrot.lane.b32.xlu0 %v2597, 120
        %v2642 = vpop.permute.xlu0 %2641
        %2643 = vrot.lane.b32.xlu0 %v2598, 120
        %v2644 = vpop.permute.xlu0 %2643
        %2645 = vrot.lane.b32.xlu0 %v2599, 120
        %v2646 = vpop.permute.xlu0 %2645
        %2647 = vrot.lane.b32.xlu0 %v2600, 120
        %v2648 = vpop.permute.xlu0 %2647
        %v2665 = vsub.f32 %v2521, %v2618
        %v2666 = vsub.f32 %v2522, %v2620
        %v2667 = vsub.f32 %v2523, %v2622
        %v2668 = vsub.f32 %v2524, %v2624
        %v2669 = vsub.f32 %v2525, %v2626
        %v2670 = vsub.f32 %v2526, %v2628
        %v2671 = vsub.f32 %v2527, %v2630
        %v2672 = vsub.f32 %v2528, %v2632
        %v2673 = vsub.f32 %v2529, %v2634
        %v2674 = vsub.f32 %v2530, %v2636
        %v2675 = vsub.f32 %v2531, %v2638
        %v2676 = vsub.f32 %v2532, %v2640
        %v2677 = vsub.f32 %v2533, %v2642
        %v2678 = vsub.f32 %v2534, %v2644
        %v2679 = vsub.f32 %v2535, %v2646
        %v2680 = vsub.f32 %v2536, %v2648
        %v2681 = vpack.c.bf16 %v2666, %v2665
        %v2682 = vpack.c.bf16 %v2668, %v2667
        %v2683 = vpack.c.bf16 %v2670, %v2669
        %v2684 = vpack.c.bf16 %v2672, %v2671
        %v2685 = vpack.c.bf16 %v2674, %v2673
        %v2686 = vpack.c.bf16 %v2676, %v2675
        %v2687 = vpack.c.bf16 %v2678, %v2677
        %v2688 = vpack.c.bf16 %v2680, %v2679
        %v2697 = vunpack.c.l.b16 %v2681
        %v2698 = vunpack.c.h.b16 %v2681
        %v2699 = vunpack.c.l.b16 %v2682
        %v2700 = vunpack.c.h.b16 %v2682
        %v2701 = vunpack.c.l.b16 %v2683
        %v2702 = vunpack.c.h.b16 %v2683
        %v2703 = vunpack.c.l.b16 %v2684
        %v2704 = vunpack.c.h.b16 %v2684
        %v2705 = vunpack.c.l.b16 %v2685
        %v2706 = vunpack.c.h.b16 %v2685
        %v2707 = vunpack.c.l.b16 %v2686
        %v2708 = vunpack.c.h.b16 %v2686
        %v2709 = vunpack.c.l.b16 %v2687
        %v2710 = vunpack.c.h.b16 %v2687
        %v2711 = vunpack.c.l.b16 %v2688
        %v2712 = vunpack.c.h.b16 %v2688
        %v2713 = vpack.c.b16 %v2697, %v2697
        %v2714 = vpack.c.b16 %v2698, %v2698
        %v2715 = vpack.c.b16 %v2699, %v2699
        %v2716 = vpack.c.b16 %v2700, %v2700
        %v2717 = vpack.c.b16 %v2701, %v2701
        %v2718 = vpack.c.b16 %v2702, %v2702
        %v2719 = vpack.c.b16 %v2703, %v2703
        %v2720 = vpack.c.b16 %v2704, %v2704
        %v2721 = vpack.c.b16 %v2705, %v2705
        %v2722 = vpack.c.b16 %v2706, %v2706
        %v2723 = vpack.c.b16 %v2707, %v2707
        %v2724 = vpack.c.b16 %v2708, %v2708
        %v2725 = vpack.c.b16 %v2709, %v2709
        %v2726 = vpack.c.b16 %v2710, %v2710
        %v2727 = vpack.c.b16 %v2711, %v2711
        %v2728 = vpack.c.b16 %v2712, %v2712
        %2729 = vrot.lane.b32.xlu0 %v2713, 48
        %v2730 = vpop.permute.xlu0 %2729
        %2731 = vrot.lane.b32.xlu0 %v2714, 48
        %v2732 = vpop.permute.xlu0 %2731
        %2733 = vrot.lane.b32.xlu0 %v2715, 48
        %v2734 = vpop.permute.xlu0 %2733
        %2735 = vrot.lane.b32.xlu0 %v2716, 48
        %v2736 = vpop.permute.xlu0 %2735
        %2737 = vrot.lane.b32.xlu0 %v2717, 48
        %v2738 = vpop.permute.xlu0 %2737
        %2739 = vrot.lane.b32.xlu0 %v2718, 48
        %v2740 = vpop.permute.xlu0 %2739
        %2741 = vrot.lane.b32.xlu0 %v2719, 48
        %v2742 = vpop.permute.xlu0 %2741
        %2743 = vrot.lane.b32.xlu0 %v2720, 48
        %v2744 = vpop.permute.xlu0 %2743
        %2745 = vrot.lane.b32.xlu0 %v2721, 48
        %v2746 = vpop.permute.xlu0 %2745
        %2747 = vrot.lane.b32.xlu0 %v2722, 48
        %v2748 = vpop.permute.xlu0 %2747
        %2749 = vrot.lane.b32.xlu0 %v2723, 48
        %v2750 = vpop.permute.xlu0 %2749
        %2751 = vrot.lane.b32.xlu0 %v2724, 48
        %v2752 = vpop.permute.xlu0 %2751
        %2753 = vrot.lane.b32.xlu0 %v2725, 48
        %v2754 = vpop.permute.xlu0 %2753
        %2755 = vrot.lane.b32.xlu0 %v2726, 48
        %v2756 = vpop.permute.xlu0 %2755
        %2757 = vrot.lane.b32.xlu0 %v2727, 48
        %v2758 = vpop.permute.xlu0 %2757
        %2759 = vrot.lane.b32.xlu0 %v2728, 48
        %v2760 = vpop.permute.xlu0 %2759
        %2777 = vst.msk [vmem:[#allocation3] sm:$0xf] %vm807, %v2730
        %2778 = vst.msk [vmem:[#allocation3 + $0x4] sm:$0xf] %vm807, %v2732
        %2779 = vst.msk [vmem:[#allocation3 + $0x8] sm:$0xf] %vm807, %v2734
        %2780 = vst.msk [vmem:[#allocation3 + $0xc] sm:$0xf] %vm807, %v2736
        %2781 = vst.msk [vmem:[#allocation3 + $0x10] sm:$0xf] %vm807, %v2738
        %2782 = vst.msk [vmem:[#allocation3 + $0x14] sm:$0xf] %vm807, %v2740
        %2783 = vst.msk [vmem:[#allocation3 + $0x18] sm:$0xf] %vm807, %v2742
        %2784 = vst.msk [vmem:[#allocation3 + $0x1c] sm:$0xf] %vm807, %v2744
        %2785 = vst.msk [vmem:[#allocation3 + $0x20] sm:$0xf] %vm807, %v2746
        %2786 = vst.msk [vmem:[#allocation3 + $0x24] sm:$0xf] %vm807, %v2748
        %2787 = vst.msk [vmem:[#allocation3 + $0x28] sm:$0xf] %vm807, %v2750
        %2788 = vst.msk [vmem:[#allocation3 + $0x2c] sm:$0xf] %vm807, %v2752
        %2789 = vst.msk [vmem:[#allocation3 + $0x30] sm:$0xf] %vm807, %v2754
        %2790 = vst.msk [vmem:[#allocation3 + $0x34] sm:$0xf] %vm807, %v2756
        %2791 = vst.msk [vmem:[#allocation3 + $0x38] sm:$0xf] %vm807, %v2758
        %2792 = vst.msk [vmem:[#allocation3 + $0x3c] sm:$0xf] %vm807, %v2760
        %2793 = vrot.lane.b32.xlu0 %v731, 88
        %v2794 = vpop.permute.xlu0 %2793
        %2795 = vrot.lane.b32.xlu0 %v732, 88
        %v2796 = vpop.permute.xlu0 %2795
        %2797 = vrot.lane.b32.xlu0 %v733, 88
        %v2798 = vpop.permute.xlu0 %2797
        %2799 = vrot.lane.b32.xlu0 %v734, 88
        %v2800 = vpop.permute.xlu0 %2799
        %2801 = vrot.lane.b32.xlu0 %v735, 88
        %v2802 = vpop.permute.xlu0 %2801
        %2803 = vrot.lane.b32.xlu0 %v736, 88
        %v2804 = vpop.permute.xlu0 %2803
        %2805 = vrot.lane.b32.xlu0 %v737, 88
        %v2806 = vpop.permute.xlu0 %2805
        %2807 = vrot.lane.b32.xlu0 %v738, 88
        %v2808 = vpop.permute.xlu0 %2807
        %2809 = vrot.lane.b32.xlu0 %v739, 88
        %v2810 = vpop.permute.xlu0 %2809
        %2811 = vrot.lane.b32.xlu0 %v740, 88
        %v2812 = vpop.permute.xlu0 %2811
        %2813 = vrot.lane.b32.xlu0 %v741, 88
        %v2814 = vpop.permute.xlu0 %2813
        %2815 = vrot.lane.b32.xlu0 %v742, 88
        %v2816 = vpop.permute.xlu0 %2815
        %2817 = vrot.lane.b32.xlu0 %v743, 88
        %v2818 = vpop.permute.xlu0 %2817
        %2819 = vrot.lane.b32.xlu0 %v744, 88
        %v2820 = vpop.permute.xlu0 %2819
        %2821 = vrot.lane.b32.xlu0 %v745, 88
        %v2822 = vpop.permute.xlu0 %2821
        %2823 = vrot.lane.b32.xlu0 %v746, 88
        %v2824 = vpop.permute.xlu0 %2823
        %v2841 = vmul.f32 %v554, %v2794
        %v2842 = vmul.f32 %v557, %v2796
        %v2843 = vmul.f32 %v562, %v2798
        %v2844 = vmul.f32 %v565, %v2800
        %v2845 = vmul.f32 %v570, %v2802
        %v2846 = vmul.f32 %v573, %v2804
        %v2847 = vmul.f32 %v578, %v2806
        %v2848 = vmul.f32 %v581, %v2808
        %v2849 = vmul.f32 %v586, %v2810
        %v2850 = vmul.f32 %v589, %v2812
        %v2851 = vmul.f32 %v594, %v2814
        %v2852 = vmul.f32 %v597, %v2816
        %v2853 = vmul.f32 %v602, %v2818
        %v2854 = vmul.f32 %v605, %v2820
        %v2855 = vmul.f32 %v610, %v2822
        %v2856 = vmul.f32 %v613, %v2824
        %2857 = vrot.lane.b32.xlu0 %v763, 80
        %v2858 = vpop.permute.xlu0 %2857
        %2859 = vrot.lane.b32.xlu0 %v764, 80
        %v2860 = vpop.permute.xlu0 %2859
        %2861 = vrot.lane.b32.xlu0 %v765, 80
        %v2862 = vpop.permute.xlu0 %2861
        %2863 = vrot.lane.b32.xlu0 %v766, 80
        %v2864 = vpop.permute.xlu0 %2863
        %2865 = vrot.lane.b32.xlu0 %v767, 80
        %v2866 = vpop.permute.xlu0 %2865
        %2867 = vrot.lane.b32.xlu0 %v768, 80
        %v2868 = vpop.permute.xlu0 %2867
        %2869 = vrot.lane.b32.xlu0 %v769, 80
        %v2870 = vpop.permute.xlu0 %2869
        %2871 = vrot.lane.b32.xlu0 %v770, 80
        %v2872 = vpop.permute.xlu0 %2871
        %2873 = vrot.lane.b32.xlu0 %v771, 80
        %v2874 = vpop.permute.xlu0 %2873
        %2875 = vrot.lane.b32.xlu0 %v772, 80
        %v2876 = vpop.permute.xlu0 %2875
        %2877 = vrot.lane.b32.xlu0 %v773, 80
        %v2878 = vpop.permute.xlu0 %2877
        %2879 = vrot.lane.b32.xlu0 %v774, 80
        %v2880 = vpop.permute.xlu0 %2879
        %2881 = vrot.lane.b32.xlu0 %v775, 80
        %v2882 = vpop.permute.xlu0 %2881
        %2883 = vrot.lane.b32.xlu0 %v776, 80
        %v2884 = vpop.permute.xlu0 %2883
        %2885 = vrot.lane.b32.xlu0 %v777, 80
        %v2886 = vpop.permute.xlu0 %2885
        %2887 = vrot.lane.b32.xlu0 %v778, 80
        %v2888 = vpop.permute.xlu0 %2887
        %v2905 = vmul.f32 %v554, %v2858
        %v2906 = vmul.f32 %v557, %v2860
        %v2907 = vmul.f32 %v562, %v2862
        %v2908 = vmul.f32 %v565, %v2864
        %v2909 = vmul.f32 %v570, %v2866
        %v2910 = vmul.f32 %v573, %v2868
        %v2911 = vmul.f32 %v578, %v2870
        %v2912 = vmul.f32 %v581, %v2872
        %v2913 = vmul.f32 %v586, %v2874
        %v2914 = vmul.f32 %v589, %v2876
        %v2915 = vmul.f32 %v594, %v2878
        %v2916 = vmul.f32 %v597, %v2880
        %v2917 = vmul.f32 %v602, %v2882
        %v2918 = vmul.f32 %v605, %v2884
        %v2919 = vmul.f32 %v610, %v2886
        %v2920 = vmul.f32 %v613, %v2888
        %2937 = vrot.lane.b32.xlu0 %v2905, 8
        %v2938 = vpop.permute.xlu0 %2937
        %2939 = vrot.lane.b32.xlu0 %v2906, 8
        %v2940 = vpop.permute.xlu0 %2939
        %2941 = vrot.lane.b32.xlu0 %v2907, 8
        %v2942 = vpop.permute.xlu0 %2941
        %2943 = vrot.lane.b32.xlu0 %v2908, 8
        %v2944 = vpop.permute.xlu0 %2943
        %2945 = vrot.lane.b32.xlu0 %v2909, 8
        %v2946 = vpop.permute.xlu0 %2945
        %2947 = vrot.lane.b32.xlu0 %v2910, 8
        %v2948 = vpop.permute.xlu0 %2947
        %2949 = vrot.lane.b32.xlu0 %v2911, 8
        %v2950 = vpop.permute.xlu0 %2949
        %2951 = vrot.lane.b32.xlu0 %v2912, 8
        %v2952 = vpop.permute.xlu0 %2951
        %2953 = vrot.lane.b32.xlu0 %v2913, 8
        %v2954 = vpop.permute.xlu0 %2953
        %2955 = vrot.lane.b32.xlu0 %v2914, 8
        %v2956 = vpop.permute.xlu0 %2955
        %2957 = vrot.lane.b32.xlu0 %v2915, 8
        %v2958 = vpop.permute.xlu0 %2957
        %2959 = vrot.lane.b32.xlu0 %v2916, 8
        %v2960 = vpop.permute.xlu0 %2959
        %2961 = vrot.lane.b32.xlu0 %v2917, 8
        %v2962 = vpop.permute.xlu0 %2961
        %2963 = vrot.lane.b32.xlu0 %v2918, 8
        %v2964 = vpop.permute.xlu0 %2963
        %2965 = vrot.lane.b32.xlu0 %v2919, 8
        %v2966 = vpop.permute.xlu0 %2965
        %2967 = vrot.lane.b32.xlu0 %v2920, 8
        %v2968 = vpop.permute.xlu0 %2967
        %v2985 = vadd.f32 %v2841, %v2938
        %v2986 = vadd.f32 %v2842, %v2940
        %v2987 = vadd.f32 %v2843, %v2942
        %v2988 = vadd.f32 %v2844, %v2944
        %v2989 = vadd.f32 %v2845, %v2946
        %v2990 = vadd.f32 %v2846, %v2948
        %v2991 = vadd.f32 %v2847, %v2950
        %v2992 = vadd.f32 %v2848, %v2952
        %v2993 = vadd.f32 %v2849, %v2954
        %v2994 = vadd.f32 %v2850, %v2956
        %v2995 = vadd.f32 %v2851, %v2958
        %v2996 = vadd.f32 %v2852, %v2960
        %v2997 = vadd.f32 %v2853, %v2962
        %v2998 = vadd.f32 %v2854, %v2964
        %v2999 = vadd.f32 %v2855, %v2966
        %v3000 = vadd.f32 %v2856, %v2968
        %v3001 = vpack.c.bf16 %v2986, %v2985
        %v3002 = vpack.c.bf16 %v2988, %v2987
        %v3003 = vpack.c.bf16 %v2990, %v2989
        %v3004 = vpack.c.bf16 %v2992, %v2991
        %v3005 = vpack.c.bf16 %v2994, %v2993
        %v3006 = vpack.c.bf16 %v2996, %v2995
        %v3007 = vpack.c.bf16 %v2998, %v2997
        %v3008 = vpack.c.bf16 %v3000, %v2999
        %v3017 = vunpack.c.l.b16 %v3001
        %v3018 = vunpack.c.h.b16 %v3001
        %v3019 = vunpack.c.l.b16 %v3002
        %v3020 = vunpack.c.h.b16 %v3002
        %v3021 = vunpack.c.l.b16 %v3003
        %v3022 = vunpack.c.h.b16 %v3003
        %v3023 = vunpack.c.l.b16 %v3004
        %v3024 = vunpack.c.h.b16 %v3004
        %v3025 = vunpack.c.l.b16 %v3005
        %v3026 = vunpack.c.h.b16 %v3005
        %v3027 = vunpack.c.l.b16 %v3006
        %v3028 = vunpack.c.h.b16 %v3006
        %v3029 = vunpack.c.l.b16 %v3007
        %v3030 = vunpack.c.h.b16 %v3007
        %v3031 = vunpack.c.l.b16 %v3008
        %v3032 = vunpack.c.h.b16 %v3008
        %v3033 = vpack.c.b16 %v3017, %v3017
        %v3034 = vpack.c.b16 %v3018, %v3018
        %v3035 = vpack.c.b16 %v3019, %v3019
        %v3036 = vpack.c.b16 %v3020, %v3020
        %v3037 = vpack.c.b16 %v3021, %v3021
        %v3038 = vpack.c.b16 %v3022, %v3022
        %v3039 = vpack.c.b16 %v3023, %v3023
        %v3040 = vpack.c.b16 %v3024, %v3024
        %v3041 = vpack.c.b16 %v3025, %v3025
        %v3042 = vpack.c.b16 %v3026, %v3026
        %v3043 = vpack.c.b16 %v3027, %v3027
        %v3044 = vpack.c.b16 %v3028, %v3028
        %v3045 = vpack.c.b16 %v3029, %v3029
        %v3046 = vpack.c.b16 %v3030, %v3030
        %v3047 = vpack.c.b16 %v3031, %v3031
        %v3048 = vpack.c.b16 %v3032, %v3032
        %3049 = vrot.lane.b32.xlu0 %v3033, 48
        %v3050 = vpop.permute.xlu0 %3049
        %3051 = vrot.lane.b32.xlu0 %v3034, 48
        %v3052 = vpop.permute.xlu0 %3051
        %3053 = vrot.lane.b32.xlu0 %v3035, 48
        %v3054 = vpop.permute.xlu0 %3053
        %3055 = vrot.lane.b32.xlu0 %v3036, 48
        %v3056 = vpop.permute.xlu0 %3055
        %3057 = vrot.lane.b32.xlu0 %v3037, 48
        %v3058 = vpop.permute.xlu0 %3057
        %3059 = vrot.lane.b32.xlu0 %v3038, 48
        %v3060 = vpop.permute.xlu0 %3059
        %3061 = vrot.lane.b32.xlu0 %v3039, 48
        %v3062 = vpop.permute.xlu0 %3061
        %3063 = vrot.lane.b32.xlu0 %v3040, 48
        %v3064 = vpop.permute.xlu0 %3063
        %3065 = vrot.lane.b32.xlu0 %v3041, 48
        %v3066 = vpop.permute.xlu0 %3065
        %3067 = vrot.lane.b32.xlu0 %v3042, 48
        %v3068 = vpop.permute.xlu0 %3067
        %3069 = vrot.lane.b32.xlu0 %v3043, 48
        %v3070 = vpop.permute.xlu0 %3069
        %3071 = vrot.lane.b32.xlu0 %v3044, 48
        %v3072 = vpop.permute.xlu0 %3071
        %3073 = vrot.lane.b32.xlu0 %v3045, 48
        %v3074 = vpop.permute.xlu0 %3073
        %3075 = vrot.lane.b32.xlu0 %v3046, 48
        %v3076 = vpop.permute.xlu0 %3075
        %3077 = vrot.lane.b32.xlu0 %v3047, 48
        %v3078 = vpop.permute.xlu0 %3077
        %3079 = vrot.lane.b32.xlu0 %v3048, 48
        %v3080 = vpop.permute.xlu0 %3079
        %3097 = vst.msk [vmem:[#allocation3] sm:$0xf] %vm821, %v3050
        %3098 = vst.msk [vmem:[#allocation3 + $0x4] sm:$0xf] %vm821, %v3052
        %3099 = vst.msk [vmem:[#allocation3 + $0x8] sm:$0xf] %vm821, %v3054
        %3100 = vst.msk [vmem:[#allocation3 + $0xc] sm:$0xf] %vm821, %v3056
        %3101 = vst.msk [vmem:[#allocation3 + $0x10] sm:$0xf] %vm821, %v3058
        %3102 = vst.msk [vmem:[#allocation3 + $0x14] sm:$0xf] %vm821, %v3060
        %3103 = vst.msk [vmem:[#allocation3 + $0x18] sm:$0xf] %vm821, %v3062
        %3104 = vst.msk [vmem:[#allocation3 + $0x1c] sm:$0xf] %vm821, %v3064
        %3105 = vst.msk [vmem:[#allocation3 + $0x20] sm:$0xf] %vm821, %v3066
        %3106 = vst.msk [vmem:[#allocation3 + $0x24] sm:$0xf] %vm821, %v3068
        %3107 = vst.msk [vmem:[#allocation3 + $0x28] sm:$0xf] %vm821, %v3070
        %3108 = vst.msk [vmem:[#allocation3 + $0x2c] sm:$0xf] %vm821, %v3072
        %3109 = vst.msk [vmem:[#allocation3 + $0x30] sm:$0xf] %vm821, %v3074
        %3110 = vst.msk [vmem:[#allocation3 + $0x34] sm:$0xf] %vm821, %v3076
        %3111 = vst.msk [vmem:[#allocation3 + $0x38] sm:$0xf] %vm821, %v3078
        %3112 = vst.msk [vmem:[#allocation3 + $0x3c] sm:$0xf] %vm821, %v3080
        %v3113 = vld [vmem:[#allocation2] sm:$0xf]
        %v3114 = vld [vmem:[#allocation3] sm:$0xf]
        %v3115 = vld [vmem:[#allocation3 + $0x4] sm:$0xf]
        %v3116 = vld [vmem:[#allocation3 + $0x8] sm:$0xf]
        %v3117 = vld [vmem:[#allocation3 + $0xc] sm:$0xf]
        %v3118 = vld [vmem:[#allocation3 + $0x10] sm:$0xf]
        %v3119 = vld [vmem:[#allocation3 + $0x14] sm:$0xf]
        %v3120 = vld [vmem:[#allocation3 + $0x18] sm:$0xf]
        %v3121 = vld [vmem:[#allocation3 + $0x1c] sm:$0xf]
        %v3122 = vld [vmem:[#allocation3 + $0x20] sm:$0xf]
        %v3123 = vld [vmem:[#allocation3 + $0x24] sm:$0xf]
        %v3124 = vld [vmem:[#allocation3 + $0x28] sm:$0xf]
        %v3125 = vld [vmem:[#allocation3 + $0x2c] sm:$0xf]
        %v3126 = vld [vmem:[#allocation3 + $0x30] sm:$0xf]
        %v3127 = vld [vmem:[#allocation3 + $0x34] sm:$0xf]
        %v3128 = vld [vmem:[#allocation3 + $0x38] sm:$0xf]
        %v3129 = vld [vmem:[#allocation3 + $0x3c] sm:$0xf]
        %v3146 = vunpack.c.l.b16 %v3114
        %v3147 = vunpack.c.l.b16 %v3115
        %v3148 = vunpack.c.l.b16 %v3116
        %v3149 = vunpack.c.l.b16 %v3117
        %v3150 = vunpack.c.l.b16 %v3118
        %v3151 = vunpack.c.l.b16 %v3119
        %v3152 = vunpack.c.l.b16 %v3120
        %v3153 = vunpack.c.l.b16 %v3121
        %v3154 = vunpack.c.l.b16 %v3122
        %v3155 = vunpack.c.l.b16 %v3123
        %v3156 = vunpack.c.l.b16 %v3124
        %v3157 = vunpack.c.l.b16 %v3125
        %v3158 = vunpack.c.l.b16 %v3126
        %v3159 = vunpack.c.l.b16 %v3127
        %v3160 = vunpack.c.l.b16 %v3128
        %v3161 = vunpack.c.l.b16 %v3129
        %v3162 = vpack.c.b16 %v3147, %v3146
        %v3163 = vpack.c.b16 %v3149, %v3148
        %v3164 = vpack.c.b16 %v3151, %v3150
        %v3165 = vpack.c.b16 %v3153, %v3152
        %v3166 = vpack.c.b16 %v3155, %v3154
        %v3167 = vpack.c.b16 %v3157, %v3156
        %v3168 = vpack.c.b16 %v3159, %v3158
        %v3169 = vpack.c.b16 %v3161, %v3160
        %v3171 = vsel %vm1552, %v3113, 0
        %v3174 = vsel %vm1552, %v3162, 0
        %v3177 = vsel %vm1552, %v3163, 0
        %v3180 = vsel %vm1552, %v3164, 0
        %v3183 = vsel %vm1552, %v3165, 0
        %v3186 = vsel %vm1552, %v3166, 0
        %v3189 = vsel %vm1552, %v3167, 0
        %v3192 = vsel %vm1552, %v3168, 0
        %v3195 = vsel %vm1552, %v3169, 0
        %3197 = vmatprep.subr.bf16.mxu0 0
        %3198 = vmatpush1.bf16.xpose.msra.mxu0 %v3195
        %3199 = vmatprep.subr.bf16.mxu0 0
        %3200 = vmatpush1.bf16.xpose.msra.mxu0 %v3192
        %3201 = vmatprep.subr.bf16.mxu0 0
        %3202 = vmatpush1.bf16.xpose.msra.mxu0 %v3189
        %3203 = vmatprep.subr.bf16.mxu0 0
        %3204 = vmatpush1.bf16.xpose.msra.mxu0 %v3186
        %3205 = vmatprep.subr.bf16.mxu0 0
        %3206 = vmatpush1.bf16.xpose.msra.mxu0 %v3183
        %3207 = vmatprep.subr.bf16.mxu0 0
        %3208 = vmatpush1.bf16.xpose.msra.mxu0 %v3180
        %3209 = vmatprep.subr.bf16.mxu0 0
        %3210 = vmatpush1.bf16.xpose.msra.mxu0 %v3177
        %3211 = vmatprep.subr.bf16.mxu0 0
        %3212 = vmatpush1.bf16.xpose.msra.mxu0 %v3174
        %3213 = vmatprep.subr.bf16.mxu0 0
        %3214 = vmatpush2.bf16.xpose.msra.mxu0 0
        %3215 = vmatprep.subr.bf16.mxu0 0
        %3216 = vmatpush2.bf16.xpose.msra.mxu0 0
        %3217 = vmatprep.subr.bf16.mxu0 0
        %3218 = vmatpush2.bf16.xpose.msra.mxu0 0
        %3219 = vmatprep.subr.bf16.mxu0 0
        %3220 = vmatpush2.bf16.xpose.msra.mxu0 0
        %3221 = vmatprep.subr.bf16.mxu0 0
        %3222 = vmatpush2.bf16.xpose.msra.mxu0 0
        %3223 = vmatprep.subr.bf16.mxu0 0
        %3224 = vmatpush2.bf16.xpose.msra.mxu0 0
        %3225 = vmatprep.subr.bf16.mxu0 0
        %3226 = vmatpush2.bf16.xpose.msra.mxu0 0
        %3227 = vmatprep.subr.bf16.mxu0 0
        %3228 = vmatpush2.bf16.xpose.msra.mxu0 0
        %3229 = vmatprep.mubr.bf16.mxu0 0
        %3230 = vmatmul.mubr.bf16.gmra.mxu0 %v3171
        %v3231 = vpop.f32.mrf.mxu0
        %v3232 = vadd.f32 0.0, %v3231
        %v3233 = vpop.f32.mrf.mxu0
        %v3234 = vpop.f32.mrf.mxu0
        %v3235 = vpop.f32.mrf.mxu0
        %3236 = vdwg.mxu0
        %v3237 = vsub.f32 %v3232, %v794
        %s3238 = scalar_lea.vmem %s391, 16 [#allocation4]
        %3239 = vst [vmem:[%s3238] sm:$0xff] %v3237
        %3240 = vrot.lane.b32.xlu0 %v633, 96
        %v3241 = vpop.permute.xlu0 %3240
        %v3243 = vmul.f32 %v554, %v3241
        %3244 = vrot.lane.b32.xlu0 %v634, 104
        %v3245 = vpop.permute.xlu0 %3244
        %v3247 = vmul.f32 %v554, %v3245
        %3249 = vrot.lane.b32.xlu0 %v3247, 120
        %v3250 = vpop.permute.xlu0 %3249
        %v3252 = vsub.f32 %v3243, %v3250
        %v3253 = vpack.c.bf16 %v3252, %v3252
        %v3255 = vunpack.c.l.b16 %v3253
        %v3256 = vpack.c.b16 %v3255, %v3255
        %3257 = vrot.lane.b32.xlu0 %v3256, 32
        %v3258 = vpop.permute.xlu0 %3257
        %3260 = vst.msk [vmem:[#allocation2] sm:$0xf] %vm807, %v3258
        %3261 = vrot.lane.b32.xlu0 %v633, 104
        %v3262 = vpop.permute.xlu0 %3261
        %v3264 = vmul.f32 %v554, %v3262
        %3265 = vrot.lane.b32.xlu0 %v634, 96
        %v3266 = vpop.permute.xlu0 %3265
        %v3268 = vmul.f32 %v554, %v3266
        %3270 = vrot.lane.b32.xlu0 %v3268, 8
        %v3271 = vpop.permute.xlu0 %3270
        %v3273 = vadd.f32 %v3264, %v3271
        %v3274 = vpack.c.bf16 %v3273, %v3273
        %v3276 = vunpack.c.l.b16 %v3274
        %v3277 = vpack.c.b16 %v3276, %v3276
        %3278 = vrot.lane.b32.xlu0 %v3277, 32
        %v3279 = vpop.permute.xlu0 %3278
        %3281 = vst.msk [vmem:[#allocation2] sm:$0xf] %vm821, %v3279
        %3282 = vrot.lane.b32.xlu0 %v731, 112
        %v3283 = vpop.permute.xlu0 %3282
        %3284 = vrot.lane.b32.xlu0 %v732, 112
        %v3285 = vpop.permute.xlu0 %3284
        %3286 = vrot.lane.b32.xlu0 %v733, 112
        %v3287 = vpop.permute.xlu0 %3286
        %3288 = vrot.lane.b32.xlu0 %v734, 112
        %v3289 = vpop.permute.xlu0 %3288
        %3290 = vrot.lane.b32.xlu0 %v735, 112
        %v3291 = vpop.permute.xlu0 %3290
        %3292 = vrot.lane.b32.xlu0 %v736, 112
        %v3293 = vpop.permute.xlu0 %3292
        %3294 = vrot.lane.b32.xlu0 %v737, 112
        %v3295 = vpop.permute.xlu0 %3294
        %3296 = vrot.lane.b32.xlu0 %v738, 112
        %v3297 = vpop.permute.xlu0 %3296
        %3298 = vrot.lane.b32.xlu0 %v739, 112
        %v3299 = vpop.permute.xlu0 %3298
        %3300 = vrot.lane.b32.xlu0 %v740, 112
        %v3301 = vpop.permute.xlu0 %3300
        %3302 = vrot.lane.b32.xlu0 %v741, 112
        %v3303 = vpop.permute.xlu0 %3302
        %3304 = vrot.lane.b32.xlu0 %v742, 112
        %v3305 = vpop.permute.xlu0 %3304
        %3306 = vrot.lane.b32.xlu0 %v743, 112
        %v3307 = vpop.permute.xlu0 %3306
        %3308 = vrot.lane.b32.xlu0 %v744, 112
        %v3309 = vpop.permute.xlu0 %3308
        %3310 = vrot.lane.b32.xlu0 %v745, 112
        %v3311 = vpop.permute.xlu0 %3310
        %3312 = vrot.lane.b32.xlu0 %v746, 112
        %v3313 = vpop.permute.xlu0 %3312
        %v3330 = vmul.f32 %v554, %v3283
        %v3331 = vmul.f32 %v557, %v3285
        %v3332 = vmul.f32 %v562, %v3287
        %v3333 = vmul.f32 %v565, %v3289
        %v3334 = vmul.f32 %v570, %v3291
        %v3335 = vmul.f32 %v573, %v3293
        %v3336 = vmul.f32 %v578, %v3295
        %v3337 = vmul.f32 %v581, %v3297
        %v3338 = vmul.f32 %v586, %v3299
        %v3339 = vmul.f32 %v589, %v3301
        %v3340 = vmul.f32 %v594, %v3303
        %v3341 = vmul.f32 %v597, %v3305
        %v3342 = vmul.f32 %v602, %v3307
        %v3343 = vmul.f32 %v605, %v3309
        %v3344 = vmul.f32 %v610, %v3311
        %v3345 = vmul.f32 %v613, %v3313
        %3346 = vrot.lane.b32.xlu0 %v763, 120
        %v3347 = vpop.permute.xlu0 %3346
        %3348 = vrot.lane.b32.xlu0 %v764, 120
        %v3349 = vpop.permute.xlu0 %3348
        %3350 = vrot.lane.b32.xlu0 %v765, 120
        %v3351 = vpop.permute.xlu0 %3350
        %3352 = vrot.lane.b32.xlu0 %v766, 120
        %v3353 = vpop.permute.xlu0 %3352
        %3354 = vrot.lane.b32.xlu0 %v767, 120
        %v3355 = vpop.permute.xlu0 %3354
        %3356 = vrot.lane.b32.xlu0 %v768, 120
        %v3357 = vpop.permute.xlu0 %3356
        %3358 = vrot.lane.b32.xlu0 %v769, 120
        %v3359 = vpop.permute.xlu0 %3358
        %3360 = vrot.lane.b32.xlu0 %v770, 120
        %v3361 = vpop.permute.xlu0 %3360
        %3362 = vrot.lane.b32.xlu0 %v771, 120
        %v3363 = vpop.permute.xlu0 %3362
        %3364 = vrot.lane.b32.xlu0 %v772, 120
        %v3365 = vpop.permute.xlu0 %3364
        %3366 = vrot.lane.b32.xlu0 %v773, 120
        %v3367 = vpop.permute.xlu0 %3366
        %3368 = vrot.lane.b32.xlu0 %v774, 120
        %v3369 = vpop.permute.xlu0 %3368
        %3370 = vrot.lane.b32.xlu0 %v775, 120
        %v3371 = vpop.permute.xlu0 %3370
        %3372 = vrot.lane.b32.xlu0 %v776, 120
        %v3373 = vpop.permute.xlu0 %3372
        %3374 = vrot.lane.b32.xlu0 %v777, 120
        %v3375 = vpop.permute.xlu0 %3374
        %3376 = vrot.lane.b32.xlu0 %v778, 120
        %v3377 = vpop.permute.xlu0 %3376
        %v3394 = vmul.f32 %v554, %v3347
        %v3395 = vmul.f32 %v557, %v3349
        %v3396 = vmul.f32 %v562, %v3351
        %v3397 = vmul.f32 %v565, %v3353
        %v3398 = vmul.f32 %v570, %v3355
        %v3399 = vmul.f32 %v573, %v3357
        %v3400 = vmul.f32 %v578, %v3359
        %v3401 = vmul.f32 %v581, %v3361
        %v3402 = vmul.f32 %v586, %v3363
        %v3403 = vmul.f32 %v589, %v3365
        %v3404 = vmul.f32 %v594, %v3367
        %v3405 = vmul.f32 %v597, %v3369
        %v3406 = vmul.f32 %v602, %v3371
        %v3407 = vmul.f32 %v605, %v3373
        %v3408 = vmul.f32 %v610, %v3375
        %v3409 = vmul.f32 %v613, %v3377
        %3426 = vrot.lane.b32.xlu0 %v3394, 120
        %v3427 = vpop.permute.xlu0 %3426
        %3428 = vrot.lane.b32.xlu0 %v3395, 120
        %v3429 = vpop.permute.xlu0 %3428
        %3430 = vrot.lane.b32.xlu0 %v3396, 120
        %v3431 = vpop.permute.xlu0 %3430
        %3432 = vrot.lane.b32.xlu0 %v3397, 120
        %v3433 = vpop.permute.xlu0 %3432
        %3434 = vrot.lane.b32.xlu0 %v3398, 120
        %v3435 = vpop.permute.xlu0 %3434
        %3436 = vrot.lane.b32.xlu0 %v3399, 120
        %v3437 = vpop.permute.xlu0 %3436
        %3438 = vrot.lane.b32.xlu0 %v3400, 120
        %v3439 = vpop.permute.xlu0 %3438
        %3440 = vrot.lane.b32.xlu0 %v3401, 120
        %v3441 = vpop.permute.xlu0 %3440
        %3442 = vrot.lane.b32.xlu0 %v3402, 120
        %v3443 = vpop.permute.xlu0 %3442
        %3444 = vrot.lane.b32.xlu0 %v3403, 120
        %v3445 = vpop.permute.xlu0 %3444
        %3446 = vrot.lane.b32.xlu0 %v3404, 120
        %v3447 = vpop.permute.xlu0 %3446
        %3448 = vrot.lane.b32.xlu0 %v3405, 120
        %v3449 = vpop.permute.xlu0 %3448
        %3450 = vrot.lane.b32.xlu0 %v3406, 120
        %v3451 = vpop.permute.xlu0 %3450
        %3452 = vrot.lane.b32.xlu0 %v3407, 120
        %v3453 = vpop.permute.xlu0 %3452
        %3454 = vrot.lane.b32.xlu0 %v3408, 120
        %v3455 = vpop.permute.xlu0 %3454
        %3456 = vrot.lane.b32.xlu0 %v3409, 120
        %v3457 = vpop.permute.xlu0 %3456
        %v3474 = vsub.f32 %v3330, %v3427
        %v3475 = vsub.f32 %v3331, %v3429
        %v3476 = vsub.f32 %v3332, %v3431
        %v3477 = vsub.f32 %v3333, %v3433
        %v3478 = vsub.f32 %v3334, %v3435
        %v3479 = vsub.f32 %v3335, %v3437
        %v3480 = vsub.f32 %v3336, %v3439
        %v3481 = vsub.f32 %v3337, %v3441
        %v3482 = vsub.f32 %v3338, %v3443
        %v3483 = vsub.f32 %v3339, %v3445
        %v3484 = vsub.f32 %v3340, %v3447
        %v3485 = vsub.f32 %v3341, %v3449
        %v3486 = vsub.f32 %v3342, %v3451
        %v3487 = vsub.f32 %v3343, %v3453
        %v3488 = vsub.f32 %v3344, %v3455
        %v3489 = vsub.f32 %v3345, %v3457
        %v3490 = vpack.c.bf16 %v3475, %v3474
        %v3491 = vpack.c.bf16 %v3477, %v3476
        %v3492 = vpack.c.bf16 %v3479, %v3478
        %v3493 = vpack.c.bf16 %v3481, %v3480
        %v3494 = vpack.c.bf16 %v3483, %v3482
        %v3495 = vpack.c.bf16 %v3485, %v3484
        %v3496 = vpack.c.bf16 %v3487, %v3486
        %v3497 = vpack.c.bf16 %v3489, %v3488
        %v3506 = vunpack.c.l.b16 %v3490
        %v3507 = vunpack.c.h.b16 %v3490
        %v3508 = vunpack.c.l.b16 %v3491
        %v3509 = vunpack.c.h.b16 %v3491
        %v3510 = vunpack.c.l.b16 %v3492
        %v3511 = vunpack.c.h.b16 %v3492
        %v3512 = vunpack.c.l.b16 %v3493
        %v3513 = vunpack.c.h.b16 %v3493
        %v3514 = vunpack.c.l.b16 %v3494
        %v3515 = vunpack.c.h.b16 %v3494
        %v3516 = vunpack.c.l.b16 %v3495
        %v3517 = vunpack.c.h.b16 %v3495
        %v3518 = vunpack.c.l.b16 %v3496
        %v3519 = vunpack.c.h.b16 %v3496
        %v3520 = vunpack.c.l.b16 %v3497
        %v3521 = vunpack.c.h.b16 %v3497
        %v3522 = vpack.c.b16 %v3506, %v3506
        %v3523 = vpack.c.b16 %v3507, %v3507
        %v3524 = vpack.c.b16 %v3508, %v3508
        %v3525 = vpack.c.b16 %v3509, %v3509
        %v3526 = vpack.c.b16 %v3510, %v3510
        %v3527 = vpack.c.b16 %v3511, %v3511
        %v3528 = vpack.c.b16 %v3512, %v3512
        %v3529 = vpack.c.b16 %v3513, %v3513
        %v3530 = vpack.c.b16 %v3514, %v3514
        %v3531 = vpack.c.b16 %v3515, %v3515
        %v3532 = vpack.c.b16 %v3516, %v3516
        %v3533 = vpack.c.b16 %v3517, %v3517
        %v3534 = vpack.c.b16 %v3518, %v3518
        %v3535 = vpack.c.b16 %v3519, %v3519
        %v3536 = vpack.c.b16 %v3520, %v3520
        %v3537 = vpack.c.b16 %v3521, %v3521
        %3538 = vrot.lane.b32.xlu0 %v3522, 16
        %v3539 = vpop.permute.xlu0 %3538
        %3540 = vrot.lane.b32.xlu0 %v3523, 16
        %v3541 = vpop.permute.xlu0 %3540
        %3542 = vrot.lane.b32.xlu0 %v3524, 16
        %v3543 = vpop.permute.xlu0 %3542
        %3544 = vrot.lane.b32.xlu0 %v3525, 16
        %v3545 = vpop.permute.xlu0 %3544
        %3546 = vrot.lane.b32.xlu0 %v3526, 16
        %v3547 = vpop.permute.xlu0 %3546
        %3548 = vrot.lane.b32.xlu0 %v3527, 16
        %v3549 = vpop.permute.xlu0 %3548
        %3550 = vrot.lane.b32.xlu0 %v3528, 16
        %v3551 = vpop.permute.xlu0 %3550
        %3552 = vrot.lane.b32.xlu0 %v3529, 16
        %v3553 = vpop.permute.xlu0 %3552
        %3554 = vrot.lane.b32.xlu0 %v3530, 16
        %v3555 = vpop.permute.xlu0 %3554
        %3556 = vrot.lane.b32.xlu0 %v3531, 16
        %v3557 = vpop.permute.xlu0 %3556
        %3558 = vrot.lane.b32.xlu0 %v3532, 16
        %v3559 = vpop.permute.xlu0 %3558
        %3560 = vrot.lane.b32.xlu0 %v3533, 16
        %v3561 = vpop.permute.xlu0 %3560
        %3562 = vrot.lane.b32.xlu0 %v3534, 16
        %v3563 = vpop.permute.xlu0 %3562
        %3564 = vrot.lane.b32.xlu0 %v3535, 16
        %v3565 = vpop.permute.xlu0 %3564
        %3566 = vrot.lane.b32.xlu0 %v3536, 16
        %v3567 = vpop.permute.xlu0 %3566
        %3568 = vrot.lane.b32.xlu0 %v3537, 16
        %v3569 = vpop.permute.xlu0 %3568
        %3586 = vst.msk [vmem:[#allocation3] sm:$0xf] %vm807, %v3539
        %3587 = vst.msk [vmem:[#allocation3 + $0x4] sm:$0xf] %vm807, %v3541
        %3588 = vst.msk [vmem:[#allocation3 + $0x8] sm:$0xf] %vm807, %v3543
        %3589 = vst.msk [vmem:[#allocation3 + $0xc] sm:$0xf] %vm807, %v3545
        %3590 = vst.msk [vmem:[#allocation3 + $0x10] sm:$0xf] %vm807, %v3547
        %3591 = vst.msk [vmem:[#allocation3 + $0x14] sm:$0xf] %vm807, %v3549
        %3592 = vst.msk [vmem:[#allocation3 + $0x18] sm:$0xf] %vm807, %v3551
        %3593 = vst.msk [vmem:[#allocation3 + $0x1c] sm:$0xf] %vm807, %v3553
        %3594 = vst.msk [vmem:[#allocation3 + $0x20] sm:$0xf] %vm807, %v3555
        %3595 = vst.msk [vmem:[#allocation3 + $0x24] sm:$0xf] %vm807, %v3557
        %3596 = vst.msk [vmem:[#allocation3 + $0x28] sm:$0xf] %vm807, %v3559
        %3597 = vst.msk [vmem:[#allocation3 + $0x2c] sm:$0xf] %vm807, %v3561
        %3598 = vst.msk [vmem:[#allocation3 + $0x30] sm:$0xf] %vm807, %v3563
        %3599 = vst.msk [vmem:[#allocation3 + $0x34] sm:$0xf] %vm807, %v3565
        %3600 = vst.msk [vmem:[#allocation3 + $0x38] sm:$0xf] %vm807, %v3567
        %3601 = vst.msk [vmem:[#allocation3 + $0x3c] sm:$0xf] %vm807, %v3569
        %3602 = vrot.lane.b32.xlu0 %v731, 120
        %v3603 = vpop.permute.xlu0 %3602
        %3604 = vrot.lane.b32.xlu0 %v732, 120
        %v3605 = vpop.permute.xlu0 %3604
        %3606 = vrot.lane.b32.xlu0 %v733, 120
        %v3607 = vpop.permute.xlu0 %3606
        %3608 = vrot.lane.b32.xlu0 %v734, 120
        %v3609 = vpop.permute.xlu0 %3608
        %3610 = vrot.lane.b32.xlu0 %v735, 120
        %v3611 = vpop.permute.xlu0 %3610
        %3612 = vrot.lane.b32.xlu0 %v736, 120
        %v3613 = vpop.permute.xlu0 %3612
        %3614 = vrot.lane.b32.xlu0 %v737, 120
        %v3615 = vpop.permute.xlu0 %3614
        %3616 = vrot.lane.b32.xlu0 %v738, 120
        %v3617 = vpop.permute.xlu0 %3616
        %3618 = vrot.lane.b32.xlu0 %v739, 120
        %v3619 = vpop.permute.xlu0 %3618
        %3620 = vrot.lane.b32.xlu0 %v740, 120
        %v3621 = vpop.permute.xlu0 %3620
        %3622 = vrot.lane.b32.xlu0 %v741, 120
        %v3623 = vpop.permute.xlu0 %3622
        %3624 = vrot.lane.b32.xlu0 %v742, 120
        %v3625 = vpop.permute.xlu0 %3624
        %3626 = vrot.lane.b32.xlu0 %v743, 120
        %v3627 = vpop.permute.xlu0 %3626
        %3628 = vrot.lane.b32.xlu0 %v744, 120
        %v3629 = vpop.permute.xlu0 %3628
        %3630 = vrot.lane.b32.xlu0 %v745, 120
        %v3631 = vpop.permute.xlu0 %3630
        %3632 = vrot.lane.b32.xlu0 %v746, 120
        %v3633 = vpop.permute.xlu0 %3632
        %v3650 = vmul.f32 %v554, %v3603
        %v3651 = vmul.f32 %v557, %v3605
        %v3652 = vmul.f32 %v562, %v3607
        %v3653 = vmul.f32 %v565, %v3609
        %v3654 = vmul.f32 %v570, %v3611
        %v3655 = vmul.f32 %v573, %v3613
        %v3656 = vmul.f32 %v578, %v3615
        %v3657 = vmul.f32 %v581, %v3617
        %v3658 = vmul.f32 %v586, %v3619
        %v3659 = vmul.f32 %v589, %v3621
        %v3660 = vmul.f32 %v594, %v3623
        %v3661 = vmul.f32 %v597, %v3625
        %v3662 = vmul.f32 %v602, %v3627
        %v3663 = vmul.f32 %v605, %v3629
        %v3664 = vmul.f32 %v610, %v3631
        %v3665 = vmul.f32 %v613, %v3633
        %3666 = vrot.lane.b32.xlu0 %v763, 112
        %v3667 = vpop.permute.xlu0 %3666
        %3668 = vrot.lane.b32.xlu0 %v764, 112
        %v3669 = vpop.permute.xlu0 %3668
        %3670 = vrot.lane.b32.xlu0 %v765, 112
        %v3671 = vpop.permute.xlu0 %3670
        %3672 = vrot.lane.b32.xlu0 %v766, 112
        %v3673 = vpop.permute.xlu0 %3672
        %3674 = vrot.lane.b32.xlu0 %v767, 112
        %v3675 = vpop.permute.xlu0 %3674
        %3676 = vrot.lane.b32.xlu0 %v768, 112
        %v3677 = vpop.permute.xlu0 %3676
        %3678 = vrot.lane.b32.xlu0 %v769, 112
        %v3679 = vpop.permute.xlu0 %3678
        %3680 = vrot.lane.b32.xlu0 %v770, 112
        %v3681 = vpop.permute.xlu0 %3680
        %3682 = vrot.lane.b32.xlu0 %v771, 112
        %v3683 = vpop.permute.xlu0 %3682
        %3684 = vrot.lane.b32.xlu0 %v772, 112
        %v3685 = vpop.permute.xlu0 %3684
        %3686 = vrot.lane.b32.xlu0 %v773, 112
        %v3687 = vpop.permute.xlu0 %3686
        %3688 = vrot.lane.b32.xlu0 %v774, 112
        %v3689 = vpop.permute.xlu0 %3688
        %3690 = vrot.lane.b32.xlu0 %v775, 112
        %v3691 = vpop.permute.xlu0 %3690
        %3692 = vrot.lane.b32.xlu0 %v776, 112
        %v3693 = vpop.permute.xlu0 %3692
        %3694 = vrot.lane.b32.xlu0 %v777, 112
        %v3695 = vpop.permute.xlu0 %3694
        %3696 = vrot.lane.b32.xlu0 %v778, 112
        %v3697 = vpop.permute.xlu0 %3696
        %v3714 = vmul.f32 %v554, %v3667
        %v3715 = vmul.f32 %v557, %v3669
        %v3716 = vmul.f32 %v562, %v3671
        %v3717 = vmul.f32 %v565, %v3673
        %v3718 = vmul.f32 %v570, %v3675
        %v3719 = vmul.f32 %v573, %v3677
        %v3720 = vmul.f32 %v578, %v3679
        %v3721 = vmul.f32 %v581, %v3681
        %v3722 = vmul.f32 %v586, %v3683
        %v3723 = vmul.f32 %v589, %v3685
        %v3724 = vmul.f32 %v594, %v3687
        %v3725 = vmul.f32 %v597, %v3689
        %v3726 = vmul.f32 %v602, %v3691
        %v3727 = vmul.f32 %v605, %v3693
        %v3728 = vmul.f32 %v610, %v3695
        %v3729 = vmul.f32 %v613, %v3697
        %3746 = vrot.lane.b32.xlu0 %v3714, 8
        %v3747 = vpop.permute.xlu0 %3746
        %3748 = vrot.lane.b32.xlu0 %v3715, 8
        %v3749 = vpop.permute.xlu0 %3748
        %3750 = vrot.lane.b32.xlu0 %v3716, 8
        %v3751 = vpop.permute.xlu0 %3750
        %3752 = vrot.lane.b32.xlu0 %v3717, 8
        %v3753 = vpop.permute.xlu0 %3752
        %3754 = vrot.lane.b32.xlu0 %v3718, 8
        %v3755 = vpop.permute.xlu0 %3754
        %3756 = vrot.lane.b32.xlu0 %v3719, 8
        %v3757 = vpop.permute.xlu0 %3756
        %3758 = vrot.lane.b32.xlu0 %v3720, 8
        %v3759 = vpop.permute.xlu0 %3758
        %3760 = vrot.lane.b32.xlu0 %v3721, 8
        %v3761 = vpop.permute.xlu0 %3760
        %3762 = vrot.lane.b32.xlu0 %v3722, 8
        %v3763 = vpop.permute.xlu0 %3762
        %3764 = vrot.lane.b32.xlu0 %v3723, 8
        %v3765 = vpop.permute.xlu0 %3764
        %3766 = vrot.lane.b32.xlu0 %v3724, 8
        %v3767 = vpop.permute.xlu0 %3766
        %3768 = vrot.lane.b32.xlu0 %v3725, 8
        %v3769 = vpop.permute.xlu0 %3768
        %3770 = vrot.lane.b32.xlu0 %v3726, 8
        %v3771 = vpop.permute.xlu0 %3770
        %3772 = vrot.lane.b32.xlu0 %v3727, 8
        %v3773 = vpop.permute.xlu0 %3772
        %3774 = vrot.lane.b32.xlu0 %v3728, 8
        %v3775 = vpop.permute.xlu0 %3774
        %3776 = vrot.lane.b32.xlu0 %v3729, 8
        %v3777 = vpop.permute.xlu0 %3776
        %v3794 = vadd.f32 %v3650, %v3747
        %v3795 = vadd.f32 %v3651, %v3749
        %v3796 = vadd.f32 %v3652, %v3751
        %v3797 = vadd.f32 %v3653, %v3753
        %v3798 = vadd.f32 %v3654, %v3755
        %v3799 = vadd.f32 %v3655, %v3757
        %v3800 = vadd.f32 %v3656, %v3759
        %v3801 = vadd.f32 %v3657, %v3761
        %v3802 = vadd.f32 %v3658, %v3763
        %v3803 = vadd.f32 %v3659, %v3765
        %v3804 = vadd.f32 %v3660, %v3767
        %v3805 = vadd.f32 %v3661, %v3769
        %v3806 = vadd.f32 %v3662, %v3771
        %v3807 = vadd.f32 %v3663, %v3773
        %v3808 = vadd.f32 %v3664, %v3775
        %v3809 = vadd.f32 %v3665, %v3777
        %v3810 = vpack.c.bf16 %v3795, %v3794
        %v3811 = vpack.c.bf16 %v3797, %v3796
        %v3812 = vpack.c.bf16 %v3799, %v3798
        %v3813 = vpack.c.bf16 %v3801, %v3800
        %v3814 = vpack.c.bf16 %v3803, %v3802
        %v3815 = vpack.c.bf16 %v3805, %v3804
        %v3816 = vpack.c.bf16 %v3807, %v3806
        %v3817 = vpack.c.bf16 %v3809, %v3808
        %v3826 = vunpack.c.l.b16 %v3810
        %v3827 = vunpack.c.h.b16 %v3810
        %v3828 = vunpack.c.l.b16 %v3811
        %v3829 = vunpack.c.h.b16 %v3811
        %v3830 = vunpack.c.l.b16 %v3812
        %v3831 = vunpack.c.h.b16 %v3812
        %v3832 = vunpack.c.l.b16 %v3813
        %v3833 = vunpack.c.h.b16 %v3813
        %v3834 = vunpack.c.l.b16 %v3814
        %v3835 = vunpack.c.h.b16 %v3814
        %v3836 = vunpack.c.l.b16 %v3815
        %v3837 = vunpack.c.h.b16 %v3815
        %v3838 = vunpack.c.l.b16 %v3816
        %v3839 = vunpack.c.h.b16 %v3816
        %v3840 = vunpack.c.l.b16 %v3817
        %v3841 = vunpack.c.h.b16 %v3817
        %v3842 = vpack.c.b16 %v3826, %v3826
        %v3843 = vpack.c.b16 %v3827, %v3827
        %v3844 = vpack.c.b16 %v3828, %v3828
        %v3845 = vpack.c.b16 %v3829, %v3829
        %v3846 = vpack.c.b16 %v3830, %v3830
        %v3847 = vpack.c.b16 %v3831, %v3831
        %v3848 = vpack.c.b16 %v3832, %v3832
        %v3849 = vpack.c.b16 %v3833, %v3833
        %v3850 = vpack.c.b16 %v3834, %v3834
        %v3851 = vpack.c.b16 %v3835, %v3835
        %v3852 = vpack.c.b16 %v3836, %v3836
        %v3853 = vpack.c.b16 %v3837, %v3837
        %v3854 = vpack.c.b16 %v3838, %v3838
        %v3855 = vpack.c.b16 %v3839, %v3839
        %v3856 = vpack.c.b16 %v3840, %v3840
        %v3857 = vpack.c.b16 %v3841, %v3841
        %3858 = vrot.lane.b32.xlu0 %v3842, 16
        %v3859 = vpop.permute.xlu0 %3858
        %3860 = vrot.lane.b32.xlu0 %v3843, 16
        %v3861 = vpop.permute.xlu0 %3860
        %3862 = vrot.lane.b32.xlu0 %v3844, 16
        %v3863 = vpop.permute.xlu0 %3862
        %3864 = vrot.lane.b32.xlu0 %v3845, 16
        %v3865 = vpop.permute.xlu0 %3864
        %3866 = vrot.lane.b32.xlu0 %v3846, 16
        %v3867 = vpop.permute.xlu0 %3866
        %3868 = vrot.lane.b32.xlu0 %v3847, 16
        %v3869 = vpop.permute.xlu0 %3868
        %3870 = vrot.lane.b32.xlu0 %v3848, 16
        %v3871 = vpop.permute.xlu0 %3870
        %3872 = vrot.lane.b32.xlu0 %v3849, 16
        %v3873 = vpop.permute.xlu0 %3872
        %3874 = vrot.lane.b32.xlu0 %v3850, 16
        %v3875 = vpop.permute.xlu0 %3874
        %3876 = vrot.lane.b32.xlu0 %v3851, 16
        %v3877 = vpop.permute.xlu0 %3876
        %3878 = vrot.lane.b32.xlu0 %v3852, 16
        %v3879 = vpop.permute.xlu0 %3878
        %3880 = vrot.lane.b32.xlu0 %v3853, 16
        %v3881 = vpop.permute.xlu0 %3880
        %3882 = vrot.lane.b32.xlu0 %v3854, 16
        %v3883 = vpop.permute.xlu0 %3882
        %3884 = vrot.lane.b32.xlu0 %v3855, 16
        %v3885 = vpop.permute.xlu0 %3884
        %3886 = vrot.lane.b32.xlu0 %v3856, 16
        %v3887 = vpop.permute.xlu0 %3886
        %3888 = vrot.lane.b32.xlu0 %v3857, 16
        %v3889 = vpop.permute.xlu0 %3888
        %3906 = vst.msk [vmem:[#allocation3] sm:$0xf] %vm821, %v3859
        %3907 = vst.msk [vmem:[#allocation3 + $0x4] sm:$0xf] %vm821, %v3861
        %3908 = vst.msk [vmem:[#allocation3 + $0x8] sm:$0xf] %vm821, %v3863
        %3909 = vst.msk [vmem:[#allocation3 + $0xc] sm:$0xf] %vm821, %v3865
        %3910 = vst.msk [vmem:[#allocation3 + $0x10] sm:$0xf] %vm821, %v3867
        %3911 = vst.msk [vmem:[#allocation3 + $0x14] sm:$0xf] %vm821, %v3869
        %3912 = vst.msk [vmem:[#allocation3 + $0x18] sm:$0xf] %vm821, %v3871
        %3913 = vst.msk [vmem:[#allocation3 + $0x1c] sm:$0xf] %vm821, %v3873
        %3914 = vst.msk [vmem:[#allocation3 + $0x20] sm:$0xf] %vm821, %v3875
        %3915 = vst.msk [vmem:[#allocation3 + $0x24] sm:$0xf] %vm821, %v3877
        %3916 = vst.msk [vmem:[#allocation3 + $0x28] sm:$0xf] %vm821, %v3879
        %3917 = vst.msk [vmem:[#allocation3 + $0x2c] sm:$0xf] %vm821, %v3881
        %3918 = vst.msk [vmem:[#allocation3 + $0x30] sm:$0xf] %vm821, %v3883
        %3919 = vst.msk [vmem:[#allocation3 + $0x34] sm:$0xf] %vm821, %v3885
        %3920 = vst.msk [vmem:[#allocation3 + $0x38] sm:$0xf] %vm821, %v3887
        %3921 = vst.msk [vmem:[#allocation3 + $0x3c] sm:$0xf] %vm821, %v3889
        %v3922 = vld [vmem:[#allocation2] sm:$0xf]
        %v3923 = vld [vmem:[#allocation3] sm:$0xf]
        %v3924 = vld [vmem:[#allocation3 + $0x4] sm:$0xf]
        %v3925 = vld [vmem:[#allocation3 + $0x8] sm:$0xf]
        %v3926 = vld [vmem:[#allocation3 + $0xc] sm:$0xf]
        %v3927 = vld [vmem:[#allocation3 + $0x10] sm:$0xf]
        %v3928 = vld [vmem:[#allocation3 + $0x14] sm:$0xf]
        %v3929 = vld [vmem:[#allocation3 + $0x18] sm:$0xf]
        %v3930 = vld [vmem:[#allocation3 + $0x1c] sm:$0xf]
        %v3931 = vld [vmem:[#allocation3 + $0x20] sm:$0xf]
        %v3932 = vld [vmem:[#allocation3 + $0x24] sm:$0xf]
        %v3933 = vld [vmem:[#allocation3 + $0x28] sm:$0xf]
        %v3934 = vld [vmem:[#allocation3 + $0x2c] sm:$0xf]
        %v3935 = vld [vmem:[#allocation3 + $0x30] sm:$0xf]
        %v3936 = vld [vmem:[#allocation3 + $0x34] sm:$0xf]
        %v3937 = vld [vmem:[#allocation3 + $0x38] sm:$0xf]
        %v3938 = vld [vmem:[#allocation3 + $0x3c] sm:$0xf]
        %v3955 = vunpack.c.l.b16 %v3923
        %v3956 = vunpack.c.l.b16 %v3924
        %v3957 = vunpack.c.l.b16 %v3925
        %v3958 = vunpack.c.l.b16 %v3926
        %v3959 = vunpack.c.l.b16 %v3927
        %v3960 = vunpack.c.l.b16 %v3928
        %v3961 = vunpack.c.l.b16 %v3929
        %v3962 = vunpack.c.l.b16 %v3930
        %v3963 = vunpack.c.l.b16 %v3931
        %v3964 = vunpack.c.l.b16 %v3932
        %v3965 = vunpack.c.l.b16 %v3933
        %v3966 = vunpack.c.l.b16 %v3934
        %v3967 = vunpack.c.l.b16 %v3935
        %v3968 = vunpack.c.l.b16 %v3936
        %v3969 = vunpack.c.l.b16 %v3937
        %v3970 = vunpack.c.l.b16 %v3938
        %v3971 = vpack.c.b16 %v3956, %v3955
        %v3972 = vpack.c.b16 %v3958, %v3957
        %v3973 = vpack.c.b16 %v3960, %v3959
        %v3974 = vpack.c.b16 %v3962, %v3961
        %v3975 = vpack.c.b16 %v3964, %v3963
        %v3976 = vpack.c.b16 %v3966, %v3965
        %v3977 = vpack.c.b16 %v3968, %v3967
        %v3978 = vpack.c.b16 %v3970, %v3969
        %v3980 = vsel %vm1552, %v3922, 0
        %v3983 = vsel %vm1552, %v3971, 0
        %v3986 = vsel %vm1552, %v3972, 0
        %v3989 = vsel %vm1552, %v3973, 0
        %v3992 = vsel %vm1552, %v3974, 0
        %v3995 = vsel %vm1552, %v3975, 0
        %v3998 = vsel %vm1552, %v3976, 0
        %v4001 = vsel %vm1552, %v3977, 0
        %v4004 = vsel %vm1552, %v3978, 0
        %4006 = vmatprep.subr.bf16.mxu0 0
        %4007 = vmatpush1.bf16.xpose.msra.mxu0 %v4004
        %4008 = vmatprep.subr.bf16.mxu0 0
        %4009 = vmatpush1.bf16.xpose.msra.mxu0 %v4001
        %4010 = vmatprep.subr.bf16.mxu0 0
        %4011 = vmatpush1.bf16.xpose.msra.mxu0 %v3998
        %4012 = vmatprep.subr.bf16.mxu0 0
        %4013 = vmatpush1.bf16.xpose.msra.mxu0 %v3995
        %4014 = vmatprep.subr.bf16.mxu0 0
        %4015 = vmatpush1.bf16.xpose.msra.mxu0 %v3992
        %4016 = vmatprep.subr.bf16.mxu0 0
        %4017 = vmatpush1.bf16.xpose.msra.mxu0 %v3989
        %4018 = vmatprep.subr.bf16.mxu0 0
        %4019 = vmatpush1.bf16.xpose.msra.mxu0 %v3986
        %4020 = vmatprep.subr.bf16.mxu0 0
        %4021 = vmatpush1.bf16.xpose.msra.mxu0 %v3983
        %4022 = vmatprep.subr.bf16.mxu0 0
        %4023 = vmatpush2.bf16.xpose.msra.mxu0 0
        %4024 = vmatprep.subr.bf16.mxu0 0
        %4025 = vmatpush2.bf16.xpose.msra.mxu0 0
        %4026 = vmatprep.subr.bf16.mxu0 0
        %4027 = vmatpush2.bf16.xpose.msra.mxu0 0
        %4028 = vmatprep.subr.bf16.mxu0 0
        %4029 = vmatpush2.bf16.xpose.msra.mxu0 0
        %4030 = vmatprep.subr.bf16.mxu0 0
        %4031 = vmatpush2.bf16.xpose.msra.mxu0 0
        %4032 = vmatprep.subr.bf16.mxu0 0
        %4033 = vmatpush2.bf16.xpose.msra.mxu0 0
        %4034 = vmatprep.subr.bf16.mxu0 0
        %4035 = vmatpush2.bf16.xpose.msra.mxu0 0
        %4036 = vmatprep.subr.bf16.mxu0 0
        %4037 = vmatpush2.bf16.xpose.msra.mxu0 0
        %4038 = vmatprep.mubr.bf16.mxu0 0
        %4039 = vmatmul.mubr.bf16.gmra.mxu0 %v3980
        %v4040 = vpop.f32.mrf.mxu0
        %v4041 = vadd.f32 0.0, %v4040
        %v4042 = vpop.f32.mrf.mxu0
        %v4043 = vpop.f32.mrf.mxu0
        %v4044 = vpop.f32.mrf.mxu0
        %4045 = vdwg.mxu0
        %v4046 = vsub.f32 %v4041, %v794
        %s4047 = scalar_lea.vmem %s391, 24 [#allocation4]
        %4048 = vst [vmem:[%s4047] sm:$0xff] %v4046
        %s4049 = sand.u32 %s259, 1
        %s4050 = scalar_lea.sflag [#allocation5], %s4049
        %s4051 = sand.u32 %s259, 1
        %s4052 = smul.addr %s4051, 32
        %s4053 = scalar_lea.vmem [#allocation4], %s4052
        // Predicated region
        $region57: #{tpu_custom_call.1} parent=55 // pred_check
          %p4054 = pneg %p269
        $region58: #{tpu_custom_call.1} parent=55 // pred_check_branch
          %4056 = sbr.rel (%p4054) target = $region60
        $region59: #{tpu_custom_call.1} parent=55 // pred_region
          %s4057 = smul.u32 4, %s27
          %s4059 = ssub.s32 512, 512
          %4060 = vsyncadd %s4050, %s4059
          %s4061 = smul.addr %s28, 4
          %s4062 = sadd.s32 %s4057, %s4061
          %s4063 = smul.addr %s4062, 128
          %s4064 = scalar_lea.hbm %s9, %s4063
          %s4065 = sshll.u32 %s4053, 4
          %s4066 = int_to_ptr.vmem [resolvable:$true] %s4065
          %4071 = dma.vmem_to_hbm [thread:$0]  %s4066, 512, %s4064, %s4050, 128, 128, 8
        $region60: #{tpu_custom_call.1} parent=55 // pred_fallthru
          _
      $region56: #{tpu_custom_call.1} parent=5 // pred_fallthru
        _
      %p4072 = scmp.le.s32.totalorder 2, %s18
      // Predicated region
      $region61: #{tpu_custom_call.1} parent=5 // pred_check
        %p4073 = pneg %p4072
      $region62: #{tpu_custom_call.1} parent=5 // pred_check_branch
        %4075 = sbr.rel (%p4073) target = $region64
      $region63: #{tpu_custom_call.1} parent=5 // pred_region
        %s4076 = ssub.s32 %s18, 2
        // Predicated region
        $region65: #{tpu_custom_call.1} parent=63 // pred_check
          %p4077 = pneg %p275
        $region66: #{tpu_custom_call.1} parent=63 // pred_check_branch
          %4079 = sbr.rel (%p4077) target = $region68
        $region67: #{tpu_custom_call.1} parent=63 // pred_region
          %s4080 = sand.u32 %s260, 1
          %s4081 = scalar_lea.sflag [#allocation5], %s4080
          %s4082 = sand.u32 %s260, 1
          %s4083 = smul.addr %s4082, 32
          %s4084 = scalar_lea.vmem [#allocation4], %s4083
          %4085 = dma.done %s4081, 512
        $region68: #{tpu_custom_call.1} parent=63 // pred_fallthru
          _
      $region64: #{tpu_custom_call.1} parent=5 // pred_fallthru
        _
    $region6: #{tpu_custom_call.1} parent=1 // loop_footer
      %s22 = sadd.s32 1, %s18
    $region7: #{tpu_custom_call.1} parent=1 // loop_footer_branch
      %17 = sbr.rel target = $region3
    $region8: #{tpu_custom_call.1} parent=1 // loop_exit
      _
    %4086 = vsyncpa [#allocation5], 1
    %s4087 = scalar_lea.sflag [#allocation5], 1
    %4088 = vsyncpa %s4087, 1

</llo_original>
